<compile_context>
chip_gen: v6e
topology: v6e:2x2x1
jax: 0.10.0
libtpu: 0.0.40
codegen_flags: <defaults>
</compile_context>

<pallas_src>
import numpy as np
import jax
import jax.numpy as jnp
from jax.experimental import pallas as pl
from jax.experimental.pallas import tpu as pltpu


# ----------------------------------------------------------------------------
# Bilinear interpolation matrix (PyTorch align_corners=False semantics).
# out = M @ in along one spatial axis, M: (out_size, in_size).  Rows sum to 1.
# ----------------------------------------------------------------------------
def bilinear_matrix(out_size, in_size):
    scale = in_size / out_size
    dst = np.arange(out_size, dtype=np.float64)
    src = np.clip((dst + 0.5) * scale - 0.5, 0.0, in_size - 1)
    i0 = np.floor(src).astype(np.int64)
    i1 = np.minimum(i0 + 1, in_size - 1)
    frac = (src - i0).astype(np.float32)
    M = np.zeros((out_size, in_size), dtype=np.float32)
    M[np.arange(out_size), i0] += 1.0 - frac
    M[np.arange(out_size), i1] += frac
    return M


# ----------------------------------------------------------------------------
# Deterministic stand-in head parameters (w0, w1, w2, bias, scale, offset).
# ----------------------------------------------------------------------------
_MIN_DEPTH, _MAX_DEPTH = 0.001, 80.0
_W_A = (0.20, 0.30, 0.50, 0.10, 0.30, 0.01)                            # DispNetS -> disparity
_W_B = (0.50, 0.25, 0.25, -0.20, _MAX_DEPTH - _MIN_DEPTH, _MIN_DEPTH)  # AdaBins -> depth
_W_D = (0.33, 0.33, 0.34, 0.00, 0.29, 0.01)                            # monodepth2 -> disparity

_HB, _WB = 416, 544      # hardcoded AdaBins input resolution
_HD, _WD = 192, 640      # hardcoded monodepth2 input resolution


def _ceil_to(v, m):
    return ((v + m - 1) // m) * m


# ----------------------------------------------------------------------------
# Kernel factory (branch-A specialization and segment offsets are trace-time).
# ----------------------------------------------------------------------------
def _make_kernel(same_res_a, off_b, off_d, off_a, win):
    bf16 = jnp.bfloat16
    f32 = jnp.float32

    def premix(x0, x1, x2, w):           # channel mix + bias (VPU, f32)
        return w[0] * x0 + w[1] * x1 + w[2] * x2 + w[3]

    def head(z, w):                      # sigmoid via a SINGLE EUP tanh
        a = 0.5 * w[4]                   # w4*sigmoid(z)+w5 == a*tanh(z/2)+a+w5
        return a * jnp.tanh(0.5 * z) + (a + w[5])

    def upsample(mixed, ry_ref, rx_t_ref):
        # mixed (Hin,Win) f32; rx_t (Win,Wo); ry (Ho,Hin).  Two canonical
        # bf16 MXU dots with f32 accumulation, lane-dense intermediate.
        t = jnp.dot(mixed.astype(bf16), rx_t_ref[...],
                    preferred_element_type=f32)                     # (Hin, Wo)
        return jnp.dot(ry_ref[...], t.astype(bf16),
                       preferred_element_type=f32)                  # (Ho, Wo)

    def kernel(*refs):
        if same_res_a:
            (ryub, rxubt, ryud, rxudt, rybs3, ryds3, rxcat,
             x_ref, o_ref, cat) = refs
        else:
            (ryub, rxubt, ryud, rxudt, rybs3, ryds3, rxcat, ryas3,
             x_ref, o_ref, cat) = refs

        x0 = x_ref[0]
        x1 = x_ref[1]
        x2 = x_ref[2]

        # Zero the concat scratch so its pad lanes (matched by zero rows in
        # rxcat) contribute exactly 0 to the fused matmul.
        cat[...] = jnp.zeros_like(cat)

        # Branch B (AdaBins stand-in): premixed upsample to (416,544) -> head
        # -> row-downsample (carries the /3).
        up_b = upsample(premix(x0, x1, x2, _W_B), ryub, rxubt)       # (416,544)
        depth_b = head(up_b, _W_B)
        r_b = jnp.dot(rybs3[...], depth_b.astype(bf16),
                      preferred_element_type=f32)                    # (h, 544)
        cat[:, off_b:off_b + _WB] = r_b.astype(bf16)

        # Branch D (monodepth2 stand-in): premixed upsample to (192,640)
        # -> head -> 1/disp -> row-downsample (carries the /3).
        up_d = upsample(premix(x0, x1, x2, _W_D), ryud, rxudt)       # (192,640)
        depth_d = pl.reciprocal(head(up_d, _W_D), approx=True)
        r_d = jnp.dot(ryds3[...], depth_d.astype(bf16),
                      preferred_element_type=f32)                    # (h, 640)
        cat[:, off_d:off_d + _WD] = r_d.astype(bf16)

        # Branch A (DispNetS stand-in): head at native res -> 1/disp.
        disp_a = head(premix(x0, x1, x2, _W_A), _W_A)
        depth_a = pl.reciprocal(disp_a, approx=True)                 # (Hin,Win)
        if not same_res_a:
            r_a = jnp.dot(ryas3[...], depth_a.astype(bf16),
                          preferred_element_type=f32)                # (h, Win)
            cat[:, off_a:off_a + win] = r_a.astype(bf16)

        # Fused column-downsample of all branches + 3-way sum: one MXU call
        # with contraction ~1200+ (fills the 256-deep MXU on v6e/v7x).
        out = jnp.dot(cat[...], rxcat[...], preferred_element_type=f32)
        if same_res_a:
            # bilinear_matrix(n,n) == identity: add branch A directly (f32).
            out = out + depth_a * (1.0 / 3.0)
        o_ref[...] = out

    return kernel


# ----------------------------------------------------------------------------
# Wrapper: builds trace-time constants, BlockSpecs, VMEM budget, cost hint.
# ----------------------------------------------------------------------------
def average_depth_forward(x, height, width):
    """Eval-mode (self.training == False) forward of AverageDepth."""
    B, C, Hin, Win = x.shape
    assert C == 3, "AverageDepth expects RGB input"
    f32, bf16 = jnp.float32, jnp.bfloat16
    same_res_a = (height == Hin and width == Win)

    # Upsample matrices, canonical orientation: ry (Ho,Hin), rx^T (Win,Wo).
    ryub = bilinear_matrix(_HB, Hin)              # (416, Hin)
    rxubt = bilinear_matrix(_WB, Win).T           # (Win, 544)  lane-dense
    ryud = bilinear_matrix(_HD, Hin)              # (192, Hin)
    rxudt = bilinear_matrix(_WD, Win).T           # (Win, 640)  lane-dense

    # Row-downsample matrices; /3 of the final average folded in.
    rybs3 = bilinear_matrix(height, _HB) / 3.0    # (h, 416)
    ryds3 = bilinear_matrix(height, _HD) / 3.0    # (h, 192)

    # Fused column-downsample constant: [rxB^T | rxD^T | rxA^T] stacked along
    # the contraction dim, each segment padded with zero rows to 128 lanes.
    pad_b = _ceil_to(_WB, 128)
    pad_d = _ceil_to(_WD, 128)
    off_b, off_d = 0, pad_b
    segs = pad_b + pad_d
    off_a = segs
    if not same_res_a:
        segs += _ceil_to(Win, 128)
    rxcat = np.zeros((segs, width), np.float32)
    rxcat[off_b:off_b + _WB] = bilinear_matrix(width, _WB).T
    rxcat[off_d:off_d + _WD] = bilinear_matrix(width, _WD).T
    if not same_res_a:
        rxcat[off_a:off_a + Win] = bilinear_matrix(width, Win).T

    mats = [ryub, rxubt, ryud, rxudt, rybs3, ryds3, rxcat]
    if not same_res_a:
        mats.append(bilinear_matrix(height, Hin) / 3.0)              # ryas3
    mats = [jnp.asarray(m, bf16) for m in mats]   # bf16 MXU operands

    mat_specs = [pl.BlockSpec(m.shape, lambda b: (0, 0)) for m in mats]

    kernel = _make_kernel(same_res_a, off_b, off_d, off_a, Win)

    # --- explicit VMEM budget (blocks are double-buffered by default) ------
    mat_bytes = sum(int(np.prod(m.shape)) * 2 for m in mats)
    block_bytes = 2 * (3 * Hin * Win * 4 + height * width * 4 + mat_bytes)
    interm_bytes = 5 * (_HB * _WB + _HD * _WD) * 4 + 4 * Hin * Win * 4
    scratch_bytes = height * segs * 2
    vmem_limit = int(min(56 << 20,            # headroom on v7x (64 MiB phys.)
                         max(32 << 20,
                             block_bytes + interm_bytes + scratch_bytes
                             + (4 << 20))))

    # --- advisory cost estimate for the XLA scheduler -----------------------
    flops = 2 * B * (Hin * Win * _WB + _HB * Hin * _WB + height * _HB * _WB
                     + Hin * Win * _WD + _HD * Hin * _WD + height * _HD * _WD
                     + height * segs * width)
    if not same_res_a:
        flops += 2 * B * height * Hin * Win
    transcend = B * (_HB * _WB + 2 * _HD * _WD + 2 * Hin * Win)
    bytes_accessed = B * (3 * Hin * Win * 4 + height * width * 4) + mat_bytes

    # NOTE: for B == 1 on v7x a branch-level split over a second parallel grid
    # axis would keep both TensorCores busy; with B >= 2 the batch axis does.
    return pl.pallas_call(
        kernel,
        out_shape=jax.ShapeDtypeStruct((B, 1, height, width), f32),
        grid=(B,),
        in_specs=mat_specs + [
            pl.BlockSpec((None, C, Hin, Win), lambda b: (b, 0, 0, 0)),
        ],
        out_specs=pl.BlockSpec((None, None, height, width),
                               lambda b: (b, 0, 0, 0)),
        scratch_shapes=[pltpu.VMEM((height, segs), bf16)],
        compiler_params=pltpu.CompilerParams(
            dimension_semantics=("parallel",),     # batch -> 2 TCs on v7x
            vmem_limit_bytes=vmem_limit),
        cost_estimate=pl.CostEstimate(
            flops=int(flops),
            transcendentals=int(transcend),
            bytes_accessed=int(bytes_accessed)),
    )(*mats, x)


# ----------------------------------------------------------------------------
# Pure-JAX reference (resize-then-mix, exact divide, f32) for verification.
# ----------------------------------------------------------------------------
def _reference(x, height, width):
    def resize(img, ry, rx):                 # img: (..., H, W)
        return jnp.einsum('oh,...hw,pw->...op', ry, img, rx)

    def head(img3, w):                       # img3: (B, 3, H, W)
        mix = w[0] * img3[:, 0] + w[1] * img3[:, 1] + w[2] * img3[:, 2] + w[3]
        return w[4] * jax.nn.sigmoid(mix) + w[5]

    B, C, Hin, Win = x.shape
    ry_upB = jnp.asarray(bilinear_matrix(_HB, Hin)); rx_upB = jnp.asarray(bilinear_matrix(_WB, Win))
    ry_upD = jnp.asarray(bilinear_matrix(_HD, Hin)); rx_upD = jnp.asarray(bilinear_matrix(_WD, Win))
    ry_A = jnp.asarray(bilinear_matrix(height, Hin)); rx_A = jnp.asarray(bilinear_matrix(width, Win))
    ry_B = jnp.asarray(bilinear_matrix(height, _HB)); rx_B = jnp.asarray(bilinear_matrix(width, _WB))
    ry_D = jnp.asarray(bilinear_matrix(height, _HD)); rx_D = jnp.asarray(bilinear_matrix(width, _WD))

    disp_A = head(x, _W_A)
    depth_A = resize(1.0 / disp_A, ry_A, rx_A)

    x1 = resize(x, ry_upB, rx_upB)
    depth_B = resize(head(x1, _W_B), ry_B, rx_B)

    x3 = resize(x, ry_upD, rx_upD)
    depth_D = resize(1.0 / head(x3, _W_D), ry_D, rx_D)

    return ((depth_A + depth_B + depth_D) / 3.0)[:, None]


if __name__ == "__main__":
    key = jax.random.PRNGKey(0)
    B, C, H, W = 2, 3, 16, 16            # args.height = args.width = 16
    x = jax.random.normal(key, (B, C, H, W), dtype=jnp.float32)

    # Tolerance 3e-2: bf16 MXU operands + EUP approximate reciprocal (f32
    # accumulation); deliberate accuracy/perf trade-off vs exact f32 divide.
    TOL = 3e-2

    # Config 1: output at native resolution (branch-A identity specialization)
    out = jax.block_until_ready(average_depth_forward(x, height=H, width=W))
    ref = jax.block_until_ready(_reference(x, H, W))
    assert out.shape == (B, 1, H, W), out.shape
    np.testing.assert_allclose(np.asarray(out), np.asarray(ref),
                               rtol=TOL, atol=TOL)

    # Config 2: output at a different resolution (general fused-matmul path)
    H2, W2 = 32, 48
    out2 = jax.block_until_ready(average_depth_forward(x, height=H2, width=W2))
    ref2 = jax.block_until_ready(_reference(x, H2, W2))
    assert out2.shape == (B, 1, H2, W2), out2.shape
    np.testing.assert_allclose(np.asarray(out2), np.asarray(ref2),
                               rtol=TOL, atol=TOL)

    print("KERNEL_OK")
</pallas_src>

<mosaic_0001>
module attributes {stable_mosaic.version = 11 : i64} {
  func.func @kernel(%arg0: i32, %arg1: memref<416x16xbf16, #tpu.memory_space<vmem>>, %arg2: memref<16x544xbf16, #tpu.memory_space<vmem>>, %arg3: memref<192x16xbf16, #tpu.memory_space<vmem>>, %arg4: memref<16x640xbf16, #tpu.memory_space<vmem>>, %arg5: memref<16x416xbf16, #tpu.memory_space<vmem>>, %arg6: memref<16x192xbf16, #tpu.memory_space<vmem>>, %arg7: memref<1280x16xbf16, #tpu.memory_space<vmem>>, %arg8: memref<1x3x16x16xf32, #tpu.memory_space<vmem>>, %arg9: memref<1x1x16x16xf32, #tpu.memory_space<vmem>>, %arg10: memref<16x1280xbf16, #tpu.memory_space<vmem>>) attributes {dimension_semantics = [#tpu.dimension_semantics<parallel>], iteration_bounds = array<i64: 2>, scalar_prefetch = 0 : i64, scratch_operands = 1 : i64, tpu.core_type = #tpu.core_type<tc>, window_params = [{pipeline_mode = #tpu.pipeline_mode<synchronous>, transform_indices = @transform_0, window_bounds = array<i64: 416, 16>}, {pipeline_mode = #tpu.pipeline_mode<synchronous>, transform_indices = @transform_1, window_bounds = array<i64: 16, 544>}, {pipeline_mode = #tpu.pipeline_mode<synchronous>, transform_indices = @transform_2, window_bounds = array<i64: 192, 16>}, {pipeline_mode = #tpu.pipeline_mode<synchronous>, transform_indices = @transform_3, window_bounds = array<i64: 16, 640>}, {pipeline_mode = #tpu.pipeline_mode<synchronous>, transform_indices = @transform_4, window_bounds = array<i64: 16, 416>}, {pipeline_mode = #tpu.pipeline_mode<synchronous>, transform_indices = @transform_5, window_bounds = array<i64: 16, 192>}, {pipeline_mode = #tpu.pipeline_mode<synchronous>, transform_indices = @transform_6, window_bounds = array<i64: 1280, 16>}, {transform_indices = @transform_7, window_bounds = array<i64: 1, 3, 16, 16>}, {transform_indices = @transform_8, window_bounds = array<i64: 1, 1, 16, 16>}]} {
    %c0 = arith.constant 0 : index
    %c0_0 = arith.constant 0 : index
    %c0_1 = arith.constant 0 : index
    %c0_2 = arith.constant 0 : index
    %0 = vector.load %arg8[%c0, %c0_0, %c0_1, %c0_2] : memref<1x3x16x16xf32, #tpu.memory_space<vmem>>, vector<1x1x16x16xf32>
    %1 = vector.shape_cast %0 : vector<1x1x16x16xf32> to vector<16x16xf32>
    %c0_3 = arith.constant 0 : index
    %c1 = arith.constant 1 : index
    %c0_4 = arith.constant 0 : index
    %c0_5 = arith.constant 0 : index
    %2 = vector.load %arg8[%c0_3, %c1, %c0_4, %c0_5] : memref<1x3x16x16xf32, #tpu.memory_space<vmem>>, vector<1x1x16x16xf32>
    %3 = vector.shape_cast %2 : vector<1x1x16x16xf32> to vector<16x16xf32>
    %c0_6 = arith.constant 0 : index
    %c2 = arith.constant 2 : index
    %c0_7 = arith.constant 0 : index
    %c0_8 = arith.constant 0 : index
    %4 = vector.load %arg8[%c0_6, %c2, %c0_7, %c0_8] : memref<1x3x16x16xf32, #tpu.memory_space<vmem>>, vector<1x1x16x16xf32>
    %5 = vector.shape_cast %4 : vector<1x1x16x16xf32> to vector<16x16xf32>
    %cst = arith.constant 0.000000e+00 : bf16
    %6 = vector.broadcast %cst : bf16 to vector<16x1280xbf16>
    %c0_9 = arith.constant 0 : index
    %c0_10 = arith.constant 0 : index
    %7 = vector.load %arg10[%c0_9, %c0_10] : memref<16x1280xbf16, #tpu.memory_space<vmem>>, vector<16x1280xbf16>
    tpu.vector_store %arg10[%c0_9, %c0_10], %6 {strides = array<i32>} : memref<16x1280xbf16, #tpu.memory_space<vmem>>, vector<16x1280xbf16>,
    %cst_11 = arith.constant 5.000000e-01 : f32
    %8 = vector.broadcast %cst_11 : f32 to vector<16x16xf32>
    %9 = arith.mulf %8, %1 : vector<16x16xf32>
    %cst_12 = arith.constant 2.500000e-01 : f32
    %10 = vector.broadcast %cst_12 : f32 to vector<16x16xf32>
    %11 = arith.mulf %10, %3 : vector<16x16xf32>
    %12 = arith.addf %9, %11 : vector<16x16xf32>
    %cst_13 = arith.constant 2.500000e-01 : f32
    %13 = vector.broadcast %cst_13 : f32 to vector<16x16xf32>
    %14 = arith.mulf %13, %5 : vector<16x16xf32>
    %15 = arith.addf %12, %14 : vector<16x16xf32>
    %cst_14 = arith.constant -2.000000e-01 : f32
    %16 = vector.broadcast %cst_14 : f32 to vector<16x16xf32>
    %17 = arith.addf %15, %16 : vector<16x16xf32>
    %18 = arith.truncf %17 : vector<16x16xf32> to vector<16x16xbf16>
    %c0_15 = arith.constant 0 : index
    %c0_16 = arith.constant 0 : index
    %19 = vector.load %arg2[%c0_15, %c0_16] : memref<16x544xbf16, #tpu.memory_space<vmem>>, vector<16x544xbf16>
    %cst_17 = arith.constant dense<0.000000e+00> : vector<16x544xf32>
    %20 = tpu.matmul %18, %19, %cst_17 {dimension_numbers = #tpu.dot_dimension_numbers<[1], [0], [0], [1], [0, 0, 1, 1], [], []>} : vector<16x16xbf16>, vector<16x544xbf16>, vector<16x544xf32> -> vector<16x544xf32>
    %c0_18 = arith.constant 0 : index
    %c0_19 = arith.constant 0 : index
    %21 = vector.load %arg1[%c0_18, %c0_19] : memref<416x16xbf16, #tpu.memory_space<vmem>>, vector<416x16xbf16>
    %22 = arith.truncf %20 : vector<16x544xf32> to vector<16x544xbf16>
    %cst_20 = arith.constant dense<0.000000e+00> : vector<416x544xf32>
    %23 = tpu.matmul %21, %22, %cst_20 {dimension_numbers = #tpu.dot_dimension_numbers<[1], [0], [0], [1], [0, 0, 1, 1], [], []>} : vector<416x16xbf16>, vector<16x544xbf16>, vector<416x544xf32> -> vector<416x544xf32>
    %cst_21 = arith.constant 5.000000e-01 : f32
    %24 = vector.broadcast %cst_21 : f32 to vector<416x544xf32>
    %25 = arith.mulf %24, %23 : vector<416x544xf32>
    %26 = math.tanh %25 : vector<416x544xf32>
    %cst_22 = arith.constant 3.999950e+01 : f32
    %27 = vector.broadcast %cst_22 : f32 to vector<416x544xf32>
    %28 = arith.mulf %27, %26 : vector<416x544xf32>
    %cst_23 = arith.constant 4.000050e+01 : f32
    %29 = vector.broadcast %cst_23 : f32 to vector<416x544xf32>
    %30 = arith.addf %28, %29 : vector<416x544xf32>
    %c0_24 = arith.constant 0 : index
    %c0_25 = arith.constant 0 : index
    %31 = vector.load %arg5[%c0_24, %c0_25] : memref<16x416xbf16, #tpu.memory_space<vmem>>, vector<16x416xbf16>
    %32 = arith.truncf %30 : vector<416x544xf32> to vector<416x544xbf16>
    %cst_26 = arith.constant dense<0.000000e+00> : vector<16x544xf32>
    %33 = tpu.matmul %31, %32, %cst_26 {dimension_numbers = #tpu.dot_dimension_numbers<[1], [0], [0], [1], [0, 0, 1, 1], [], []>} : vector<16x416xbf16>, vector<416x544xbf16>, vector<16x544xf32> -> vector<16x544xf32>
    %34 = arith.truncf %33 : vector<16x544xf32> to vector<16x544xbf16>
    %c0_27 = arith.constant 0 : index
    %c0_28 = arith.constant 0 : index
    %35 = vector.load %arg10[%c0_27, %c0_28] : memref<16x1280xbf16, #tpu.memory_space<vmem>>, vector<16x544xbf16>
    tpu.vector_store %arg10[%c0_27, %c0_28], %34 {strides = array<i32>} : memref<16x1280xbf16, #tpu.memory_space<vmem>>, vector<16x544xbf16>,
    %cst_29 = arith.constant 3.300000e-01 : f32
    %36 = vector.broadcast %cst_29 : f32 to vector<16x16xf32>
    %37 = arith.mulf %36, %1 : vector<16x16xf32>
    %cst_30 = arith.constant 3.300000e-01 : f32
    %38 = vector.broadcast %cst_30 : f32 to vector<16x16xf32>
    %39 = arith.mulf %38, %3 : vector<16x16xf32>
    %40 = arith.addf %37, %39 : vector<16x16xf32>
    %cst_31 = arith.constant 3.400000e-01 : f32
    %41 = vector.broadcast %cst_31 : f32 to vector<16x16xf32>
    %42 = arith.mulf %41, %5 : vector<16x16xf32>
    %43 = arith.addf %40, %42 : vector<16x16xf32>
    %cst_32 = arith.constant 0.000000e+00 : f32
    %44 = vector.broadcast %cst_32 : f32 to vector<16x16xf32>
    %45 = arith.addf %43, %44 : vector<16x16xf32>
    %46 = arith.truncf %45 : vector<16x16xf32> to vector<16x16xbf16>
    %c0_33 = arith.constant 0 : index
    %c0_34 = arith.constant 0 : index
    %47 = vector.load %arg4[%c0_33, %c0_34] : memref<16x640xbf16, #tpu.memory_space<vmem>>, vector<16x640xbf16>
    %cst_35 = arith.constant dense<0.000000e+00> : vector<16x640xf32>
    %48 = tpu.matmul %46, %47, %cst_35 {dimension_numbers = #tpu.dot_dimension_numbers<[1], [0], [0], [1], [0, 0, 1, 1], [], []>} : vector<16x16xbf16>, vector<16x640xbf16>, vector<16x640xf32> -> vector<16x640xf32>
    %c0_36 = arith.constant 0 : index
    %c0_37 = arith.constant 0 : index
    %49 = vector.load %arg3[%c0_36, %c0_37] : memref<192x16xbf16, #tpu.memory_space<vmem>>, vector<192x16xbf16>
    %50 = arith.truncf %48 : vector<16x640xf32> to vector<16x640xbf16>
    %cst_38 = arith.constant dense<0.000000e+00> : vector<192x640xf32>
    %51 = tpu.matmul %49, %50, %cst_38 {dimension_numbers = #tpu.dot_dimension_numbers<[1], [0], [0], [1], [0, 0, 1, 1], [], []>} : vector<192x16xbf16>, vector<16x640xbf16>, vector<192x640xf32> -> vector<192x640xf32>
    %cst_39 = arith.constant 5.000000e-01 : f32
    %52 = vector.broadcast %cst_39 : f32 to vector<192x640xf32>
    %53 = arith.mulf %52, %51 : vector<192x640xf32>
    %54 = math.tanh %53 : vector<192x640xf32>
    %cst_40 = arith.constant 1.450000e-01 : f32
    %55 = vector.broadcast %cst_40 : f32 to vector<192x640xf32>
    %56 = arith.mulf %55, %54 : vector<192x640xf32>
    %cst_41 = arith.constant 1.550000e-01 : f32
    %57 = vector.broadcast %cst_41 : f32 to vector<192x640xf32>
    %58 = arith.addf %56, %57 : vector<192x640xf32>
    %59 = tpu.reciprocal %58 {approx = true} : vector<192x640xf32> -> vector<192x640xf32>
    %c0_42 = arith.constant 0 : index
    %c0_43 = arith.constant 0 : index
    %60 = vector.load %arg6[%c0_42, %c0_43] : memref<16x192xbf16, #tpu.memory_space<vmem>>, vector<16x192xbf16>
    %61 = arith.truncf %59 : vector<192x640xf32> to vector<192x640xbf16>
    %cst_44 = arith.constant dense<0.000000e+00> : vector<16x640xf32>
    %62 = tpu.matmul %60, %61, %cst_44 {dimension_numbers = #tpu.dot_dimension_numbers<[1], [0], [0], [1], [0, 0, 1, 1], [], []>} : vector<16x192xbf16>, vector<192x640xbf16>, vector<16x640xf32> -> vector<16x640xf32>
    %63 = arith.truncf %62 : vector<16x640xf32> to vector<16x640xbf16>
    %c0_45 = arith.constant 0 : index
    %c640 = arith.constant 640 : index
    %64 = vector.load %arg10[%c0_45, %c640] : memref<16x1280xbf16, #tpu.memory_space<vmem>>, vector<16x640xbf16>
    tpu.vector_store %arg10[%c0_45, %c640], %63 {strides = array<i32>} : memref<16x1280xbf16, #tpu.memory_space<vmem>>, vector<16x640xbf16>,
    %cst_46 = arith.constant 2.000000e-01 : f32
    %65 = vector.broadcast %cst_46 : f32 to vector<16x16xf32>
    %66 = arith.mulf %65, %1 : vector<16x16xf32>
    %cst_47 = arith.constant 3.000000e-01 : f32
    %67 = vector.broadcast %cst_47 : f32 to vector<16x16xf32>
    %68 = arith.mulf %67, %3 : vector<16x16xf32>
    %69 = arith.addf %66, %68 : vector<16x16xf32>
    %cst_48 = arith.constant 5.000000e-01 : f32
    %70 = vector.broadcast %cst_48 : f32 to vector<16x16xf32>
    %71 = arith.mulf %70, %5 : vector<16x16xf32>
    %72 = arith.addf %69, %71 : vector<16x16xf32>
    %cst_49 = arith.constant 1.000000e-01 : f32
    %73 = vector.broadcast %cst_49 : f32 to vector<16x16xf32>
    %74 = arith.addf %72, %73 : vector<16x16xf32>
    %cst_50 = arith.constant 5.000000e-01 : f32
    %75 = vector.broadcast %cst_50 : f32 to vector<16x16xf32>
    %76 = arith.mulf %75, %74 : vector<16x16xf32>
    %77 = math.tanh %76 : vector<16x16xf32>
    %cst_51 = arith.constant 1.500000e-01 : f32
    %78 = vector.broadcast %cst_51 : f32 to vector<16x16xf32>
    %79 = arith.mulf %78, %77 : vector<16x16xf32>
    %cst_52 = arith.constant 1.600000e-01 : f32
    %80 = vector.broadcast %cst_52 : f32 to vector<16x16xf32>
    %81 = arith.addf %79, %80 : vector<16x16xf32>
    %82 = tpu.reciprocal %81 {approx = true} : vector<16x16xf32> -> vector<16x16xf32>
    %c0_53 = arith.constant 0 : index
    %c0_54 = arith.constant 0 : index
    %83 = vector.load %arg10[%c0_53, %c0_54] : memref<16x1280xbf16, #tpu.memory_space<vmem>>, vector<16x1280xbf16>
    %c0_55 = arith.constant 0 : index
    %c0_56 = arith.constant 0 : index
    %84 = vector.load %arg7[%c0_55, %c0_56] : memref<1280x16xbf16, #tpu.memory_space<vmem>>, vector<1280x16xbf16>
    %cst_57 = arith.constant dense<0.000000e+00> : vector<16x16xf32>
    %85 = tpu.matmul %83, %84, %cst_57 {dimension_numbers = #tpu.dot_dimension_numbers<[1], [0], [0], [1], [0, 0, 1, 1], [], []>} : vector<16x1280xbf16>, vector<1280x16xbf16>, vector<16x16xf32> -> vector<16x16xf32>
    %cst_58 = arith.constant 0.333333343 : f32
    %86 = vector.broadcast %cst_58 : f32 to vector<16x16xf32>
    %87 = arith.mulf %82, %86 : vector<16x16xf32>
    %88 = arith.addf %85, %87 : vector<16x16xf32>
    %c0_59 = arith.constant 0 : index
    %c0_60 = arith.constant 0 : index
    %c0_61 = arith.constant 0 : index
    %c0_62 = arith.constant 0 : index
    %89 = vector.load %arg9[%c0_59, %c0_60, %c0_61, %c0_62] : memref<1x1x16x16xf32, #tpu.memory_space<vmem>>, vector<1x1x16x16xf32>
    %90 = vector.shape_cast %89 : vector<1x1x16x16xf32> to vector<16x16xf32>
    %91 = vector.shape_cast %88 : vector<16x16xf32> to vector<1x1x16x16xf32>
    tpu.vector_store %arg9[%c0_59, %c0_60, %c0_61, %c0_62], %91 {strides = array<i32>} : memref<1x1x16x16xf32, #tpu.memory_space<vmem>>, vector<1x1x16x16xf32>,
    return
  }
  func.func @transform_0(%arg0: i32) -> (i32, i32) {
    %c0_i32 = arith.constant 0 : i32
    %c0_i32_0 = arith.constant 0 : i32
    %c0_i32_1 = arith.constant 0 : i32
    return %c0_i32, %c0_i32_0 : i32, i32
  }
  func.func @transform_1(%arg0: i32) -> (i32, i32) {
    %c0_i32 = arith.constant 0 : i32
    %c0_i32_0 = arith.constant 0 : i32
    %c0_i32_1 = arith.constant 0 : i32
    return %c0_i32, %c0_i32_0 : i32, i32
  }
  func.func @transform_2(%arg0: i32) -> (i32, i32) {
    %c0_i32 = arith.constant 0 : i32
    %c0_i32_0 = arith.constant 0 : i32
    %c0_i32_1 = arith.constant 0 : i32
    return %c0_i32, %c0_i32_0 : i32, i32
  }
  func.func @transform_3(%arg0: i32) -> (i32, i32) {
    %c0_i32 = arith.constant 0 : i32
    %c0_i32_0 = arith.constant 0 : i32
    %c0_i32_1 = arith.constant 0 : i32
    return %c0_i32, %c0_i32_0 : i32, i32
  }
  func.func @transform_4(%arg0: i32) -> (i32, i32) {
    %c0_i32 = arith.constant 0 : i32
    %c0_i32_0 = arith.constant 0 : i32
    %c0_i32_1 = arith.constant 0 : i32
    return %c0_i32, %c0_i32_0 : i32, i32
  }
  func.func @transform_5(%arg0: i32) -> (i32, i32) {
    %c0_i32 = arith.constant 0 : i32
    %c0_i32_0 = arith.constant 0 : i32
    %c0_i32_1 = arith.constant 0 : i32
    return %c0_i32, %c0_i32_0 : i32, i32
  }
  func.func @transform_6(%arg0: i32) -> (i32, i32) {
    %c0_i32 = arith.constant 0 : i32
    %c0_i32_0 = arith.constant 0 : i32
    %c0_i32_1 = arith.constant 0 : i32
    return %c0_i32, %c0_i32_0 : i32, i32
  }
  func.func @transform_7(%arg0: i32) -> (i32, i32, i32, i32) {
    %c0_i32 = arith.constant 0 : i32
    %c0_i32_0 = arith.constant 0 : i32
    %c0_i32_1 = arith.constant 0 : i32
    %c0_i32_2 = arith.constant 0 : i32
    return %arg0, %c0_i32, %c0_i32_0, %c0_i32_1 : i32, i32, i32, i32
  }
  func.func @transform_8(%arg0: i32) -> (i32, i32, i32, i32) {
    %c0_i32 = arith.constant 0 : i32
    %c0_i32_0 = arith.constant 0 : i32
    %c0_i32_1 = arith.constant 0 : i32
    %c0_i32_2 = arith.constant 0 : i32
    return %arg0, %c0_i32, %c0_i32_0, %c0_i32_1 : i32, i32, i32, i32
  }
}

</mosaic_0001>

<llo_original>
// kernel: tpu_custom_call.1
$region0: #{tpu_custom_call.1}
  #allocation0 [shape = 'u32[]', space=smem, size = 0x4, offset = 0x4, fixed_abs, tag = 'smem constant byte address 0x4 - core index']
  #allocation1 [shape = 'u32[144,128]{1,0:T(1,128)}', space=vmem, size = 0x12000, scoped, tag = 'internal scratch']
  #allocation2 [shape = 'bf16[16,1280]{1,0:T(8,128)(2,1)}', space=vmem, size = 0xa000, scoped, tag = 'scratch operand']
  %s0 = inlined_call_operand.vmem [shape: bf16[416,16], index: 0, kind: input, shape index: {}]
  %s1 = inlined_call_operand.vmem [shape: bf16[16,544], index: 1, kind: input, shape index: {}]
  %s2 = inlined_call_operand.vmem [shape: bf16[192,16], index: 2, kind: input, shape index: {}]
  %s3 = inlined_call_operand.vmem [shape: bf16[16,640], index: 3, kind: input, shape index: {}]
  %s4 = inlined_call_operand.vmem [shape: bf16[16,416], index: 4, kind: input, shape index: {}]
  %s5 = inlined_call_operand.vmem [shape: bf16[16,192], index: 5, kind: input, shape index: {}]
  %s6 = inlined_call_operand.vmem [shape: bf16[1280,16], index: 6, kind: input, shape index: {}]
  %s7 = inlined_call_operand.vmem [shape: f32[2,3,16,16], index: 7, kind: input, shape index: {}]
  %s8 = inlined_call_operand.hbm [shape: f32[2,1,16,16], index: 8, kind: output, shape index: {}]
  %s9 = sld [smem:[#allocation0]]
  $region65: #{tpu_custom_call.1} parent=0
    _
  %s11 = ssub.s32 1, %s9
  %s12 = scalar_select 0, %s11, %s9
  $region1: #{tpu_custom_call.1} parent=0
    #allocation3 [shape = 'u8[16384]{0}', space=vmem, size = 0x4000, scoped, tag = 'output window, operand 0']
    #allocation4 [shape = 's32[2]{0}', space=sflag, size = 0x8, scoped, tag = 'scoped memory for tpu_custom_call.1']
    %13 = vsyncpa [#allocation4], 0
    %s14 = scalar_lea.sflag [#allocation4], 1
    %15 = vsyncpa %s14, 0
    loop: start=0, step=1, limit=4
    $region2: #{tpu_custom_call.1} parent=1 // loop_pre_header
      _
    $region3: #{tpu_custom_call.1} parent=1 // loop_header
      %s17 = sphi 0, %s21
      %p18 = scmp.ge.s32.totalorder %s17, 4
      %s25 = sphi 0, %s25
      %s27 = sphi 0, %s25
      %s28 = sphi 0, %s27
      %s42 = sphi 0, %s28
      %s46 = sphi 0, %s46
      %s48 = sphi 0, %s46
      %s49 = sphi 0, %s48
      %s63 = sphi 0, %s49
      %s67 = sphi 0, %s67
      %s69 = sphi 0, %s67
      %s70 = sphi 0, %s69
      %s84 = sphi 0, %s70
      %s88 = sphi 0, %s88
      %s90 = sphi 0, %s88
      %s91 = sphi 0, %s90
      %s105 = sphi 0, %s91
      %s109 = sphi 0, %s109
      %s111 = sphi 0, %s109
      %s112 = sphi 0, %s111
      %s126 = sphi 0, %s112
      %s130 = sphi 0, %s130
      %s132 = sphi 0, %s130
      %s133 = sphi 0, %s132
      %s147 = sphi 0, %s133
      %s151 = sphi 0, %s151
      %s153 = sphi 0, %s151
      %s154 = sphi 0, %s153
      %s168 = sphi 0, %s154
      %s174 = sphi 0, %s176
      %s177 = sphi 0, %s174
      %s178 = sphi 0, %s177
      %s194 = sphi 0, %s178
      %s200 = sphi 0, %s202
      %s203 = sphi 0, %s200
      %s204 = sphi 0, %s203
      %s220 = sphi 0, %s204
    $region4: #{tpu_custom_call.1} parent=1 // loop_header_branch
      %20 = sbr.rel (%p18) target = $region8
    $region5: #{tpu_custom_call.1} parent=1 // loop_body
      %s22 = ssub.s32 %s17, 1
      %s23 = ssub.s32 %s17, 2
      %s24 = sadd.s32 %s17, 1
      %s26 = sadd.s32 %s25, 1
      %p29 = scmp.eq.s32.totalorder %s17, 1
      %p30 = scmp.ne.s32.totalorder %s25, %s27
      %p31 = scmp.eq.s32.totalorder %s17, 0
      %p32 = por %p30, %p31
      %p33 = scmp.ne.s32.totalorder %s25, %s27
      %p34 = scmp.eq.s32.totalorder %s22, 1
      %p35 = por %p33, %p34
      %p36 = scmp.ne.s32.totalorder %s27, %s28
      %p37 = scmp.eq.s32.totalorder %s22, 0
      %p38 = por %p36, %p37
      %p39 = scmp.ne.s32.totalorder %s27, %s28
      %p40 = scmp.eq.s32.totalorder %s23, 1
      %p41 = por %p39, %p40
      %p43 = scmp.ne.s32.totalorder %s28, %s42
      %p44 = scmp.eq.s32.totalorder %s23, 0
      %p45 = por %p43, %p44
      %s47 = sadd.s32 %s46, 1
      %p50 = scmp.eq.s32.totalorder %s17, 1
      %p51 = scmp.ne.s32.totalorder %s46, %s48
      %p52 = scmp.eq.s32.totalorder %s17, 0
      %p53 = por %p51, %p52
      %p54 = scmp.ne.s32.totalorder %s46, %s48
      %p55 = scmp.eq.s32.totalorder %s22, 1
      %p56 = por %p54, %p55
      %p57 = scmp.ne.s32.totalorder %s48, %s49
      %p58 = scmp.eq.s32.totalorder %s22, 0
      %p59 = por %p57, %p58
      %p60 = scmp.ne.s32.totalorder %s48, %s49
      %p61 = scmp.eq.s32.totalorder %s23, 1
      %p62 = por %p60, %p61
      %p64 = scmp.ne.s32.totalorder %s49, %s63
      %p65 = scmp.eq.s32.totalorder %s23, 0
      %p66 = por %p64, %p65
      %s68 = sadd.s32 %s67, 1
      %p71 = scmp.eq.s32.totalorder %s17, 1
      %p72 = scmp.ne.s32.totalorder %s67, %s69
      %p73 = scmp.eq.s32.totalorder %s17, 0
      %p74 = por %p72, %p73
      %p75 = scmp.ne.s32.totalorder %s67, %s69
      %p76 = scmp.eq.s32.totalorder %s22, 1
      %p77 = por %p75, %p76
      %p78 = scmp.ne.s32.totalorder %s69, %s70
      %p79 = scmp.eq.s32.totalorder %s22, 0
      %p80 = por %p78, %p79
      %p81 = scmp.ne.s32.totalorder %s69, %s70
      %p82 = scmp.eq.s32.totalorder %s23, 1
      %p83 = por %p81, %p82
      %p85 = scmp.ne.s32.totalorder %s70, %s84
      %p86 = scmp.eq.s32.totalorder %s23, 0
      %p87 = por %p85, %p86
      %s89 = sadd.s32 %s88, 1
      %p92 = scmp.eq.s32.totalorder %s17, 1
      %p93 = scmp.ne.s32.totalorder %s88, %s90
      %p94 = scmp.eq.s32.totalorder %s17, 0
      %p95 = por %p93, %p94
      %p96 = scmp.ne.s32.totalorder %s88, %s90
      %p97 = scmp.eq.s32.totalorder %s22, 1
      %p98 = por %p96, %p97
      %p99 = scmp.ne.s32.totalorder %s90, %s91
      %p100 = scmp.eq.s32.totalorder %s22, 0
      %p101 = por %p99, %p100
      %p102 = scmp.ne.s32.totalorder %s90, %s91
      %p103 = scmp.eq.s32.totalorder %s23, 1
      %p104 = por %p102, %p103
      %p106 = scmp.ne.s32.totalorder %s91, %s105
      %p107 = scmp.eq.s32.totalorder %s23, 0
      %p108 = por %p106, %p107
      %s110 = sadd.s32 %s109, 1
      %p113 = scmp.eq.s32.totalorder %s17, 1
      %p114 = scmp.ne.s32.totalorder %s109, %s111
      %p115 = scmp.eq.s32.totalorder %s17, 0
      %p116 = por %p114, %p115
      %p117 = scmp.ne.s32.totalorder %s109, %s111
      %p118 = scmp.eq.s32.totalorder %s22, 1
      %p119 = por %p117, %p118
      %p120 = scmp.ne.s32.totalorder %s111, %s112
      %p121 = scmp.eq.s32.totalorder %s22, 0
      %p122 = por %p120, %p121
      %p123 = scmp.ne.s32.totalorder %s111, %s112
      %p124 = scmp.eq.s32.totalorder %s23, 1
      %p125 = por %p123, %p124
      %p127 = scmp.ne.s32.totalorder %s112, %s126
      %p128 = scmp.eq.s32.totalorder %s23, 0
      %p129 = por %p127, %p128
      %s131 = sadd.s32 %s130, 1
      %p134 = scmp.eq.s32.totalorder %s17, 1
      %p135 = scmp.ne.s32.totalorder %s130, %s132
      %p136 = scmp.eq.s32.totalorder %s17, 0
      %p137 = por %p135, %p136
      %p138 = scmp.ne.s32.totalorder %s130, %s132
      %p139 = scmp.eq.s32.totalorder %s22, 1
      %p140 = por %p138, %p139
      %p141 = scmp.ne.s32.totalorder %s132, %s133
      %p142 = scmp.eq.s32.totalorder %s22, 0
      %p143 = por %p141, %p142
      %p144 = scmp.ne.s32.totalorder %s132, %s133
      %p145 = scmp.eq.s32.totalorder %s23, 1
      %p146 = por %p144, %p145
      %p148 = scmp.ne.s32.totalorder %s133, %s147
      %p149 = scmp.eq.s32.totalorder %s23, 0
      %p150 = por %p148, %p149
      %s152 = sadd.s32 %s151, 1
      %p155 = scmp.eq.s32.totalorder %s17, 1
      %p156 = scmp.ne.s32.totalorder %s151, %s153
      %p157 = scmp.eq.s32.totalorder %s17, 0
      %p158 = por %p156, %p157
      %p159 = scmp.ne.s32.totalorder %s151, %s153
      %p160 = scmp.eq.s32.totalorder %s22, 1
      %p161 = por %p159, %p160
      %p162 = scmp.ne.s32.totalorder %s153, %s154
      %p163 = scmp.eq.s32.totalorder %s22, 0
      %p164 = por %p162, %p163
      %p165 = scmp.ne.s32.totalorder %s153, %s154
      %p166 = scmp.eq.s32.totalorder %s23, 1
      %p167 = por %p165, %p166
      %p169 = scmp.ne.s32.totalorder %s154, %s168
      %p170 = scmp.eq.s32.totalorder %s23, 0
      %p171 = por %p169, %p170
      %s172 = ssub.s32 %s17, %s24
      %p173 = scmp.eq.s32.totalorder %s172, 0
      %s175 = sadd.s32 %s174, 1
      %s176 = scalar_select %p173, %s174, %s175
      %p179 = pneg %p173
      %p180 = scmp.eq.s32.totalorder %s17, 1
      %p181 = por %p179, %p180
      %p182 = scmp.ne.s32.totalorder %s174, %s177
      %p183 = scmp.eq.s32.totalorder %s17, 0
      %p184 = por %p182, %p183
      %p185 = scmp.ne.s32.totalorder %s174, %s177
      %p186 = scmp.eq.s32.totalorder %s22, 1
      %p187 = por %p185, %p186
      %p188 = scmp.ne.s32.totalorder %s177, %s178
      %p189 = scmp.eq.s32.totalorder %s22, 0
      %p190 = por %p188, %p189
      %p191 = scmp.ne.s32.totalorder %s177, %s178
      %p192 = scmp.eq.s32.totalorder %s23, 1
      %p193 = por %p191, %p192
      %p195 = scmp.ne.s32.totalorder %s178, %s194
      %p196 = scmp.eq.s32.totalorder %s23, 0
      %p197 = por %p195, %p196
      %s198 = ssub.s32 %s17, %s24
      %p199 = scmp.eq.s32.totalorder %s198, 0
      %s201 = sadd.s32 %s200, 1
      %s202 = scalar_select %p199, %s200, %s201
      %p205 = pneg %p199
      %p206 = scmp.eq.s32.totalorder %s17, 1
      %p207 = por %p205, %p206
      %p208 = scmp.ne.s32.totalorder %s200, %s203
      %p209 = scmp.eq.s32.totalorder %s17, 0
      %p210 = por %p208, %p209
      %p211 = scmp.ne.s32.totalorder %s200, %s203
      %p212 = scmp.eq.s32.totalorder %s22, 1
      %p213 = por %p211, %p212
      %p214 = scmp.ne.s32.totalorder %s203, %s204
      %p215 = scmp.eq.s32.totalorder %s22, 0
      %p216 = por %p214, %p215
      %p217 = scmp.ne.s32.totalorder %s203, %s204
      %p218 = scmp.eq.s32.totalorder %s23, 1
      %p219 = por %p217, %p218
      %p221 = scmp.ne.s32.totalorder %s204, %s220
      %p222 = scmp.eq.s32.totalorder %s23, 0
      %p223 = por %p221, %p222
      %p224 = scmp.le.s32.totalorder 1, %s17
      %p225 = scmp.lt.s32.totalorder %s17, 3
      %p226 = pnand %p224, %p225
      %p227 = pneg %p226
      // Predicated region
      $region9: #{tpu_custom_call.1} parent=5 // pred_check
        _
      $region10: #{tpu_custom_call.1} parent=5 // pred_check_branch
        %229 = sbr.rel (%p226) target = $region12
      $region11: #{tpu_custom_call.1} parent=5 // pred_region
        %s230 = ssub.s32 %s17, 1
        // Predicated region
        $region13: #{tpu_custom_call.1} parent=11 // pred_check
          %p231 = pneg %p38
        $region14: #{tpu_custom_call.1} parent=11 // pred_check_branch
          %233 = sbr.rel (%p231) target = $region16
        $region15: #{tpu_custom_call.1} parent=11 // pred_region
          _
        $region16: #{tpu_custom_call.1} parent=11 // pred_fallthru
          _
        // Predicated region
        $region17: #{tpu_custom_call.1} parent=11 // pred_check
          %p234 = pneg %p59
        $region18: #{tpu_custom_call.1} parent=11 // pred_check_branch
          %236 = sbr.rel (%p234) target = $region20
        $region19: #{tpu_custom_call.1} parent=11 // pred_region
          _
        $region20: #{tpu_custom_call.1} parent=11 // pred_fallthru
          _
        // Predicated region
        $region21: #{tpu_custom_call.1} parent=11 // pred_check
          %p237 = pneg %p80
        $region22: #{tpu_custom_call.1} parent=11 // pred_check_branch
          %239 = sbr.rel (%p237) target = $region24
        $region23: #{tpu_custom_call.1} parent=11 // pred_region
          _
        $region24: #{tpu_custom_call.1} parent=11 // pred_fallthru
          _
        // Predicated region
        $region25: #{tpu_custom_call.1} parent=11 // pred_check
          %p240 = pneg %p101
        $region26: #{tpu_custom_call.1} parent=11 // pred_check_branch
          %242 = sbr.rel (%p240) target = $region28
        $region27: #{tpu_custom_call.1} parent=11 // pred_region
          _
        $region28: #{tpu_custom_call.1} parent=11 // pred_fallthru
          _
        // Predicated region
        $region29: #{tpu_custom_call.1} parent=11 // pred_check
          %p243 = pneg %p122
        $region30: #{tpu_custom_call.1} parent=11 // pred_check_branch
          %245 = sbr.rel (%p243) target = $region32
        $region31: #{tpu_custom_call.1} parent=11 // pred_region
          _
        $region32: #{tpu_custom_call.1} parent=11 // pred_fallthru
          _
        // Predicated region
        $region33: #{tpu_custom_call.1} parent=11 // pred_check
          %p246 = pneg %p143
        $region34: #{tpu_custom_call.1} parent=11 // pred_check_branch
          %248 = sbr.rel (%p246) target = $region36
        $region35: #{tpu_custom_call.1} parent=11 // pred_region
          _
        $region36: #{tpu_custom_call.1} parent=11 // pred_fallthru
          _
        // Predicated region
        $region37: #{tpu_custom_call.1} parent=11 // pred_check
          %p249 = pneg %p164
        $region38: #{tpu_custom_call.1} parent=11 // pred_check_branch
          %251 = sbr.rel (%p249) target = $region40
        $region39: #{tpu_custom_call.1} parent=11 // pred_region
          _
        $region40: #{tpu_custom_call.1} parent=11 // pred_fallthru
          _
      $region12: #{tpu_custom_call.1} parent=5 // pred_fallthru
        _
      %p252 = scmp.lt.s32.totalorder %s17, 2
      // Predicated region
      $region41: #{tpu_custom_call.1} parent=5 // pred_check
        %p253 = pneg %p252
      $region42: #{tpu_custom_call.1} parent=5 // pred_check_branch
        %255 = sbr.rel (%p253) target = $region44
      $region43: #{tpu_custom_call.1} parent=5 // pred_region
        // Predicated region
        $region45: #{tpu_custom_call.1} parent=43 // pred_check
          %p256 = pneg %p184
        $region46: #{tpu_custom_call.1} parent=43 // pred_check_branch
          %258 = sbr.rel (%p256) target = $region48
        $region47: #{tpu_custom_call.1} parent=43 // pred_region
          %p259 = scmp.lt.s32.totalorder %s17, 1
          %s260 = scalar_select %p259, %s17, 1
          %s261 = smul.addr %s260, 6
          %s262 = smul.addr %s261, 8
          %s263 = scalar_lea.vmem %s7, %s262
        $region48: #{tpu_custom_call.1} parent=43 // pred_fallthru
          _
      $region44: #{tpu_custom_call.1} parent=5 // pred_fallthru
        _
      %p264 = scmp.le.s32.totalorder 1, %s17
      %p265 = scmp.lt.s32.totalorder %s17, 3
      %p266 = pnand %p264, %p265
      %p267 = pneg %p266
      // Predicated region
      $region49: #{tpu_custom_call.1} parent=5 // pred_check
        _
      $region50: #{tpu_custom_call.1} parent=5 // pred_check_branch
        %269 = sbr.rel (%p266) target = $region52
      $region51: #{tpu_custom_call.1} parent=5 // pred_region
        %s270 = ssub.s32 %s17, 1
        %p271 = pneg %p38
        %p272 = pneg %p35
        %p273 = pneg %p59
        %p274 = pneg %p56
        %p275 = pneg %p80
        %p276 = pneg %p77
        %p277 = pneg %p101
        %p278 = pneg %p98
        %p279 = pneg %p122
        %p280 = pneg %p119
        %p281 = pneg %p143
        %p282 = pneg %p140
        %p283 = pneg %p164
        %p284 = pneg %p161
        %p285 = scmp.lt.s32.totalorder %s22, 1
        %s286 = scalar_select %p285, %s22, 1
        %s287 = smul.addr %s286, 6
        %s288 = smul.addr %s287, 8
        %s289 = scalar_lea.vmem %s7, %s288
        %p290 = pneg %p190
        %p291 = pneg %p187
        %p292 = pneg %p216
        %p293 = pneg %p213
        %s294 = sand.u32 %s203, 1
        %s295 = scalar_lea.sflag [#allocation4], %s294
        %s296 = sand.u32 %s203, 1
        %s297 = smul.addr %s296, 16
        %s298 = scalar_lea.vmem [#allocation3], %s297
        %p299 = scmp.lt.s32.totalorder %s22, 1
        %s300 = scalar_select %p299, %s22, 1
        %s301 = smul.addr %s300, 6
        %s302 = smul.addr %s301, 8
        %s303 = scalar_lea.vmem %s7, %s302
        %v305 = vld [vmem:[%s303] sm:$0xff]
        %v306 = vld [vmem:[%s303 + $0x8] sm:$0xff]
        %s307 = scalar_lea.vmem %s303, 16
        %v308 = vld [vmem:[%s307] sm:$0xff]
        %v309 = vld [vmem:[%s307 + $0x8] sm:$0xff]
        %s310 = scalar_lea.vmem %s303, 32
        %v311 = vld [vmem:[%s310] sm:$0xff]
        %v312 = vld [vmem:[%s310 + $0x8] sm:$0xff]
        %313 = vst [vmem:[#allocation2] sm:$0xff] 0
        %314 = vst [vmem:[#allocation2 + $0x8] sm:$0xff] 0
        %315 = vst [vmem:[#allocation2 + $0x10] sm:$0xff] 0
        %316 = vst [vmem:[#allocation2 + $0x18] sm:$0xff] 0
        %317 = vst [vmem:[#allocation2 + $0x20] sm:$0xff] 0
        %318 = vst [vmem:[#allocation2 + $0x28] sm:$0xff] 0
        %319 = vst [vmem:[#allocation2 + $0x30] sm:$0xff] 0
        %320 = vst [vmem:[#allocation2 + $0x38] sm:$0xff] 0
        %321 = vst [vmem:[#allocation2 + $0x40] sm:$0xff] 0
        %322 = vst [vmem:[#allocation2 + $0x48] sm:$0xff] 0
        %v323 = vmul.f32 %v305, 0.5
        %v324 = vmul.f32 %v306, 0.5
        %v325 = vmul.f32 %v308, 0.25
        %v326 = vmul.f32 %v309, 0.25
        %v327 = vadd.f32 %v323, %v325
        %v328 = vadd.f32 %v324, %v326
        %v329 = vmul.f32 %v311, 0.25
        %v330 = vmul.f32 %v312, 0.25
        %v331 = vadd.f32 %v327, %v329
        %v332 = vadd.f32 %v328, %v330
        %v333 = vadd.f32 %v331, -0.2
        %v334 = vadd.f32 %v332, -0.2
        %v335 = vpack.c.bf16 %v334, %v333
        %v336 = vld [vmem:[%s1] sm:$0xff]
        %v337 = vld [vmem:[%s1 + $0x8] sm:$0xff]
        %v338 = vld [vmem:[%s1 + $0x10] sm:$0xf]
        %v339 = vld [vmem:[%s1 + $0x14] sm:$0xff]
        %v340 = vld [vmem:[%s1 + $0x1c] sm:$0xff]
        %v341 = vld [vmem:[%s1 + $0x24] sm:$0xf]
        %v348 = vunpack.c.l.b16 %v336
        %v349 = vunpack.c.h.b16 %v336
        %v350 = vunpack.c.l.b16 %v337
        %v351 = vunpack.c.h.b16 %v337
        %v352 = vunpack.c.l.b16 %v338
        %v353 = vunpack.c.l.b16 %v339
        %v354 = vunpack.c.h.b16 %v339
        %v355 = vunpack.c.l.b16 %v340
        %v356 = vunpack.c.h.b16 %v340
        %v357 = vunpack.c.l.b16 %v341
        %v358 = vpack.c.b16 %v353, %v348
        %v359 = vpack.c.b16 %v354, %v349
        %v360 = vpack.c.b16 %v355, %v350
        %v361 = vpack.c.b16 %v356, %v351
        %v362 = vpack.c.b16 %v357, %v352
        %vm368 = vcmask 130048
        %v370 = vsel %vm368, %v335, 0
        %372 = vmatprep.subr.bf16.mxu0 0
        %373 = vmatpush1.bf16.msra.mxu0 0
        %374 = vmatprep.subr.bf16.mxu0 0
        %375 = vmatpush1.bf16.msra.mxu0 0
        %376 = vmatprep.subr.bf16.mxu0 0
        %377 = vmatpush1.bf16.msra.mxu0 0
        %378 = vmatprep.subr.bf16.mxu0 0
        %379 = vmatpush1.bf16.msra.mxu0 0
        %380 = vmatprep.subr.bf16.mxu0 0
        %381 = vmatpush1.bf16.msra.mxu0 0
        %382 = vmatprep.subr.bf16.mxu0 0
        %383 = vmatpush1.bf16.msra.mxu0 0
        %384 = vmatprep.subr.bf16.mxu0 0
        %385 = vmatpush1.bf16.msra.mxu0 0
        %386 = vmatprep.subr.bf16.mxu0 %v359
        %387 = vmatpush1.bf16.msra.mxu0 %v358
        %388 = vmatprep.subr.bf16.mxu0 0
        %389 = vmatpush2.bf16.msra.mxu0 0
        %390 = vmatprep.subr.bf16.mxu0 0
        %391 = vmatpush2.bf16.msra.mxu0 0
        %392 = vmatprep.subr.bf16.mxu0 0
        %393 = vmatpush2.bf16.msra.mxu0 0
        %394 = vmatprep.subr.bf16.mxu0 0
        %395 = vmatpush2.bf16.msra.mxu0 0
        %396 = vmatprep.subr.bf16.mxu0 0
        %397 = vmatpush2.bf16.msra.mxu0 0
        %398 = vmatprep.subr.bf16.mxu0 0
        %399 = vmatpush2.bf16.msra.mxu0 0
        %400 = vmatprep.subr.bf16.mxu0 0
        %401 = vmatpush2.bf16.msra.mxu0 0
        %402 = vmatprep.subr.bf16.mxu0 0
        %403 = vmatpush2.bf16.msra.mxu0 0
        %404 = vmatprep.mubr.bf16.mxu0 0
        %405 = vmatmul.mubr.bf16.gmra.mxu0 %v370
        %v406 = vpop.f32.mrf.mxu0
        %v407 = vadd.f32 0.0, %v406
        %v408 = vpop.f32.mrf.mxu0
        %v409 = vadd.f32 0.0, %v408
        %v410 = vpop.f32.mrf.mxu0
        %v411 = vadd.f32 0.0, %v410
        %v412 = vpop.f32.mrf.mxu0
        %v413 = vadd.f32 0.0, %v412
        %414 = vdwg.mxu0
        %415 = vmatprep.subr.bf16.mxu0 0
        %416 = vmatpush1.bf16.msra.mxu0 0
        %417 = vmatprep.subr.bf16.mxu0 0
        %418 = vmatpush1.bf16.msra.mxu0 0
        %419 = vmatprep.subr.bf16.mxu0 0
        %420 = vmatpush1.bf16.msra.mxu0 0
        %421 = vmatprep.subr.bf16.mxu0 0
        %422 = vmatpush1.bf16.msra.mxu0 0
        %423 = vmatprep.subr.bf16.mxu0 0
        %424 = vmatpush1.bf16.msra.mxu0 0
        %425 = vmatprep.subr.bf16.mxu0 0
        %426 = vmatpush1.bf16.msra.mxu0 0
        %427 = vmatprep.subr.bf16.mxu0 0
        %428 = vmatpush1.bf16.msra.mxu0 0
        %429 = vmatprep.subr.bf16.mxu0 %v361
        %430 = vmatpush1.bf16.msra.mxu0 %v360
        %431 = vmatprep.subr.bf16.mxu0 0
        %432 = vmatpush2.bf16.msra.mxu0 0
        %433 = vmatprep.subr.bf16.mxu0 0
        %434 = vmatpush2.bf16.msra.mxu0 0
        %435 = vmatprep.subr.bf16.mxu0 0
        %436 = vmatpush2.bf16.msra.mxu0 0
        %437 = vmatprep.subr.bf16.mxu0 0
        %438 = vmatpush2.bf16.msra.mxu0 0
        %439 = vmatprep.subr.bf16.mxu0 0
        %440 = vmatpush2.bf16.msra.mxu0 0
        %441 = vmatprep.subr.bf16.mxu0 0
        %442 = vmatpush2.bf16.msra.mxu0 0
        %443 = vmatprep.subr.bf16.mxu0 0
        %444 = vmatpush2.bf16.msra.mxu0 0
        %445 = vmatprep.subr.bf16.mxu0 0
        %446 = vmatpush2.bf16.msra.mxu0 0
        %447 = vmatprep.mubr.bf16.mxu0 0
        %448 = vmatmul.mubr.bf16.gmra.mxu0 %v370
        %v449 = vpop.f32.mrf.mxu0
        %v450 = vadd.f32 0.0, %v449
        %v451 = vpop.f32.mrf.mxu0
        %v452 = vadd.f32 0.0, %v451
        %v453 = vpop.f32.mrf.mxu0
        %v454 = vadd.f32 0.0, %v453
        %v455 = vpop.f32.mrf.mxu0
        %v456 = vadd.f32 0.0, %v455
        %457 = vdwg.mxu0
        %458 = vmatprep.subr.bf16.mxu0 0
        %459 = vmatpush1.bf16.msra.mxu0 0
        %460 = vmatprep.subr.bf16.mxu0 0
        %461 = vmatpush1.bf16.msra.mxu0 0
        %462 = vmatprep.subr.bf16.mxu0 0
        %463 = vmatpush1.bf16.msra.mxu0 0
        %464 = vmatprep.subr.bf16.mxu0 0
        %465 = vmatpush1.bf16.msra.mxu0 0
        %466 = vmatprep.subr.bf16.mxu0 0
        %467 = vmatpush1.bf16.msra.mxu0 0
        %468 = vmatprep.subr.bf16.mxu0 0
        %469 = vmatpush1.bf16.msra.mxu0 0
        %470 = vmatprep.subr.bf16.mxu0 0
        %471 = vmatpush1.bf16.msra.mxu0 0
        %472 = vmatprep.subr.bf16.mxu0 0
        %473 = vmatpush1.bf16.msra.mxu0 %v362
        %474 = vmatprep.subr.bf16.mxu0 0
        %475 = vmatpush2.bf16.msra.mxu0 0
        %476 = vmatprep.subr.bf16.mxu0 0
        %477 = vmatpush2.bf16.msra.mxu0 0
        %478 = vmatprep.subr.bf16.mxu0 0
        %479 = vmatpush2.bf16.msra.mxu0 0
        %480 = vmatprep.subr.bf16.mxu0 0
        %481 = vmatpush2.bf16.msra.mxu0 0
        %482 = vmatprep.subr.bf16.mxu0 0
        %483 = vmatpush2.bf16.msra.mxu0 0
        %484 = vmatprep.subr.bf16.mxu0 0
        %485 = vmatpush2.bf16.msra.mxu0 0
        %486 = vmatprep.subr.bf16.mxu0 0
        %487 = vmatpush2.bf16.msra.mxu0 0
        %488 = vmatprep.subr.bf16.mxu0 0
        %489 = vmatpush2.bf16.msra.mxu0 0
        %490 = vmatprep.mubr.bf16.mxu0 0
        %491 = vmatmul.mubr.bf16.gmra.mxu0 %v370
        %v492 = vpop.f32.mrf.mxu0
        %v493 = vadd.f32 0.0, %v492
        %v494 = vpop.f32.mrf.mxu0
        %v495 = vpop.f32.mrf.mxu0
        %v496 = vadd.f32 0.0, %v495
        %v497 = vpop.f32.mrf.mxu0
        %498 = vdwg.mxu0
        %v499 = vld [vmem:[%s0] sm:$0xf]
        %v500 = vld [vmem:[%s0 + $0x4] sm:$0xf]
        %v501 = vld [vmem:[%s0 + $0x8] sm:$0xf]
        %v502 = vld [vmem:[%s0 + $0xc] sm:$0xf]
        %v503 = vld [vmem:[%s0 + $0x10] sm:$0xf]
        %v504 = vld [vmem:[%s0 + $0x14] sm:$0xf]
        %v505 = vld [vmem:[%s0 + $0x18] sm:$0xf]
        %v506 = vld [vmem:[%s0 + $0x1c] sm:$0xf]
        %v507 = vld [vmem:[%s0 + $0x20] sm:$0xf]
        %v508 = vld [vmem:[%s0 + $0x24] sm:$0xf]
        %v509 = vld [vmem:[%s0 + $0x28] sm:$0xf]
        %v510 = vld [vmem:[%s0 + $0x2c] sm:$0xf]
        %v511 = vld [vmem:[%s0 + $0x30] sm:$0xf]
        %v512 = vld [vmem:[%s0 + $0x34] sm:$0xf]
        %v513 = vld [vmem:[%s0 + $0x38] sm:$0xf]
        %v514 = vld [vmem:[%s0 + $0x3c] sm:$0xf]
        %v515 = vld [vmem:[%s0 + $0x40] sm:$0xf]
        %v516 = vld [vmem:[%s0 + $0x44] sm:$0xf]
        %v517 = vld [vmem:[%s0 + $0x48] sm:$0xf]
        %v518 = vld [vmem:[%s0 + $0x4c] sm:$0xf]
        %v519 = vld [vmem:[%s0 + $0x50] sm:$0xf]
        %v520 = vld [vmem:[%s0 + $0x54] sm:$0xf]
        %v521 = vld [vmem:[%s0 + $0x58] sm:$0xf]
        %v522 = vld [vmem:[%s0 + $0x5c] sm:$0xf]
        %v523 = vld [vmem:[%s0 + $0x60] sm:$0xf]
        %v524 = vld [vmem:[%s0 + $0x64] sm:$0xf]
        %v525 = vld [vmem:[%s0 + $0x68] sm:$0xf]
        %v526 = vld [vmem:[%s0 + $0x6c] sm:$0xf]
        %v527 = vld [vmem:[%s0 + $0x70] sm:$0xf]
        %v528 = vld [vmem:[%s0 + $0x74] sm:$0xf]
        %v529 = vld [vmem:[%s0 + $0x78] sm:$0xf]
        %v530 = vld [vmem:[%s0 + $0x7c] sm:$0xf]
        %v531 = vld [vmem:[%s0 + $0x80] sm:$0xf]
        %v532 = vld [vmem:[%s0 + $0x84] sm:$0xf]
        %v533 = vld [vmem:[%s0 + $0x88] sm:$0xf]
        %v534 = vld [vmem:[%s0 + $0x8c] sm:$0xf]
        %v535 = vld [vmem:[%s0 + $0x90] sm:$0xf]
        %v536 = vld [vmem:[%s0 + $0x94] sm:$0xf]
        %v537 = vld [vmem:[%s0 + $0x98] sm:$0xf]
        %v538 = vld [vmem:[%s0 + $0x9c] sm:$0xf]
        %v539 = vld [vmem:[%s0 + $0xa0] sm:$0xf]
        %v540 = vld [vmem:[%s0 + $0xa4] sm:$0xf]
        %v541 = vld [vmem:[%s0 + $0xa8] sm:$0xf]
        %v542 = vld [vmem:[%s0 + $0xac] sm:$0xf]
        %v543 = vld [vmem:[%s0 + $0xb0] sm:$0xf]
        %v544 = vld [vmem:[%s0 + $0xb4] sm:$0xf]
        %v545 = vld [vmem:[%s0 + $0xb8] sm:$0xf]
        %v546 = vld [vmem:[%s0 + $0xbc] sm:$0xf]
        %v547 = vld [vmem:[%s0 + $0xc0] sm:$0xf]
        %v548 = vld [vmem:[%s0 + $0xc4] sm:$0xf]
        %v549 = vld [vmem:[%s0 + $0xc8] sm:$0xf]
        %v550 = vld [vmem:[%s0 + $0xcc] sm:$0xf]
        %v551 = vpack.c.bf16 %v411, %v407
        %v552 = vpack.c.bf16 %v413, %v409
        %v553 = vpack.c.bf16 %v454, %v450
        %v554 = vpack.c.bf16 %v456, %v452
        %v555 = vpack.c.bf16 %v496, %v493
        %v608 = vunpack.c.l.b16 %v499
        %v609 = vunpack.c.l.b16 %v500
        %v610 = vunpack.c.l.b16 %v501
        %v611 = vunpack.c.l.b16 %v502
        %v612 = vunpack.c.l.b16 %v503
        %v613 = vunpack.c.l.b16 %v504
        %v614 = vunpack.c.l.b16 %v505
        %v615 = vunpack.c.l.b16 %v506
        %v616 = vunpack.c.l.b16 %v507
        %v617 = vunpack.c.l.b16 %v508
        %v618 = vunpack.c.l.b16 %v509
        %v619 = vunpack.c.l.b16 %v510
        %v620 = vunpack.c.l.b16 %v511
        %v621 = vunpack.c.l.b16 %v512
        %v622 = vunpack.c.l.b16 %v513
        %v623 = vunpack.c.l.b16 %v514
        %v624 = vunpack.c.l.b16 %v515
        %v625 = vunpack.c.l.b16 %v516
        %v626 = vunpack.c.l.b16 %v517
        %v627 = vunpack.c.l.b16 %v518
        %v628 = vunpack.c.l.b16 %v519
        %v629 = vunpack.c.l.b16 %v520
        %v630 = vunpack.c.l.b16 %v521
        %v631 = vunpack.c.l.b16 %v522
        %v632 = vunpack.c.l.b16 %v523
        %v633 = vunpack.c.l.b16 %v524
        %v634 = vunpack.c.l.b16 %v525
        %v635 = vunpack.c.l.b16 %v526
        %v636 = vunpack.c.l.b16 %v527
        %v637 = vunpack.c.l.b16 %v528
        %v638 = vunpack.c.l.b16 %v529
        %v639 = vunpack.c.l.b16 %v530
        %v640 = vunpack.c.l.b16 %v531
        %v641 = vunpack.c.l.b16 %v532
        %v642 = vunpack.c.l.b16 %v533
        %v643 = vunpack.c.l.b16 %v534
        %v644 = vunpack.c.l.b16 %v535
        %v645 = vunpack.c.l.b16 %v536
        %v646 = vunpack.c.l.b16 %v537
        %v647 = vunpack.c.l.b16 %v538
        %v648 = vunpack.c.l.b16 %v539
        %v649 = vunpack.c.l.b16 %v540
        %v650 = vunpack.c.l.b16 %v541
        %v651 = vunpack.c.l.b16 %v542
        %v652 = vunpack.c.l.b16 %v543
        %v653 = vunpack.c.l.b16 %v544
        %v654 = vunpack.c.l.b16 %v545
        %v655 = vunpack.c.l.b16 %v546
        %v656 = vunpack.c.l.b16 %v547
        %v657 = vunpack.c.l.b16 %v548
        %v658 = vunpack.c.l.b16 %v549
        %v659 = vunpack.c.l.b16 %v550
        %v660 = vpack.c.b16 %v609, %v608
        %v661 = vpack.c.b16 %v611, %v610
        %v662 = vpack.c.b16 %v613, %v612
        %v663 = vpack.c.b16 %v615, %v614
        %v664 = vpack.c.b16 %v617, %v616
        %v665 = vpack.c.b16 %v619, %v618
        %v666 = vpack.c.b16 %v621, %v620
        %v667 = vpack.c.b16 %v623, %v622
        %v668 = vpack.c.b16 %v625, %v624
        %v669 = vpack.c.b16 %v627, %v626
        %v670 = vpack.c.b16 %v629, %v628
        %v671 = vpack.c.b16 %v631, %v630
        %v672 = vpack.c.b16 %v633, %v632
        %v673 = vpack.c.b16 %v635, %v634
        %v674 = vpack.c.b16 %v637, %v636
        %v675 = vpack.c.b16 %v639, %v638
        %v676 = vpack.c.b16 %v641, %v640
        %v677 = vpack.c.b16 %v643, %v642
        %v678 = vpack.c.b16 %v645, %v644
        %v679 = vpack.c.b16 %v647, %v646
        %v680 = vpack.c.b16 %v649, %v648
        %v681 = vpack.c.b16 %v651, %v650
        %v682 = vpack.c.b16 %v653, %v652
        %v683 = vpack.c.b16 %v655, %v654
        %v684 = vpack.c.b16 %v657, %v656
        %v685 = vpack.c.b16 %v659, %v658
        %v687 = vsel %vm368, %v660, 0
        %v690 = vsel %vm368, %v661, 0
        %v693 = vsel %vm368, %v662, 0
        %v696 = vsel %vm368, %v663, 0
        %v699 = vsel %vm368, %v664, 0
        %v702 = vsel %vm368, %v665, 0
        %v705 = vsel %vm368, %v666, 0
        %v708 = vsel %vm368, %v667, 0
        %v711 = vsel %vm368, %v668, 0
        %v714 = vsel %vm368, %v669, 0
        %v717 = vsel %vm368, %v670, 0
        %v720 = vsel %vm368, %v671, 0
        %v723 = vsel %vm368, %v672, 0
        %v726 = vsel %vm368, %v673, 0
        %v729 = vsel %vm368, %v674, 0
        %v732 = vsel %vm368, %v675, 0
        %v735 = vsel %vm368, %v676, 0
        %v738 = vsel %vm368, %v677, 0
        %v741 = vsel %vm368, %v678, 0
        %v744 = vsel %vm368, %v679, 0
        %v747 = vsel %vm368, %v680, 0
        %v750 = vsel %vm368, %v681, 0
        %v753 = vsel %vm368, %v682, 0
        %v756 = vsel %vm368, %v683, 0
        %v759 = vsel %vm368, %v684, 0
        %v762 = vsel %vm368, %v685, 0
        %764 = vmatprep.subr.bf16.mxu0 0
        %765 = vmatpush1.bf16.msra.mxu0 0
        %766 = vmatprep.subr.bf16.mxu0 0
        %767 = vmatpush1.bf16.msra.mxu0 0
        %768 = vmatprep.subr.bf16.mxu0 0
        %769 = vmatpush1.bf16.msra.mxu0 0
        %770 = vmatprep.subr.bf16.mxu0 0
        %771 = vmatpush1.bf16.msra.mxu0 0
        %772 = vmatprep.subr.bf16.mxu0 0
        %773 = vmatpush1.bf16.msra.mxu0 0
        %774 = vmatprep.subr.bf16.mxu0 0
        %775 = vmatpush1.bf16.msra.mxu0 0
        %776 = vmatprep.subr.bf16.mxu0 0
        %777 = vmatpush1.bf16.msra.mxu0 0
        %778 = vmatprep.subr.bf16.mxu0 %v552
        %779 = vmatpush1.bf16.msra.mxu0 %v551
        %780 = vmatprep.subr.bf16.mxu0 0
        %781 = vmatpush2.bf16.msra.mxu0 0
        %782 = vmatprep.subr.bf16.mxu0 0
        %783 = vmatpush2.bf16.msra.mxu0 0
        %784 = vmatprep.subr.bf16.mxu0 0
        %785 = vmatpush2.bf16.msra.mxu0 0
        %786 = vmatprep.subr.bf16.mxu0 0
        %787 = vmatpush2.bf16.msra.mxu0 0
        %788 = vmatprep.subr.bf16.mxu0 0
        %789 = vmatpush2.bf16.msra.mxu0 0
        %790 = vmatprep.subr.bf16.mxu0 0
        %791 = vmatpush2.bf16.msra.mxu0 0
        %792 = vmatprep.subr.bf16.mxu0 0
        %793 = vmatpush2.bf16.msra.mxu0 0
        %794 = vmatprep.subr.bf16.mxu0 0
        %795 = vmatpush2.bf16.msra.mxu0 0
        %796 = vmatprep.mubr.bf16.mxu0 0
        %797 = vmatmul.mubr.bf16.gmra.mxu0 %v687
        %v798 = vpop.f32.mrf.mxu0
        %v799 = vadd.f32 0.0, %v798
        %v800 = vpop.f32.mrf.mxu0
        %v801 = vadd.f32 0.0, %v800
        %v802 = vpop.f32.mrf.mxu0
        %v803 = vadd.f32 0.0, %v802
        %v804 = vpop.f32.mrf.mxu0
        %v805 = vadd.f32 0.0, %v804
        %806 = vmatprep.mubr.bf16.mxu0 0
        %807 = vmatmul.mubr.bf16.gmra.mxu0 %v690
        %v808 = vpop.f32.mrf.mxu0
        %v809 = vadd.f32 0.0, %v808
        %v810 = vpop.f32.mrf.mxu0
        %v811 = vadd.f32 0.0, %v810
        %v812 = vpop.f32.mrf.mxu0
        %v813 = vadd.f32 0.0, %v812
        %v814 = vpop.f32.mrf.mxu0
        %v815 = vadd.f32 0.0, %v814
        %816 = vmatprep.mubr.bf16.mxu0 0
        %817 = vmatmul.mubr.bf16.gmra.mxu0 %v693
        %v818 = vpop.f32.mrf.mxu0
        %v819 = vadd.f32 0.0, %v818
        %v820 = vpop.f32.mrf.mxu0
        %v821 = vadd.f32 0.0, %v820
        %v822 = vpop.f32.mrf.mxu0
        %v823 = vadd.f32 0.0, %v822
        %v824 = vpop.f32.mrf.mxu0
        %v825 = vadd.f32 0.0, %v824
        %826 = vmatprep.mubr.bf16.mxu0 0
        %827 = vmatmul.mubr.bf16.gmra.mxu0 %v696
        %v828 = vpop.f32.mrf.mxu0
        %v829 = vadd.f32 0.0, %v828
        %v830 = vpop.f32.mrf.mxu0
        %v831 = vadd.f32 0.0, %v830
        %v832 = vpop.f32.mrf.mxu0
        %v833 = vadd.f32 0.0, %v832
        %v834 = vpop.f32.mrf.mxu0
        %v835 = vadd.f32 0.0, %v834
        %836 = vmatprep.mubr.bf16.mxu0 0
        %837 = vmatmul.mubr.bf16.gmra.mxu0 %v699
        %v838 = vpop.f32.mrf.mxu0
        %v839 = vadd.f32 0.0, %v838
        %v840 = vpop.f32.mrf.mxu0
        %v841 = vadd.f32 0.0, %v840
        %v842 = vpop.f32.mrf.mxu0
        %v843 = vadd.f32 0.0, %v842
        %v844 = vpop.f32.mrf.mxu0
        %v845 = vadd.f32 0.0, %v844
        %846 = vmatprep.mubr.bf16.mxu0 0
        %847 = vmatmul.mubr.bf16.gmra.mxu0 %v702
        %v848 = vpop.f32.mrf.mxu0
        %v849 = vadd.f32 0.0, %v848
        %v850 = vpop.f32.mrf.mxu0
        %v851 = vadd.f32 0.0, %v850
        %v852 = vpop.f32.mrf.mxu0
        %v853 = vadd.f32 0.0, %v852
        %v854 = vpop.f32.mrf.mxu0
        %v855 = vadd.f32 0.0, %v854
        %856 = vmatprep.mubr.bf16.mxu0 0
        %857 = vmatmul.mubr.bf16.gmra.mxu0 %v705
        %v858 = vpop.f32.mrf.mxu0
        %v859 = vadd.f32 0.0, %v858
        %v860 = vpop.f32.mrf.mxu0
        %v861 = vadd.f32 0.0, %v860
        %v862 = vpop.f32.mrf.mxu0
        %v863 = vadd.f32 0.0, %v862
        %v864 = vpop.f32.mrf.mxu0
        %v865 = vadd.f32 0.0, %v864
        %866 = vmatprep.mubr.bf16.mxu0 0
        %867 = vmatmul.mubr.bf16.gmra.mxu0 %v708
        %v868 = vpop.f32.mrf.mxu0
        %v869 = vadd.f32 0.0, %v868
        %v870 = vpop.f32.mrf.mxu0
        %v871 = vadd.f32 0.0, %v870
        %v872 = vpop.f32.mrf.mxu0
        %v873 = vadd.f32 0.0, %v872
        %v874 = vpop.f32.mrf.mxu0
        %v875 = vadd.f32 0.0, %v874
        %876 = vmatprep.mubr.bf16.mxu0 0
        %877 = vmatmul.mubr.bf16.gmra.mxu0 %v711
        %v878 = vpop.f32.mrf.mxu0
        %v879 = vadd.f32 0.0, %v878
        %v880 = vpop.f32.mrf.mxu0
        %v881 = vadd.f32 0.0, %v880
        %v882 = vpop.f32.mrf.mxu0
        %v883 = vadd.f32 0.0, %v882
        %v884 = vpop.f32.mrf.mxu0
        %v885 = vadd.f32 0.0, %v884
        %886 = vmatprep.mubr.bf16.mxu0 0
        %887 = vmatmul.mubr.bf16.gmra.mxu0 %v714
        %v888 = vpop.f32.mrf.mxu0
        %v889 = vadd.f32 0.0, %v888
        %v890 = vpop.f32.mrf.mxu0
        %v891 = vadd.f32 0.0, %v890
        %v892 = vpop.f32.mrf.mxu0
        %v893 = vadd.f32 0.0, %v892
        %v894 = vpop.f32.mrf.mxu0
        %v895 = vadd.f32 0.0, %v894
        %896 = vmatprep.mubr.bf16.mxu0 0
        %897 = vmatmul.mubr.bf16.gmra.mxu0 %v717
        %v898 = vpop.f32.mrf.mxu0
        %v899 = vadd.f32 0.0, %v898
        %v900 = vpop.f32.mrf.mxu0
        %v901 = vadd.f32 0.0, %v900
        %v902 = vpop.f32.mrf.mxu0
        %v903 = vadd.f32 0.0, %v902
        %v904 = vpop.f32.mrf.mxu0
        %v905 = vadd.f32 0.0, %v904
        %906 = vmatprep.mubr.bf16.mxu0 0
        %907 = vmatmul.mubr.bf16.gmra.mxu0 %v720
        %v908 = vpop.f32.mrf.mxu0
        %v909 = vadd.f32 0.0, %v908
        %v910 = vpop.f32.mrf.mxu0
        %v911 = vadd.f32 0.0, %v910
        %v912 = vpop.f32.mrf.mxu0
        %v913 = vadd.f32 0.0, %v912
        %v914 = vpop.f32.mrf.mxu0
        %v915 = vadd.f32 0.0, %v914
        %916 = vmatprep.mubr.bf16.mxu0 0
        %917 = vmatmul.mubr.bf16.gmra.mxu0 %v723
        %v918 = vpop.f32.mrf.mxu0
        %v919 = vadd.f32 0.0, %v918
        %v920 = vpop.f32.mrf.mxu0
        %v921 = vadd.f32 0.0, %v920
        %v922 = vpop.f32.mrf.mxu0
        %v923 = vadd.f32 0.0, %v922
        %v924 = vpop.f32.mrf.mxu0
        %v925 = vadd.f32 0.0, %v924
        %926 = vmatprep.mubr.bf16.mxu0 0
        %927 = vmatmul.mubr.bf16.gmra.mxu0 %v726
        %v928 = vpop.f32.mrf.mxu0
        %v929 = vadd.f32 0.0, %v928
        %v930 = vpop.f32.mrf.mxu0
        %v931 = vadd.f32 0.0, %v930
        %v932 = vpop.f32.mrf.mxu0
        %v933 = vadd.f32 0.0, %v932
        %v934 = vpop.f32.mrf.mxu0
        %v935 = vadd.f32 0.0, %v934
        %936 = vmatprep.mubr.bf16.mxu0 0
        %937 = vmatmul.mubr.bf16.gmra.mxu0 %v729
        %v938 = vpop.f32.mrf.mxu0
        %v939 = vadd.f32 0.0, %v938
        %v940 = vpop.f32.mrf.mxu0
        %v941 = vadd.f32 0.0, %v940
        %v942 = vpop.f32.mrf.mxu0
        %v943 = vadd.f32 0.0, %v942
        %v944 = vpop.f32.mrf.mxu0
        %v945 = vadd.f32 0.0, %v944
        %946 = vmatprep.mubr.bf16.mxu0 0
        %947 = vmatmul.mubr.bf16.gmra.mxu0 %v732
        %v948 = vpop.f32.mrf.mxu0
        %v949 = vadd.f32 0.0, %v948
        %v950 = vpop.f32.mrf.mxu0
        %v951 = vadd.f32 0.0, %v950
        %v952 = vpop.f32.mrf.mxu0
        %v953 = vadd.f32 0.0, %v952
        %v954 = vpop.f32.mrf.mxu0
        %v955 = vadd.f32 0.0, %v954
        %956 = vmatprep.mubr.bf16.mxu0 0
        %957 = vmatmul.mubr.bf16.gmra.mxu0 %v735
        %v958 = vpop.f32.mrf.mxu0
        %v959 = vadd.f32 0.0, %v958
        %v960 = vpop.f32.mrf.mxu0
        %v961 = vadd.f32 0.0, %v960
        %v962 = vpop.f32.mrf.mxu0
        %v963 = vadd.f32 0.0, %v962
        %v964 = vpop.f32.mrf.mxu0
        %v965 = vadd.f32 0.0, %v964
        %966 = vmatprep.mubr.bf16.mxu0 0
        %967 = vmatmul.mubr.bf16.gmra.mxu0 %v738
        %v968 = vpop.f32.mrf.mxu0
        %v969 = vadd.f32 0.0, %v968
        %v970 = vpop.f32.mrf.mxu0
        %v971 = vadd.f32 0.0, %v970
        %v972 = vpop.f32.mrf.mxu0
        %v973 = vadd.f32 0.0, %v972
        %v974 = vpop.f32.mrf.mxu0
        %v975 = vadd.f32 0.0, %v974
        %976 = vmatprep.mubr.bf16.mxu0 0
        %977 = vmatmul.mubr.bf16.gmra.mxu0 %v741
        %v978 = vpop.f32.mrf.mxu0
        %v979 = vadd.f32 0.0, %v978
        %v980 = vpop.f32.mrf.mxu0
        %v981 = vadd.f32 0.0, %v980
        %v982 = vpop.f32.mrf.mxu0
        %v983 = vadd.f32 0.0, %v982
        %v984 = vpop.f32.mrf.mxu0
        %v985 = vadd.f32 0.0, %v984
        %986 = vmatprep.mubr.bf16.mxu0 0
        %987 = vmatmul.mubr.bf16.gmra.mxu0 %v744
        %v988 = vpop.f32.mrf.mxu0
        %v989 = vadd.f32 0.0, %v988
        %v990 = vpop.f32.mrf.mxu0
        %v991 = vadd.f32 0.0, %v990
        %v992 = vpop.f32.mrf.mxu0
        %v993 = vadd.f32 0.0, %v992
        %v994 = vpop.f32.mrf.mxu0
        %v995 = vadd.f32 0.0, %v994
        %996 = vmatprep.mubr.bf16.mxu0 0
        %997 = vmatmul.mubr.bf16.gmra.mxu0 %v747
        %v998 = vpop.f32.mrf.mxu0
        %v999 = vadd.f32 0.0, %v998
        %v1000 = vpop.f32.mrf.mxu0
        %v1001 = vadd.f32 0.0, %v1000
        %v1002 = vpop.f32.mrf.mxu0
        %v1003 = vadd.f32 0.0, %v1002
        %v1004 = vpop.f32.mrf.mxu0
        %v1005 = vadd.f32 0.0, %v1004
        %1006 = vmatprep.mubr.bf16.mxu0 0
        %1007 = vmatmul.mubr.bf16.gmra.mxu0 %v750
        %v1008 = vpop.f32.mrf.mxu0
        %v1009 = vadd.f32 0.0, %v1008
        %v1010 = vpop.f32.mrf.mxu0
        %v1011 = vadd.f32 0.0, %v1010
        %v1012 = vpop.f32.mrf.mxu0
        %v1013 = vadd.f32 0.0, %v1012
        %v1014 = vpop.f32.mrf.mxu0
        %v1015 = vadd.f32 0.0, %v1014
        %1016 = vmatprep.mubr.bf16.mxu0 0
        %1017 = vmatmul.mubr.bf16.gmra.mxu0 %v753
        %v1018 = vpop.f32.mrf.mxu0
        %v1019 = vadd.f32 0.0, %v1018
        %v1020 = vpop.f32.mrf.mxu0
        %v1021 = vadd.f32 0.0, %v1020
        %v1022 = vpop.f32.mrf.mxu0
        %v1023 = vadd.f32 0.0, %v1022
        %v1024 = vpop.f32.mrf.mxu0
        %v1025 = vadd.f32 0.0, %v1024
        %1026 = vmatprep.mubr.bf16.mxu0 0
        %1027 = vmatmul.mubr.bf16.gmra.mxu0 %v756
        %v1028 = vpop.f32.mrf.mxu0
        %v1029 = vadd.f32 0.0, %v1028
        %v1030 = vpop.f32.mrf.mxu0
        %v1031 = vadd.f32 0.0, %v1030
        %v1032 = vpop.f32.mrf.mxu0
        %v1033 = vadd.f32 0.0, %v1032
        %v1034 = vpop.f32.mrf.mxu0
        %v1035 = vadd.f32 0.0, %v1034
        %1036 = vmatprep.mubr.bf16.mxu0 0
        %1037 = vmatmul.mubr.bf16.gmra.mxu0 %v759
        %v1038 = vpop.f32.mrf.mxu0
        %v1039 = vadd.f32 0.0, %v1038
        %v1040 = vpop.f32.mrf.mxu0
        %v1041 = vadd.f32 0.0, %v1040
        %v1042 = vpop.f32.mrf.mxu0
        %v1043 = vadd.f32 0.0, %v1042
        %v1044 = vpop.f32.mrf.mxu0
        %v1045 = vadd.f32 0.0, %v1044
        %1046 = vmatprep.mubr.bf16.mxu0 0
        %1047 = vmatmul.mubr.bf16.gmra.mxu0 %v762
        %v1048 = vpop.f32.mrf.mxu0
        %v1049 = vadd.f32 0.0, %v1048
        %v1050 = vpop.f32.mrf.mxu0
        %v1051 = vadd.f32 0.0, %v1050
        %v1052 = vpop.f32.mrf.mxu0
        %v1053 = vadd.f32 0.0, %v1052
        %v1054 = vpop.f32.mrf.mxu0
        %v1055 = vadd.f32 0.0, %v1054
        %1056 = vdwg.mxu0
        %1057 = vmatprep.subr.bf16.mxu0 0
        %1058 = vmatpush1.bf16.msra.mxu0 0
        %1059 = vmatprep.subr.bf16.mxu0 0
        %1060 = vmatpush1.bf16.msra.mxu0 0
        %1061 = vmatprep.subr.bf16.mxu0 0
        %1062 = vmatpush1.bf16.msra.mxu0 0
        %1063 = vmatprep.subr.bf16.mxu0 0
        %1064 = vmatpush1.bf16.msra.mxu0 0
        %1065 = vmatprep.subr.bf16.mxu0 0
        %1066 = vmatpush1.bf16.msra.mxu0 0
        %1067 = vmatprep.subr.bf16.mxu0 0
        %1068 = vmatpush1.bf16.msra.mxu0 0
        %1069 = vmatprep.subr.bf16.mxu0 0
        %1070 = vmatpush1.bf16.msra.mxu0 0
        %1071 = vmatprep.subr.bf16.mxu0 %v554
        %1072 = vmatpush1.bf16.msra.mxu0 %v553
        %1073 = vmatprep.subr.bf16.mxu0 0
        %1074 = vmatpush2.bf16.msra.mxu0 0
        %1075 = vmatprep.subr.bf16.mxu0 0
        %1076 = vmatpush2.bf16.msra.mxu0 0
        %1077 = vmatprep.subr.bf16.mxu0 0
        %1078 = vmatpush2.bf16.msra.mxu0 0
        %1079 = vmatprep.subr.bf16.mxu0 0
        %1080 = vmatpush2.bf16.msra.mxu0 0
        %1081 = vmatprep.subr.bf16.mxu0 0
        %1082 = vmatpush2.bf16.msra.mxu0 0
        %1083 = vmatprep.subr.bf16.mxu0 0
        %1084 = vmatpush2.bf16.msra.mxu0 0
        %1085 = vmatprep.subr.bf16.mxu0 0
        %1086 = vmatpush2.bf16.msra.mxu0 0
        %1087 = vmatprep.subr.bf16.mxu0 0
        %1088 = vmatpush2.bf16.msra.mxu0 0
        %1089 = vmatprep.mubr.bf16.mxu0 0
        %1090 = vmatmul.mubr.bf16.gmra.mxu0 %v687
        %v1091 = vpop.f32.mrf.mxu0
        %v1092 = vadd.f32 0.0, %v1091
        %v1093 = vpop.f32.mrf.mxu0
        %v1094 = vadd.f32 0.0, %v1093
        %v1095 = vpop.f32.mrf.mxu0
        %v1096 = vadd.f32 0.0, %v1095
        %v1097 = vpop.f32.mrf.mxu0
        %v1098 = vadd.f32 0.0, %v1097
        %1099 = vmatprep.mubr.bf16.mxu0 0
        %1100 = vmatmul.mubr.bf16.gmra.mxu0 %v690
        %v1101 = vpop.f32.mrf.mxu0
        %v1102 = vadd.f32 0.0, %v1101
        %v1103 = vpop.f32.mrf.mxu0
        %v1104 = vadd.f32 0.0, %v1103
        %v1105 = vpop.f32.mrf.mxu0
        %v1106 = vadd.f32 0.0, %v1105
        %v1107 = vpop.f32.mrf.mxu0
        %v1108 = vadd.f32 0.0, %v1107
        %1109 = vmatprep.mubr.bf16.mxu0 0
        %1110 = vmatmul.mubr.bf16.gmra.mxu0 %v693
        %v1111 = vpop.f32.mrf.mxu0
        %v1112 = vadd.f32 0.0, %v1111
        %v1113 = vpop.f32.mrf.mxu0
        %v1114 = vadd.f32 0.0, %v1113
        %v1115 = vpop.f32.mrf.mxu0
        %v1116 = vadd.f32 0.0, %v1115
        %v1117 = vpop.f32.mrf.mxu0
        %v1118 = vadd.f32 0.0, %v1117
        %1119 = vmatprep.mubr.bf16.mxu0 0
        %1120 = vmatmul.mubr.bf16.gmra.mxu0 %v696
        %v1121 = vpop.f32.mrf.mxu0
        %v1122 = vadd.f32 0.0, %v1121
        %v1123 = vpop.f32.mrf.mxu0
        %v1124 = vadd.f32 0.0, %v1123
        %v1125 = vpop.f32.mrf.mxu0
        %v1126 = vadd.f32 0.0, %v1125
        %v1127 = vpop.f32.mrf.mxu0
        %v1128 = vadd.f32 0.0, %v1127
        %1129 = vmatprep.mubr.bf16.mxu0 0
        %1130 = vmatmul.mubr.bf16.gmra.mxu0 %v699
        %v1131 = vpop.f32.mrf.mxu0
        %v1132 = vadd.f32 0.0, %v1131
        %v1133 = vpop.f32.mrf.mxu0
        %v1134 = vadd.f32 0.0, %v1133
        %v1135 = vpop.f32.mrf.mxu0
        %v1136 = vadd.f32 0.0, %v1135
        %v1137 = vpop.f32.mrf.mxu0
        %v1138 = vadd.f32 0.0, %v1137
        %1139 = vmatprep.mubr.bf16.mxu0 0
        %1140 = vmatmul.mubr.bf16.gmra.mxu0 %v702
        %v1141 = vpop.f32.mrf.mxu0
        %v1142 = vadd.f32 0.0, %v1141
        %v1143 = vpop.f32.mrf.mxu0
        %v1144 = vadd.f32 0.0, %v1143
        %v1145 = vpop.f32.mrf.mxu0
        %v1146 = vadd.f32 0.0, %v1145
        %v1147 = vpop.f32.mrf.mxu0
        %v1148 = vadd.f32 0.0, %v1147
        %1149 = vmatprep.mubr.bf16.mxu0 0
        %1150 = vmatmul.mubr.bf16.gmra.mxu0 %v705
        %v1151 = vpop.f32.mrf.mxu0
        %v1152 = vadd.f32 0.0, %v1151
        %v1153 = vpop.f32.mrf.mxu0
        %v1154 = vadd.f32 0.0, %v1153
        %v1155 = vpop.f32.mrf.mxu0
        %v1156 = vadd.f32 0.0, %v1155
        %v1157 = vpop.f32.mrf.mxu0
        %v1158 = vadd.f32 0.0, %v1157
        %1159 = vmatprep.mubr.bf16.mxu0 0
        %1160 = vmatmul.mubr.bf16.gmra.mxu0 %v708
        %v1161 = vpop.f32.mrf.mxu0
        %v1162 = vadd.f32 0.0, %v1161
        %v1163 = vpop.f32.mrf.mxu0
        %v1164 = vadd.f32 0.0, %v1163
        %v1165 = vpop.f32.mrf.mxu0
        %v1166 = vadd.f32 0.0, %v1165
        %v1167 = vpop.f32.mrf.mxu0
        %v1168 = vadd.f32 0.0, %v1167
        %1169 = vmatprep.mubr.bf16.mxu0 0
        %1170 = vmatmul.mubr.bf16.gmra.mxu0 %v711
        %v1171 = vpop.f32.mrf.mxu0
        %v1172 = vadd.f32 0.0, %v1171
        %v1173 = vpop.f32.mrf.mxu0
        %v1174 = vadd.f32 0.0, %v1173
        %v1175 = vpop.f32.mrf.mxu0
        %v1176 = vadd.f32 0.0, %v1175
        %v1177 = vpop.f32.mrf.mxu0
        %v1178 = vadd.f32 0.0, %v1177
        %1179 = vmatprep.mubr.bf16.mxu0 0
        %1180 = vmatmul.mubr.bf16.gmra.mxu0 %v714
        %v1181 = vpop.f32.mrf.mxu0
        %v1182 = vadd.f32 0.0, %v1181
        %v1183 = vpop.f32.mrf.mxu0
        %v1184 = vadd.f32 0.0, %v1183
        %v1185 = vpop.f32.mrf.mxu0
        %v1186 = vadd.f32 0.0, %v1185
        %v1187 = vpop.f32.mrf.mxu0
        %v1188 = vadd.f32 0.0, %v1187
        %1189 = vmatprep.mubr.bf16.mxu0 0
        %1190 = vmatmul.mubr.bf16.gmra.mxu0 %v717
        %v1191 = vpop.f32.mrf.mxu0
        %v1192 = vadd.f32 0.0, %v1191
        %v1193 = vpop.f32.mrf.mxu0
        %v1194 = vadd.f32 0.0, %v1193
        %v1195 = vpop.f32.mrf.mxu0
        %v1196 = vadd.f32 0.0, %v1195
        %v1197 = vpop.f32.mrf.mxu0
        %v1198 = vadd.f32 0.0, %v1197
        %1199 = vmatprep.mubr.bf16.mxu0 0
        %1200 = vmatmul.mubr.bf16.gmra.mxu0 %v720
        %v1201 = vpop.f32.mrf.mxu0
        %v1202 = vadd.f32 0.0, %v1201
        %v1203 = vpop.f32.mrf.mxu0
        %v1204 = vadd.f32 0.0, %v1203
        %v1205 = vpop.f32.mrf.mxu0
        %v1206 = vadd.f32 0.0, %v1205
        %v1207 = vpop.f32.mrf.mxu0
        %v1208 = vadd.f32 0.0, %v1207
        %1209 = vmatprep.mubr.bf16.mxu0 0
        %1210 = vmatmul.mubr.bf16.gmra.mxu0 %v723
        %v1211 = vpop.f32.mrf.mxu0
        %v1212 = vadd.f32 0.0, %v1211
        %v1213 = vpop.f32.mrf.mxu0
        %v1214 = vadd.f32 0.0, %v1213
        %v1215 = vpop.f32.mrf.mxu0
        %v1216 = vadd.f32 0.0, %v1215
        %v1217 = vpop.f32.mrf.mxu0
        %v1218 = vadd.f32 0.0, %v1217
        %1219 = vmatprep.mubr.bf16.mxu0 0
        %1220 = vmatmul.mubr.bf16.gmra.mxu0 %v726
        %v1221 = vpop.f32.mrf.mxu0
        %v1222 = vadd.f32 0.0, %v1221
        %v1223 = vpop.f32.mrf.mxu0
        %v1224 = vadd.f32 0.0, %v1223
        %v1225 = vpop.f32.mrf.mxu0
        %v1226 = vadd.f32 0.0, %v1225
        %v1227 = vpop.f32.mrf.mxu0
        %v1228 = vadd.f32 0.0, %v1227
        %1229 = vmatprep.mubr.bf16.mxu0 0
        %1230 = vmatmul.mubr.bf16.gmra.mxu0 %v729
        %v1231 = vpop.f32.mrf.mxu0
        %v1232 = vadd.f32 0.0, %v1231
        %v1233 = vpop.f32.mrf.mxu0
        %v1234 = vadd.f32 0.0, %v1233
        %v1235 = vpop.f32.mrf.mxu0
        %v1236 = vadd.f32 0.0, %v1235
        %v1237 = vpop.f32.mrf.mxu0
        %v1238 = vadd.f32 0.0, %v1237
        %1239 = vmatprep.mubr.bf16.mxu0 0
        %1240 = vmatmul.mubr.bf16.gmra.mxu0 %v732
        %v1241 = vpop.f32.mrf.mxu0
        %v1242 = vadd.f32 0.0, %v1241
        %v1243 = vpop.f32.mrf.mxu0
        %v1244 = vadd.f32 0.0, %v1243
        %v1245 = vpop.f32.mrf.mxu0
        %v1246 = vadd.f32 0.0, %v1245
        %v1247 = vpop.f32.mrf.mxu0
        %v1248 = vadd.f32 0.0, %v1247
        %1249 = vmatprep.mubr.bf16.mxu0 0
        %1250 = vmatmul.mubr.bf16.gmra.mxu0 %v735
        %v1251 = vpop.f32.mrf.mxu0
        %v1252 = vadd.f32 0.0, %v1251
        %v1253 = vpop.f32.mrf.mxu0
        %v1254 = vadd.f32 0.0, %v1253
        %v1255 = vpop.f32.mrf.mxu0
        %v1256 = vadd.f32 0.0, %v1255
        %v1257 = vpop.f32.mrf.mxu0
        %v1258 = vadd.f32 0.0, %v1257
        %1259 = vmatprep.mubr.bf16.mxu0 0
        %1260 = vmatmul.mubr.bf16.gmra.mxu0 %v738
        %v1261 = vpop.f32.mrf.mxu0
        %v1262 = vadd.f32 0.0, %v1261
        %v1263 = vpop.f32.mrf.mxu0
        %v1264 = vadd.f32 0.0, %v1263
        %v1265 = vpop.f32.mrf.mxu0
        %v1266 = vadd.f32 0.0, %v1265
        %v1267 = vpop.f32.mrf.mxu0
        %v1268 = vadd.f32 0.0, %v1267
        %1269 = vmatprep.mubr.bf16.mxu0 0
        %1270 = vmatmul.mubr.bf16.gmra.mxu0 %v741
        %v1271 = vpop.f32.mrf.mxu0
        %v1272 = vadd.f32 0.0, %v1271
        %v1273 = vpop.f32.mrf.mxu0
        %v1274 = vadd.f32 0.0, %v1273
        %v1275 = vpop.f32.mrf.mxu0
        %v1276 = vadd.f32 0.0, %v1275
        %v1277 = vpop.f32.mrf.mxu0
        %v1278 = vadd.f32 0.0, %v1277
        %1279 = vmatprep.mubr.bf16.mxu0 0
        %1280 = vmatmul.mubr.bf16.gmra.mxu0 %v744
        %v1281 = vpop.f32.mrf.mxu0
        %v1282 = vadd.f32 0.0, %v1281
        %v1283 = vpop.f32.mrf.mxu0
        %v1284 = vadd.f32 0.0, %v1283
        %v1285 = vpop.f32.mrf.mxu0
        %v1286 = vadd.f32 0.0, %v1285
        %v1287 = vpop.f32.mrf.mxu0
        %v1288 = vadd.f32 0.0, %v1287
        %1289 = vmatprep.mubr.bf16.mxu0 0
        %1290 = vmatmul.mubr.bf16.gmra.mxu0 %v747
        %v1291 = vpop.f32.mrf.mxu0
        %v1292 = vadd.f32 0.0, %v1291
        %v1293 = vpop.f32.mrf.mxu0
        %v1294 = vadd.f32 0.0, %v1293
        %v1295 = vpop.f32.mrf.mxu0
        %v1296 = vadd.f32 0.0, %v1295
        %v1297 = vpop.f32.mrf.mxu0
        %v1298 = vadd.f32 0.0, %v1297
        %1299 = vmatprep.mubr.bf16.mxu0 0
        %1300 = vmatmul.mubr.bf16.gmra.mxu0 %v750
        %v1301 = vpop.f32.mrf.mxu0
        %v1302 = vadd.f32 0.0, %v1301
        %v1303 = vpop.f32.mrf.mxu0
        %v1304 = vadd.f32 0.0, %v1303
        %v1305 = vpop.f32.mrf.mxu0
        %v1306 = vadd.f32 0.0, %v1305
        %v1307 = vpop.f32.mrf.mxu0
        %v1308 = vadd.f32 0.0, %v1307
        %1309 = vmatprep.mubr.bf16.mxu0 0
        %1310 = vmatmul.mubr.bf16.gmra.mxu0 %v753
        %v1311 = vpop.f32.mrf.mxu0
        %v1312 = vadd.f32 0.0, %v1311
        %v1313 = vpop.f32.mrf.mxu0
        %v1314 = vadd.f32 0.0, %v1313
        %v1315 = vpop.f32.mrf.mxu0
        %v1316 = vadd.f32 0.0, %v1315
        %v1317 = vpop.f32.mrf.mxu0
        %v1318 = vadd.f32 0.0, %v1317
        %1319 = vmatprep.mubr.bf16.mxu0 0
        %1320 = vmatmul.mubr.bf16.gmra.mxu0 %v756
        %v1321 = vpop.f32.mrf.mxu0
        %v1322 = vadd.f32 0.0, %v1321
        %v1323 = vpop.f32.mrf.mxu0
        %v1324 = vadd.f32 0.0, %v1323
        %v1325 = vpop.f32.mrf.mxu0
        %v1326 = vadd.f32 0.0, %v1325
        %v1327 = vpop.f32.mrf.mxu0
        %v1328 = vadd.f32 0.0, %v1327
        %1329 = vmatprep.mubr.bf16.mxu0 0
        %1330 = vmatmul.mubr.bf16.gmra.mxu0 %v759
        %v1331 = vpop.f32.mrf.mxu0
        %v1332 = vadd.f32 0.0, %v1331
        %v1333 = vpop.f32.mrf.mxu0
        %v1334 = vadd.f32 0.0, %v1333
        %v1335 = vpop.f32.mrf.mxu0
        %v1336 = vadd.f32 0.0, %v1335
        %v1337 = vpop.f32.mrf.mxu0
        %v1338 = vadd.f32 0.0, %v1337
        %1339 = vmatprep.mubr.bf16.mxu0 0
        %1340 = vmatmul.mubr.bf16.gmra.mxu0 %v762
        %v1341 = vpop.f32.mrf.mxu0
        %v1342 = vadd.f32 0.0, %v1341
        %v1343 = vpop.f32.mrf.mxu0
        %v1344 = vadd.f32 0.0, %v1343
        %v1345 = vpop.f32.mrf.mxu0
        %v1346 = vadd.f32 0.0, %v1345
        %v1347 = vpop.f32.mrf.mxu0
        %v1348 = vadd.f32 0.0, %v1347
        %1349 = vdwg.mxu0
        %1350 = vmatprep.subr.bf16.mxu0 0
        %1351 = vmatpush1.bf16.msra.mxu0 0
        %1352 = vmatprep.subr.bf16.mxu0 0
        %1353 = vmatpush1.bf16.msra.mxu0 0
        %1354 = vmatprep.subr.bf16.mxu0 0
        %1355 = vmatpush1.bf16.msra.mxu0 0
        %1356 = vmatprep.subr.bf16.mxu0 0
        %1357 = vmatpush1.bf16.msra.mxu0 0
        %1358 = vmatprep.subr.bf16.mxu0 0
        %1359 = vmatpush1.bf16.msra.mxu0 0
        %1360 = vmatprep.subr.bf16.mxu0 0
        %1361 = vmatpush1.bf16.msra.mxu0 0
        %1362 = vmatprep.subr.bf16.mxu0 0
        %1363 = vmatpush1.bf16.msra.mxu0 0
        %1364 = vmatprep.subr.bf16.mxu0 0
        %1365 = vmatpush1.bf16.msra.mxu0 %v555
        %1366 = vmatprep.subr.bf16.mxu0 0
        %1367 = vmatpush2.bf16.msra.mxu0 0
        %1368 = vmatprep.subr.bf16.mxu0 0
        %1369 = vmatpush2.bf16.msra.mxu0 0
        %1370 = vmatprep.subr.bf16.mxu0 0
        %1371 = vmatpush2.bf16.msra.mxu0 0
        %1372 = vmatprep.subr.bf16.mxu0 0
        %1373 = vmatpush2.bf16.msra.mxu0 0
        %1374 = vmatprep.subr.bf16.mxu0 0
        %1375 = vmatpush2.bf16.msra.mxu0 0
        %1376 = vmatprep.subr.bf16.mxu0 0
        %1377 = vmatpush2.bf16.msra.mxu0 0
        %1378 = vmatprep.subr.bf16.mxu0 0
        %1379 = vmatpush2.bf16.msra.mxu0 0
        %1380 = vmatprep.subr.bf16.mxu0 0
        %1381 = vmatpush2.bf16.msra.mxu0 0
        %1382 = vmatprep.mubr.bf16.mxu0 0
        %1383 = vmatmul.mubr.bf16.gmra.mxu0 %v687
        %v1384 = vpop.f32.mrf.mxu0
        %v1385 = vadd.f32 0.0, %v1384
        %v1386 = vpop.f32.mrf.mxu0
        %v1387 = vpop.f32.mrf.mxu0
        %v1388 = vadd.f32 0.0, %v1387
        %v1389 = vpop.f32.mrf.mxu0
        %1390 = vmatprep.mubr.bf16.mxu0 0
        %1391 = vmatmul.mubr.bf16.gmra.mxu0 %v690
        %v1392 = vpop.f32.mrf.mxu0
        %v1393 = vadd.f32 0.0, %v1392
        %v1394 = vpop.f32.mrf.mxu0
        %v1395 = vpop.f32.mrf.mxu0
        %v1396 = vadd.f32 0.0, %v1395
        %v1397 = vpop.f32.mrf.mxu0
        %1398 = vmatprep.mubr.bf16.mxu0 0
        %1399 = vmatmul.mubr.bf16.gmra.mxu0 %v693
        %v1400 = vpop.f32.mrf.mxu0
        %v1401 = vadd.f32 0.0, %v1400
        %v1402 = vpop.f32.mrf.mxu0
        %v1403 = vpop.f32.mrf.mxu0
        %v1404 = vadd.f32 0.0, %v1403
        %v1405 = vpop.f32.mrf.mxu0
        %1406 = vmatprep.mubr.bf16.mxu0 0
        %1407 = vmatmul.mubr.bf16.gmra.mxu0 %v696
        %v1408 = vpop.f32.mrf.mxu0
        %v1409 = vadd.f32 0.0, %v1408
        %v1410 = vpop.f32.mrf.mxu0
        %v1411 = vpop.f32.mrf.mxu0
        %v1412 = vadd.f32 0.0, %v1411
        %v1413 = vpop.f32.mrf.mxu0
        %1414 = vmatprep.mubr.bf16.mxu0 0
        %1415 = vmatmul.mubr.bf16.gmra.mxu0 %v699
        %v1416 = vpop.f32.mrf.mxu0
        %v1417 = vadd.f32 0.0, %v1416
        %v1418 = vpop.f32.mrf.mxu0
        %v1419 = vpop.f32.mrf.mxu0
        %v1420 = vadd.f32 0.0, %v1419
        %v1421 = vpop.f32.mrf.mxu0
        %1422 = vmatprep.mubr.bf16.mxu0 0
        %1423 = vmatmul.mubr.bf16.gmra.mxu0 %v702
        %v1424 = vpop.f32.mrf.mxu0
        %v1425 = vadd.f32 0.0, %v1424
        %v1426 = vpop.f32.mrf.mxu0
        %v1427 = vpop.f32.mrf.mxu0
        %v1428 = vadd.f32 0.0, %v1427
        %v1429 = vpop.f32.mrf.mxu0
        %1430 = vmatprep.mubr.bf16.mxu0 0
        %1431 = vmatmul.mubr.bf16.gmra.mxu0 %v705
        %v1432 = vpop.f32.mrf.mxu0
        %v1433 = vadd.f32 0.0, %v1432
        %v1434 = vpop.f32.mrf.mxu0
        %v1435 = vpop.f32.mrf.mxu0
        %v1436 = vadd.f32 0.0, %v1435
        %v1437 = vpop.f32.mrf.mxu0
        %1438 = vmatprep.mubr.bf16.mxu0 0
        %1439 = vmatmul.mubr.bf16.gmra.mxu0 %v708
        %v1440 = vpop.f32.mrf.mxu0
        %v1441 = vadd.f32 0.0, %v1440
        %v1442 = vpop.f32.mrf.mxu0
        %v1443 = vpop.f32.mrf.mxu0
        %v1444 = vadd.f32 0.0, %v1443
        %v1445 = vpop.f32.mrf.mxu0
        %1446 = vmatprep.mubr.bf16.mxu0 0
        %1447 = vmatmul.mubr.bf16.gmra.mxu0 %v711
        %v1448 = vpop.f32.mrf.mxu0
        %v1449 = vadd.f32 0.0, %v1448
        %v1450 = vpop.f32.mrf.mxu0
        %v1451 = vpop.f32.mrf.mxu0
        %v1452 = vadd.f32 0.0, %v1451
        %v1453 = vpop.f32.mrf.mxu0
        %1454 = vmatprep.mubr.bf16.mxu0 0
        %1455 = vmatmul.mubr.bf16.gmra.mxu0 %v714
        %v1456 = vpop.f32.mrf.mxu0
        %v1457 = vadd.f32 0.0, %v1456
        %v1458 = vpop.f32.mrf.mxu0
        %v1459 = vpop.f32.mrf.mxu0
        %v1460 = vadd.f32 0.0, %v1459
        %v1461 = vpop.f32.mrf.mxu0
        %1462 = vmatprep.mubr.bf16.mxu0 0
        %1463 = vmatmul.mubr.bf16.gmra.mxu0 %v717
        %v1464 = vpop.f32.mrf.mxu0
        %v1465 = vadd.f32 0.0, %v1464
        %v1466 = vpop.f32.mrf.mxu0
        %v1467 = vpop.f32.mrf.mxu0
        %v1468 = vadd.f32 0.0, %v1467
        %v1469 = vpop.f32.mrf.mxu0
        %1470 = vmatprep.mubr.bf16.mxu0 0
        %1471 = vmatmul.mubr.bf16.gmra.mxu0 %v720
        %v1472 = vpop.f32.mrf.mxu0
        %v1473 = vadd.f32 0.0, %v1472
        %v1474 = vpop.f32.mrf.mxu0
        %v1475 = vpop.f32.mrf.mxu0
        %v1476 = vadd.f32 0.0, %v1475
        %v1477 = vpop.f32.mrf.mxu0
        %1478 = vmatprep.mubr.bf16.mxu0 0
        %1479 = vmatmul.mubr.bf16.gmra.mxu0 %v723
        %v1480 = vpop.f32.mrf.mxu0
        %v1481 = vadd.f32 0.0, %v1480
        %v1482 = vpop.f32.mrf.mxu0
        %v1483 = vpop.f32.mrf.mxu0
        %v1484 = vadd.f32 0.0, %v1483
        %v1485 = vpop.f32.mrf.mxu0
        %1486 = vmatprep.mubr.bf16.mxu0 0
        %1487 = vmatmul.mubr.bf16.gmra.mxu0 %v726
        %v1488 = vpop.f32.mrf.mxu0
        %v1489 = vadd.f32 0.0, %v1488
        %v1490 = vpop.f32.mrf.mxu0
        %v1491 = vpop.f32.mrf.mxu0
        %v1492 = vadd.f32 0.0, %v1491
        %v1493 = vpop.f32.mrf.mxu0
        %1494 = vmatprep.mubr.bf16.mxu0 0
        %1495 = vmatmul.mubr.bf16.gmra.mxu0 %v729
        %v1496 = vpop.f32.mrf.mxu0
        %v1497 = vadd.f32 0.0, %v1496
        %v1498 = vpop.f32.mrf.mxu0
        %v1499 = vpop.f32.mrf.mxu0
        %v1500 = vadd.f32 0.0, %v1499
        %v1501 = vpop.f32.mrf.mxu0
        %1502 = vmatprep.mubr.bf16.mxu0 0
        %1503 = vmatmul.mubr.bf16.gmra.mxu0 %v732
        %v1504 = vpop.f32.mrf.mxu0
        %v1505 = vadd.f32 0.0, %v1504
        %v1506 = vpop.f32.mrf.mxu0
        %v1507 = vpop.f32.mrf.mxu0
        %v1508 = vadd.f32 0.0, %v1507
        %v1509 = vpop.f32.mrf.mxu0
        %1510 = vmatprep.mubr.bf16.mxu0 0
        %1511 = vmatmul.mubr.bf16.gmra.mxu0 %v735
        %v1512 = vpop.f32.mrf.mxu0
        %v1513 = vadd.f32 0.0, %v1512
        %v1514 = vpop.f32.mrf.mxu0
        %v1515 = vpop.f32.mrf.mxu0
        %v1516 = vadd.f32 0.0, %v1515
        %v1517 = vpop.f32.mrf.mxu0
        %1518 = vmatprep.mubr.bf16.mxu0 0
        %1519 = vmatmul.mubr.bf16.gmra.mxu0 %v738
        %v1520 = vpop.f32.mrf.mxu0
        %v1521 = vadd.f32 0.0, %v1520
        %v1522 = vpop.f32.mrf.mxu0
        %v1523 = vpop.f32.mrf.mxu0
        %v1524 = vadd.f32 0.0, %v1523
        %v1525 = vpop.f32.mrf.mxu0
        %1526 = vmatprep.mubr.bf16.mxu0 0
        %1527 = vmatmul.mubr.bf16.gmra.mxu0 %v741
        %v1528 = vpop.f32.mrf.mxu0
        %v1529 = vadd.f32 0.0, %v1528
        %v1530 = vpop.f32.mrf.mxu0
        %v1531 = vpop.f32.mrf.mxu0
        %v1532 = vadd.f32 0.0, %v1531
        %v1533 = vpop.f32.mrf.mxu0
        %1534 = vmatprep.mubr.bf16.mxu0 0
        %1535 = vmatmul.mubr.bf16.gmra.mxu0 %v744
        %v1536 = vpop.f32.mrf.mxu0
        %v1537 = vadd.f32 0.0, %v1536
        %v1538 = vpop.f32.mrf.mxu0
        %v1539 = vpop.f32.mrf.mxu0
        %v1540 = vadd.f32 0.0, %v1539
        %v1541 = vpop.f32.mrf.mxu0
        %1542 = vmatprep.mubr.bf16.mxu0 0
        %1543 = vmatmul.mubr.bf16.gmra.mxu0 %v747
        %v1544 = vpop.f32.mrf.mxu0
        %v1545 = vadd.f32 0.0, %v1544
        %v1546 = vpop.f32.mrf.mxu0
        %v1547 = vpop.f32.mrf.mxu0
        %v1548 = vadd.f32 0.0, %v1547
        %v1549 = vpop.f32.mrf.mxu0
        %1550 = vmatprep.mubr.bf16.mxu0 0
        %1551 = vmatmul.mubr.bf16.gmra.mxu0 %v750
        %v1552 = vpop.f32.mrf.mxu0
        %v1553 = vadd.f32 0.0, %v1552
        %v1554 = vpop.f32.mrf.mxu0
        %v1555 = vpop.f32.mrf.mxu0
        %v1556 = vadd.f32 0.0, %v1555
        %v1557 = vpop.f32.mrf.mxu0
        %1558 = vmatprep.mubr.bf16.mxu0 0
        %1559 = vmatmul.mubr.bf16.gmra.mxu0 %v753
        %v1560 = vpop.f32.mrf.mxu0
        %v1561 = vadd.f32 0.0, %v1560
        %v1562 = vpop.f32.mrf.mxu0
        %v1563 = vpop.f32.mrf.mxu0
        %v1564 = vadd.f32 0.0, %v1563
        %v1565 = vpop.f32.mrf.mxu0
        %1566 = vmatprep.mubr.bf16.mxu0 0
        %1567 = vmatmul.mubr.bf16.gmra.mxu0 %v756
        %v1568 = vpop.f32.mrf.mxu0
        %v1569 = vadd.f32 0.0, %v1568
        %v1570 = vpop.f32.mrf.mxu0
        %v1571 = vpop.f32.mrf.mxu0
        %v1572 = vadd.f32 0.0, %v1571
        %v1573 = vpop.f32.mrf.mxu0
        %1574 = vmatprep.mubr.bf16.mxu0 0
        %1575 = vmatmul.mubr.bf16.gmra.mxu0 %v759
        %v1576 = vpop.f32.mrf.mxu0
        %v1577 = vadd.f32 0.0, %v1576
        %v1578 = vpop.f32.mrf.mxu0
        %v1579 = vpop.f32.mrf.mxu0
        %v1580 = vadd.f32 0.0, %v1579
        %v1581 = vpop.f32.mrf.mxu0
        %1582 = vmatprep.mubr.bf16.mxu0 0
        %1583 = vmatmul.mubr.bf16.gmra.mxu0 %v762
        %v1584 = vpop.f32.mrf.mxu0
        %v1585 = vadd.f32 0.0, %v1584
        %v1586 = vpop.f32.mrf.mxu0
        %v1587 = vpop.f32.mrf.mxu0
        %v1588 = vadd.f32 0.0, %v1587
        %v1589 = vpop.f32.mrf.mxu0
        %1590 = vdwg.mxu0
        %v1591 = vmul.f32 %v799, 0.5
        %v1592 = vmul.f32 %v801, 0.5
        %v1593 = vmul.f32 %v1092, 0.5
        %v1594 = vmul.f32 %v1094, 0.5
        %v1595 = vmul.f32 %v1385, 0.5
        %v1596 = vmul.f32 %v803, 0.5
        %v1597 = vmul.f32 %v805, 0.5
        %v1598 = vmul.f32 %v1096, 0.5
        %v1599 = vmul.f32 %v1098, 0.5
        %v1600 = vmul.f32 %v1388, 0.5
        %v1601 = vmul.f32 %v809, 0.5
        %v1602 = vmul.f32 %v811, 0.5
        %v1603 = vmul.f32 %v1102, 0.5
        %v1604 = vmul.f32 %v1104, 0.5
        %v1605 = vmul.f32 %v1393, 0.5
        %v1606 = vmul.f32 %v813, 0.5
        %v1607 = vmul.f32 %v815, 0.5
        %v1608 = vmul.f32 %v1106, 0.5
        %v1609 = vmul.f32 %v1108, 0.5
        %v1610 = vmul.f32 %v1396, 0.5
        %v1611 = vmul.f32 %v819, 0.5
        %v1612 = vmul.f32 %v821, 0.5
        %v1613 = vmul.f32 %v1112, 0.5
        %v1614 = vmul.f32 %v1114, 0.5
        %v1615 = vmul.f32 %v1401, 0.5
        %v1616 = vmul.f32 %v823, 0.5
        %v1617 = vmul.f32 %v825, 0.5
        %v1618 = vmul.f32 %v1116, 0.5
        %v1619 = vmul.f32 %v1118, 0.5
        %v1620 = vmul.f32 %v1404, 0.5
        %v1621 = vmul.f32 %v829, 0.5
        %v1622 = vmul.f32 %v831, 0.5
        %v1623 = vmul.f32 %v1122, 0.5
        %v1624 = vmul.f32 %v1124, 0.5
        %v1625 = vmul.f32 %v1409, 0.5
        %v1626 = vmul.f32 %v833, 0.5
        %v1627 = vmul.f32 %v835, 0.5
        %v1628 = vmul.f32 %v1126, 0.5
        %v1629 = vmul.f32 %v1128, 0.5
        %v1630 = vmul.f32 %v1412, 0.5
        %v1631 = vmul.f32 %v839, 0.5
        %v1632 = vmul.f32 %v841, 0.5
        %v1633 = vmul.f32 %v1132, 0.5
        %v1634 = vmul.f32 %v1134, 0.5
        %v1635 = vmul.f32 %v1417, 0.5
        %v1636 = vmul.f32 %v843, 0.5
        %v1637 = vmul.f32 %v845, 0.5
        %v1638 = vmul.f32 %v1136, 0.5
        %v1639 = vmul.f32 %v1138, 0.5
        %v1640 = vmul.f32 %v1420, 0.5
        %v1641 = vmul.f32 %v849, 0.5
        %v1642 = vmul.f32 %v851, 0.5
        %v1643 = vmul.f32 %v1142, 0.5
        %v1644 = vmul.f32 %v1144, 0.5
        %v1645 = vmul.f32 %v1425, 0.5
        %v1646 = vmul.f32 %v853, 0.5
        %v1647 = vmul.f32 %v855, 0.5
        %v1648 = vmul.f32 %v1146, 0.5
        %v1649 = vmul.f32 %v1148, 0.5
        %v1650 = vmul.f32 %v1428, 0.5
        %v1651 = vmul.f32 %v859, 0.5
        %v1652 = vmul.f32 %v861, 0.5
        %v1653 = vmul.f32 %v1152, 0.5
        %v1654 = vmul.f32 %v1154, 0.5
        %v1655 = vmul.f32 %v1433, 0.5
        %v1656 = vmul.f32 %v863, 0.5
        %v1657 = vmul.f32 %v865, 0.5
        %v1658 = vmul.f32 %v1156, 0.5
        %v1659 = vmul.f32 %v1158, 0.5
        %v1660 = vmul.f32 %v1436, 0.5
        %v1661 = vmul.f32 %v869, 0.5
        %v1662 = vmul.f32 %v871, 0.5
        %v1663 = vmul.f32 %v1162, 0.5
        %v1664 = vmul.f32 %v1164, 0.5
        %v1665 = vmul.f32 %v1441, 0.5
        %v1666 = vmul.f32 %v873, 0.5
        %v1667 = vmul.f32 %v875, 0.5
        %v1668 = vmul.f32 %v1166, 0.5
        %v1669 = vmul.f32 %v1168, 0.5
        %v1670 = vmul.f32 %v1444, 0.5
        %v1671 = vmul.f32 %v879, 0.5
        %v1672 = vmul.f32 %v881, 0.5
        %v1673 = vmul.f32 %v1172, 0.5
        %v1674 = vmul.f32 %v1174, 0.5
        %v1675 = vmul.f32 %v1449, 0.5
        %v1676 = vmul.f32 %v883, 0.5
        %v1677 = vmul.f32 %v885, 0.5
        %v1678 = vmul.f32 %v1176, 0.5
        %v1679 = vmul.f32 %v1178, 0.5
        %v1680 = vmul.f32 %v1452, 0.5
        %v1681 = vmul.f32 %v889, 0.5
        %v1682 = vmul.f32 %v891, 0.5
        %v1683 = vmul.f32 %v1182, 0.5
        %v1684 = vmul.f32 %v1184, 0.5
        %v1685 = vmul.f32 %v1457, 0.5
        %v1686 = vmul.f32 %v893, 0.5
        %v1687 = vmul.f32 %v895, 0.5
        %v1688 = vmul.f32 %v1186, 0.5
        %v1689 = vmul.f32 %v1188, 0.5
        %v1690 = vmul.f32 %v1460, 0.5
        %v1691 = vmul.f32 %v899, 0.5
        %v1692 = vmul.f32 %v901, 0.5
        %v1693 = vmul.f32 %v1192, 0.5
        %v1694 = vmul.f32 %v1194, 0.5
        %v1695 = vmul.f32 %v1465, 0.5
        %v1696 = vmul.f32 %v903, 0.5
        %v1697 = vmul.f32 %v905, 0.5
        %v1698 = vmul.f32 %v1196, 0.5
        %v1699 = vmul.f32 %v1198, 0.5
        %v1700 = vmul.f32 %v1468, 0.5
        %v1701 = vmul.f32 %v909, 0.5
        %v1702 = vmul.f32 %v911, 0.5
        %v1703 = vmul.f32 %v1202, 0.5
        %v1704 = vmul.f32 %v1204, 0.5
        %v1705 = vmul.f32 %v1473, 0.5
        %v1706 = vmul.f32 %v913, 0.5
        %v1707 = vmul.f32 %v915, 0.5
        %v1708 = vmul.f32 %v1206, 0.5
        %v1709 = vmul.f32 %v1208, 0.5
        %v1710 = vmul.f32 %v1476, 0.5
        %v1711 = vmul.f32 %v919, 0.5
        %v1712 = vmul.f32 %v921, 0.5
        %v1713 = vmul.f32 %v1212, 0.5
        %v1714 = vmul.f32 %v1214, 0.5
        %v1715 = vmul.f32 %v1481, 0.5
        %v1716 = vmul.f32 %v923, 0.5
        %v1717 = vmul.f32 %v925, 0.5
        %v1718 = vmul.f32 %v1216, 0.5
        %v1719 = vmul.f32 %v1218, 0.5
        %v1720 = vmul.f32 %v1484, 0.5
        %v1721 = vmul.f32 %v929, 0.5
        %v1722 = vmul.f32 %v931, 0.5
        %v1723 = vmul.f32 %v1222, 0.5
        %v1724 = vmul.f32 %v1224, 0.5
        %v1725 = vmul.f32 %v1489, 0.5
        %v1726 = vmul.f32 %v933, 0.5
        %v1727 = vmul.f32 %v935, 0.5
        %v1728 = vmul.f32 %v1226, 0.5
        %v1729 = vmul.f32 %v1228, 0.5
        %v1730 = vmul.f32 %v1492, 0.5
        %v1731 = vmul.f32 %v939, 0.5
        %v1732 = vmul.f32 %v941, 0.5
        %v1733 = vmul.f32 %v1232, 0.5
        %v1734 = vmul.f32 %v1234, 0.5
        %v1735 = vmul.f32 %v1497, 0.5
        %v1736 = vmul.f32 %v943, 0.5
        %v1737 = vmul.f32 %v945, 0.5
        %v1738 = vmul.f32 %v1236, 0.5
        %v1739 = vmul.f32 %v1238, 0.5
        %v1740 = vmul.f32 %v1500, 0.5
        %v1741 = vmul.f32 %v949, 0.5
        %v1742 = vmul.f32 %v951, 0.5
        %v1743 = vmul.f32 %v1242, 0.5
        %v1744 = vmul.f32 %v1244, 0.5
        %v1745 = vmul.f32 %v1505, 0.5
        %v1746 = vmul.f32 %v953, 0.5
        %v1747 = vmul.f32 %v955, 0.5
        %v1748 = vmul.f32 %v1246, 0.5
        %v1749 = vmul.f32 %v1248, 0.5
        %v1750 = vmul.f32 %v1508, 0.5
        %v1751 = vmul.f32 %v959, 0.5
        %v1752 = vmul.f32 %v961, 0.5
        %v1753 = vmul.f32 %v1252, 0.5
        %v1754 = vmul.f32 %v1254, 0.5
        %v1755 = vmul.f32 %v1513, 0.5
        %v1756 = vmul.f32 %v963, 0.5
        %v1757 = vmul.f32 %v965, 0.5
        %v1758 = vmul.f32 %v1256, 0.5
        %v1759 = vmul.f32 %v1258, 0.5
        %v1760 = vmul.f32 %v1516, 0.5
        %v1761 = vmul.f32 %v969, 0.5
        %v1762 = vmul.f32 %v971, 0.5
        %v1763 = vmul.f32 %v1262, 0.5
        %v1764 = vmul.f32 %v1264, 0.5
        %v1765 = vmul.f32 %v1521, 0.5
        %v1766 = vmul.f32 %v973, 0.5
        %v1767 = vmul.f32 %v975, 0.5
        %v1768 = vmul.f32 %v1266, 0.5
        %v1769 = vmul.f32 %v1268, 0.5
        %v1770 = vmul.f32 %v1524, 0.5
        %v1771 = vmul.f32 %v979, 0.5
        %v1772 = vmul.f32 %v981, 0.5
        %v1773 = vmul.f32 %v1272, 0.5
        %v1774 = vmul.f32 %v1274, 0.5
        %v1775 = vmul.f32 %v1529, 0.5
        %v1776 = vmul.f32 %v983, 0.5
        %v1777 = vmul.f32 %v985, 0.5
        %v1778 = vmul.f32 %v1276, 0.5
        %v1779 = vmul.f32 %v1278, 0.5
        %v1780 = vmul.f32 %v1532, 0.5
        %v1781 = vmul.f32 %v989, 0.5
        %v1782 = vmul.f32 %v991, 0.5
        %v1783 = vmul.f32 %v1282, 0.5
        %v1784 = vmul.f32 %v1284, 0.5
        %v1785 = vmul.f32 %v1537, 0.5
        %v1786 = vmul.f32 %v993, 0.5
        %v1787 = vmul.f32 %v995, 0.5
        %v1788 = vmul.f32 %v1286, 0.5
        %v1789 = vmul.f32 %v1288, 0.5
        %v1790 = vmul.f32 %v1540, 0.5
        %v1791 = vmul.f32 %v999, 0.5
        %v1792 = vmul.f32 %v1001, 0.5
        %v1793 = vmul.f32 %v1292, 0.5
        %v1794 = vmul.f32 %v1294, 0.5
        %v1795 = vmul.f32 %v1545, 0.5
        %v1796 = vmul.f32 %v1003, 0.5
        %v1797 = vmul.f32 %v1005, 0.5
        %v1798 = vmul.f32 %v1296, 0.5
        %v1799 = vmul.f32 %v1298, 0.5
        %v1800 = vmul.f32 %v1548, 0.5
        %v1801 = vmul.f32 %v1009, 0.5
        %v1802 = vmul.f32 %v1011, 0.5
        %v1803 = vmul.f32 %v1302, 0.5
        %v1804 = vmul.f32 %v1304, 0.5
        %v1805 = vmul.f32 %v1553, 0.5
        %v1806 = vmul.f32 %v1013, 0.5
        %v1807 = vmul.f32 %v1015, 0.5
        %v1808 = vmul.f32 %v1306, 0.5
        %v1809 = vmul.f32 %v1308, 0.5
        %v1810 = vmul.f32 %v1556, 0.5
        %v1811 = vmul.f32 %v1019, 0.5
        %v1812 = vmul.f32 %v1021, 0.5
        %v1813 = vmul.f32 %v1312, 0.5
        %v1814 = vmul.f32 %v1314, 0.5
        %v1815 = vmul.f32 %v1561, 0.5
        %v1816 = vmul.f32 %v1023, 0.5
        %v1817 = vmul.f32 %v1025, 0.5
        %v1818 = vmul.f32 %v1316, 0.5
        %v1819 = vmul.f32 %v1318, 0.5
        %v1820 = vmul.f32 %v1564, 0.5
        %v1821 = vmul.f32 %v1029, 0.5
        %v1822 = vmul.f32 %v1031, 0.5
        %v1823 = vmul.f32 %v1322, 0.5
        %v1824 = vmul.f32 %v1324, 0.5
        %v1825 = vmul.f32 %v1569, 0.5
        %v1826 = vmul.f32 %v1033, 0.5
        %v1827 = vmul.f32 %v1035, 0.5
        %v1828 = vmul.f32 %v1326, 0.5
        %v1829 = vmul.f32 %v1328, 0.5
        %v1830 = vmul.f32 %v1572, 0.5
        %v1831 = vmul.f32 %v1039, 0.5
        %v1832 = vmul.f32 %v1041, 0.5
        %v1833 = vmul.f32 %v1332, 0.5
        %v1834 = vmul.f32 %v1334, 0.5
        %v1835 = vmul.f32 %v1577, 0.5
        %v1836 = vmul.f32 %v1043, 0.5
        %v1837 = vmul.f32 %v1045, 0.5
        %v1838 = vmul.f32 %v1336, 0.5
        %v1839 = vmul.f32 %v1338, 0.5
        %v1840 = vmul.f32 %v1580, 0.5
        %v1841 = vmul.f32 %v1049, 0.5
        %v1842 = vmul.f32 %v1051, 0.5
        %v1843 = vmul.f32 %v1342, 0.5
        %v1844 = vmul.f32 %v1344, 0.5
        %v1845 = vmul.f32 %v1585, 0.5
        %v1846 = vmul.f32 %v1053, 0.5
        %v1847 = vmul.f32 %v1055, 0.5
        %v1848 = vmul.f32 %v1346, 0.5
        %v1849 = vmul.f32 %v1348, 0.5
        %v1850 = vmul.f32 %v1588, 0.5
        %v1851 = vtanh.pop %v1591
        %v1852 = vtanh.pop %v1592
        %v1853 = vtanh.pop %v1593
        %v1854 = vtanh.pop %v1594
        %v1855 = vtanh.pop %v1595
        %v1856 = vtanh.pop %v1596
        %v1857 = vtanh.pop %v1597
        %v1858 = vtanh.pop %v1598
        %v1859 = vtanh.pop %v1599
        %v1860 = vtanh.pop %v1600
        %v1861 = vtanh.pop %v1601
        %v1862 = vtanh.pop %v1602
        %v1863 = vtanh.pop %v1603
        %v1864 = vtanh.pop %v1604
        %v1865 = vtanh.pop %v1605
        %v1866 = vtanh.pop %v1606
        %v1867 = vtanh.pop %v1607
        %v1868 = vtanh.pop %v1608
        %v1869 = vtanh.pop %v1609
        %v1870 = vtanh.pop %v1610
        %v1871 = vtanh.pop %v1611
        %v1872 = vtanh.pop %v1612
        %v1873 = vtanh.pop %v1613
        %v1874 = vtanh.pop %v1614
        %v1875 = vtanh.pop %v1615
        %v1876 = vtanh.pop %v1616
        %v1877 = vtanh.pop %v1617
        %v1878 = vtanh.pop %v1618
        %v1879 = vtanh.pop %v1619
        %v1880 = vtanh.pop %v1620
        %v1881 = vtanh.pop %v1621
        %v1882 = vtanh.pop %v1622
        %v1883 = vtanh.pop %v1623
        %v1884 = vtanh.pop %v1624
        %v1885 = vtanh.pop %v1625
        %v1886 = vtanh.pop %v1626
        %v1887 = vtanh.pop %v1627
        %v1888 = vtanh.pop %v1628
        %v1889 = vtanh.pop %v1629
        %v1890 = vtanh.pop %v1630
        %v1891 = vtanh.pop %v1631
        %v1892 = vtanh.pop %v1632
        %v1893 = vtanh.pop %v1633
        %v1894 = vtanh.pop %v1634
        %v1895 = vtanh.pop %v1635
        %v1896 = vtanh.pop %v1636
        %v1897 = vtanh.pop %v1637
        %v1898 = vtanh.pop %v1638
        %v1899 = vtanh.pop %v1639
        %v1900 = vtanh.pop %v1640
        %v1901 = vtanh.pop %v1641
        %v1902 = vtanh.pop %v1642
        %v1903 = vtanh.pop %v1643
        %v1904 = vtanh.pop %v1644
        %v1905 = vtanh.pop %v1645
        %v1906 = vtanh.pop %v1646
        %v1907 = vtanh.pop %v1647
        %v1908 = vtanh.pop %v1648
        %v1909 = vtanh.pop %v1649
        %v1910 = vtanh.pop %v1650
        %v1911 = vtanh.pop %v1651
        %v1912 = vtanh.pop %v1652
        %v1913 = vtanh.pop %v1653
        %v1914 = vtanh.pop %v1654
        %v1915 = vtanh.pop %v1655
        %v1916 = vtanh.pop %v1656
        %v1917 = vtanh.pop %v1657
        %v1918 = vtanh.pop %v1658
        %v1919 = vtanh.pop %v1659
        %v1920 = vtanh.pop %v1660
        %v1921 = vtanh.pop %v1661
        %v1922 = vtanh.pop %v1662
        %v1923 = vtanh.pop %v1663
        %v1924 = vtanh.pop %v1664
        %v1925 = vtanh.pop %v1665
        %v1926 = vtanh.pop %v1666
        %v1927 = vtanh.pop %v1667
        %v1928 = vtanh.pop %v1668
        %v1929 = vtanh.pop %v1669
        %v1930 = vtanh.pop %v1670
        %v1931 = vtanh.pop %v1671
        %v1932 = vtanh.pop %v1672
        %v1933 = vtanh.pop %v1673
        %v1934 = vtanh.pop %v1674
        %v1935 = vtanh.pop %v1675
        %v1936 = vtanh.pop %v1676
        %v1937 = vtanh.pop %v1677
        %v1938 = vtanh.pop %v1678
        %v1939 = vtanh.pop %v1679
        %v1940 = vtanh.pop %v1680
        %v1941 = vtanh.pop %v1681
        %v1942 = vtanh.pop %v1682
        %v1943 = vtanh.pop %v1683
        %v1944 = vtanh.pop %v1684
        %v1945 = vtanh.pop %v1685
        %v1946 = vtanh.pop %v1686
        %v1947 = vtanh.pop %v1687
        %v1948 = vtanh.pop %v1688
        %v1949 = vtanh.pop %v1689
        %v1950 = vtanh.pop %v1690
        %v1951 = vtanh.pop %v1691
        %v1952 = vtanh.pop %v1692
        %v1953 = vtanh.pop %v1693
        %v1954 = vtanh.pop %v1694
        %v1955 = vtanh.pop %v1695
        %v1956 = vtanh.pop %v1696
        %v1957 = vtanh.pop %v1697
        %v1958 = vtanh.pop %v1698
        %v1959 = vtanh.pop %v1699
        %v1960 = vtanh.pop %v1700
        %v1961 = vtanh.pop %v1701
        %v1962 = vtanh.pop %v1702
        %v1963 = vtanh.pop %v1703
        %v1964 = vtanh.pop %v1704
        %v1965 = vtanh.pop %v1705
        %v1966 = vtanh.pop %v1706
        %v1967 = vtanh.pop %v1707
        %v1968 = vtanh.pop %v1708
        %v1969 = vtanh.pop %v1709
        %v1970 = vtanh.pop %v1710
        %v1971 = vtanh.pop %v1711
        %v1972 = vtanh.pop %v1712
        %v1973 = vtanh.pop %v1713
        %v1974 = vtanh.pop %v1714
        %v1975 = vtanh.pop %v1715
        %v1976 = vtanh.pop %v1716
        %v1977 = vtanh.pop %v1717
        %v1978 = vtanh.pop %v1718
        %v1979 = vtanh.pop %v1719
        %v1980 = vtanh.pop %v1720
        %v1981 = vtanh.pop %v1721
        %v1982 = vtanh.pop %v1722
        %v1983 = vtanh.pop %v1723
        %v1984 = vtanh.pop %v1724
        %v1985 = vtanh.pop %v1725
        %v1986 = vtanh.pop %v1726
        %v1987 = vtanh.pop %v1727
        %v1988 = vtanh.pop %v1728
        %v1989 = vtanh.pop %v1729
        %v1990 = vtanh.pop %v1730
        %v1991 = vtanh.pop %v1731
        %v1992 = vtanh.pop %v1732
        %v1993 = vtanh.pop %v1733
        %v1994 = vtanh.pop %v1734
        %v1995 = vtanh.pop %v1735
        %v1996 = vtanh.pop %v1736
        %v1997 = vtanh.pop %v1737
        %v1998 = vtanh.pop %v1738
        %v1999 = vtanh.pop %v1739
        %v2000 = vtanh.pop %v1740
        %v2001 = vtanh.pop %v1741
        %v2002 = vtanh.pop %v1742
        %v2003 = vtanh.pop %v1743
        %v2004 = vtanh.pop %v1744
        %v2005 = vtanh.pop %v1745
        %v2006 = vtanh.pop %v1746
        %v2007 = vtanh.pop %v1747
        %v2008 = vtanh.pop %v1748
        %v2009 = vtanh.pop %v1749
        %v2010 = vtanh.pop %v1750
        %v2011 = vtanh.pop %v1751
        %v2012 = vtanh.pop %v1752
        %v2013 = vtanh.pop %v1753
        %v2014 = vtanh.pop %v1754
        %v2015 = vtanh.pop %v1755
        %v2016 = vtanh.pop %v1756
        %v2017 = vtanh.pop %v1757
        %v2018 = vtanh.pop %v1758
        %v2019 = vtanh.pop %v1759
        %v2020 = vtanh.pop %v1760
        %v2021 = vtanh.pop %v1761
        %v2022 = vtanh.pop %v1762
        %v2023 = vtanh.pop %v1763
        %v2024 = vtanh.pop %v1764
        %v2025 = vtanh.pop %v1765
        %v2026 = vtanh.pop %v1766
        %v2027 = vtanh.pop %v1767
        %v2028 = vtanh.pop %v1768
        %v2029 = vtanh.pop %v1769
        %v2030 = vtanh.pop %v1770
        %v2031 = vtanh.pop %v1771
        %v2032 = vtanh.pop %v1772
        %v2033 = vtanh.pop %v1773
        %v2034 = vtanh.pop %v1774
        %v2035 = vtanh.pop %v1775
        %v2036 = vtanh.pop %v1776
        %v2037 = vtanh.pop %v1777
        %v2038 = vtanh.pop %v1778
        %v2039 = vtanh.pop %v1779
        %v2040 = vtanh.pop %v1780
        %v2041 = vtanh.pop %v1781
        %v2042 = vtanh.pop %v1782
        %v2043 = vtanh.pop %v1783
        %v2044 = vtanh.pop %v1784
        %v2045 = vtanh.pop %v1785
        %v2046 = vtanh.pop %v1786
        %v2047 = vtanh.pop %v1787
        %v2048 = vtanh.pop %v1788
        %v2049 = vtanh.pop %v1789
        %v2050 = vtanh.pop %v1790
        %v2051 = vtanh.pop %v1791
        %v2052 = vtanh.pop %v1792
        %v2053 = vtanh.pop %v1793
        %v2054 = vtanh.pop %v1794
        %v2055 = vtanh.pop %v1795
        %v2056 = vtanh.pop %v1796
        %v2057 = vtanh.pop %v1797
        %v2058 = vtanh.pop %v1798
        %v2059 = vtanh.pop %v1799
        %v2060 = vtanh.pop %v1800
        %v2061 = vtanh.pop %v1801
        %v2062 = vtanh.pop %v1802
        %v2063 = vtanh.pop %v1803
        %v2064 = vtanh.pop %v1804
        %v2065 = vtanh.pop %v1805
        %v2066 = vtanh.pop %v1806
        %v2067 = vtanh.pop %v1807
        %v2068 = vtanh.pop %v1808
        %v2069 = vtanh.pop %v1809
        %v2070 = vtanh.pop %v1810
        %v2071 = vtanh.pop %v1811
        %v2072 = vtanh.pop %v1812
        %v2073 = vtanh.pop %v1813
        %v2074 = vtanh.pop %v1814
        %v2075 = vtanh.pop %v1815
        %v2076 = vtanh.pop %v1816
        %v2077 = vtanh.pop %v1817
        %v2078 = vtanh.pop %v1818
        %v2079 = vtanh.pop %v1819
        %v2080 = vtanh.pop %v1820
        %v2081 = vtanh.pop %v1821
        %v2082 = vtanh.pop %v1822
        %v2083 = vtanh.pop %v1823
        %v2084 = vtanh.pop %v1824
        %v2085 = vtanh.pop %v1825
        %v2086 = vtanh.pop %v1826
        %v2087 = vtanh.pop %v1827
        %v2088 = vtanh.pop %v1828
        %v2089 = vtanh.pop %v1829
        %v2090 = vtanh.pop %v1830
        %v2091 = vtanh.pop %v1831
        %v2092 = vtanh.pop %v1832
        %v2093 = vtanh.pop %v1833
        %v2094 = vtanh.pop %v1834
        %v2095 = vtanh.pop %v1835
        %v2096 = vtanh.pop %v1836
        %v2097 = vtanh.pop %v1837
        %v2098 = vtanh.pop %v1838
        %v2099 = vtanh.pop %v1839
        %v2100 = vtanh.pop %v1840
        %v2101 = vtanh.pop %v1841
        %v2102 = vtanh.pop %v1842
        %v2103 = vtanh.pop %v1843
        %v2104 = vtanh.pop %v1844
        %v2105 = vtanh.pop %v1845
        %v2106 = vtanh.pop %v1846
        %v2107 = vtanh.pop %v1847
        %v2108 = vtanh.pop %v1848
        %v2109 = vtanh.pop %v1849
        %v2110 = vtanh.pop %v1850
        %v2111 = vmul.f32 %v1851, 39.9995
        %v2112 = vmul.f32 %v1852, 39.9995
        %v2113 = vmul.f32 %v1853, 39.9995
        %v2114 = vmul.f32 %v1854, 39.9995
        %v2115 = vmul.f32 %v1855, 39.9995
        %v2116 = vmul.f32 %v1856, 39.9995
        %v2117 = vmul.f32 %v1857, 39.9995
        %v2118 = vmul.f32 %v1858, 39.9995
        %v2119 = vmul.f32 %v1859, 39.9995
        %v2120 = vmul.f32 %v1860, 39.9995
        %v2121 = vmul.f32 %v1861, 39.9995
        %v2122 = vmul.f32 %v1862, 39.9995
        %v2123 = vmul.f32 %v1863, 39.9995
        %v2124 = vmul.f32 %v1864, 39.9995
        %v2125 = vmul.f32 %v1865, 39.9995
        %v2126 = vmul.f32 %v1866, 39.9995
        %v2127 = vmul.f32 %v1867, 39.9995
        %v2128 = vmul.f32 %v1868, 39.9995
        %v2129 = vmul.f32 %v1869, 39.9995
        %v2130 = vmul.f32 %v1870, 39.9995
        %v2131 = vmul.f32 %v1871, 39.9995
        %v2132 = vmul.f32 %v1872, 39.9995
        %v2133 = vmul.f32 %v1873, 39.9995
        %v2134 = vmul.f32 %v1874, 39.9995
        %v2135 = vmul.f32 %v1875, 39.9995
        %v2136 = vmul.f32 %v1876, 39.9995
        %v2137 = vmul.f32 %v1877, 39.9995
        %v2138 = vmul.f32 %v1878, 39.9995
        %v2139 = vmul.f32 %v1879, 39.9995
        %v2140 = vmul.f32 %v1880, 39.9995
        %v2141 = vmul.f32 %v1881, 39.9995
        %v2142 = vmul.f32 %v1882, 39.9995
        %v2143 = vmul.f32 %v1883, 39.9995
        %v2144 = vmul.f32 %v1884, 39.9995
        %v2145 = vmul.f32 %v1885, 39.9995
        %v2146 = vmul.f32 %v1886, 39.9995
        %v2147 = vmul.f32 %v1887, 39.9995
        %v2148 = vmul.f32 %v1888, 39.9995
        %v2149 = vmul.f32 %v1889, 39.9995
        %v2150 = vmul.f32 %v1890, 39.9995
        %v2151 = vmul.f32 %v1891, 39.9995
        %v2152 = vmul.f32 %v1892, 39.9995
        %v2153 = vmul.f32 %v1893, 39.9995
        %v2154 = vmul.f32 %v1894, 39.9995
        %v2155 = vmul.f32 %v1895, 39.9995
        %v2156 = vmul.f32 %v1896, 39.9995
        %v2157 = vmul.f32 %v1897, 39.9995
        %v2158 = vmul.f32 %v1898, 39.9995
        %v2159 = vmul.f32 %v1899, 39.9995
        %v2160 = vmul.f32 %v1900, 39.9995
        %v2161 = vmul.f32 %v1901, 39.9995
        %v2162 = vmul.f32 %v1902, 39.9995
        %v2163 = vmul.f32 %v1903, 39.9995
        %v2164 = vmul.f32 %v1904, 39.9995
        %v2165 = vmul.f32 %v1905, 39.9995
        %v2166 = vmul.f32 %v1906, 39.9995
        %v2167 = vmul.f32 %v1907, 39.9995
        %v2168 = vmul.f32 %v1908, 39.9995
        %v2169 = vmul.f32 %v1909, 39.9995
        %v2170 = vmul.f32 %v1910, 39.9995
        %v2171 = vmul.f32 %v1911, 39.9995
        %v2172 = vmul.f32 %v1912, 39.9995
        %v2173 = vmul.f32 %v1913, 39.9995
        %v2174 = vmul.f32 %v1914, 39.9995
        %v2175 = vmul.f32 %v1915, 39.9995
        %v2176 = vmul.f32 %v1916, 39.9995
        %v2177 = vmul.f32 %v1917, 39.9995
        %v2178 = vmul.f32 %v1918, 39.9995
        %v2179 = vmul.f32 %v1919, 39.9995
        %v2180 = vmul.f32 %v1920, 39.9995
        %v2181 = vmul.f32 %v1921, 39.9995
        %v2182 = vmul.f32 %v1922, 39.9995
        %v2183 = vmul.f32 %v1923, 39.9995
        %v2184 = vmul.f32 %v1924, 39.9995
        %v2185 = vmul.f32 %v1925, 39.9995
        %v2186 = vmul.f32 %v1926, 39.9995
        %v2187 = vmul.f32 %v1927, 39.9995
        %v2188 = vmul.f32 %v1928, 39.9995
        %v2189 = vmul.f32 %v1929, 39.9995
        %v2190 = vmul.f32 %v1930, 39.9995
        %v2191 = vmul.f32 %v1931, 39.9995
        %v2192 = vmul.f32 %v1932, 39.9995
        %v2193 = vmul.f32 %v1933, 39.9995
        %v2194 = vmul.f32 %v1934, 39.9995
        %v2195 = vmul.f32 %v1935, 39.9995
        %v2196 = vmul.f32 %v1936, 39.9995
        %v2197 = vmul.f32 %v1937, 39.9995
        %v2198 = vmul.f32 %v1938, 39.9995
        %v2199 = vmul.f32 %v1939, 39.9995
        %v2200 = vmul.f32 %v1940, 39.9995
        %v2201 = vmul.f32 %v1941, 39.9995
        %v2202 = vmul.f32 %v1942, 39.9995
        %v2203 = vmul.f32 %v1943, 39.9995
        %v2204 = vmul.f32 %v1944, 39.9995
        %v2205 = vmul.f32 %v1945, 39.9995
        %v2206 = vmul.f32 %v1946, 39.9995
        %v2207 = vmul.f32 %v1947, 39.9995
        %v2208 = vmul.f32 %v1948, 39.9995
        %v2209 = vmul.f32 %v1949, 39.9995
        %v2210 = vmul.f32 %v1950, 39.9995
        %v2211 = vmul.f32 %v1951, 39.9995
        %v2212 = vmul.f32 %v1952, 39.9995
        %v2213 = vmul.f32 %v1953, 39.9995
        %v2214 = vmul.f32 %v1954, 39.9995
        %v2215 = vmul.f32 %v1955, 39.9995
        %v2216 = vmul.f32 %v1956, 39.9995
        %v2217 = vmul.f32 %v1957, 39.9995
        %v2218 = vmul.f32 %v1958, 39.9995
        %v2219 = vmul.f32 %v1959, 39.9995
        %v2220 = vmul.f32 %v1960, 39.9995
        %v2221 = vmul.f32 %v1961, 39.9995
        %v2222 = vmul.f32 %v1962, 39.9995
        %v2223 = vmul.f32 %v1963, 39.9995
        %v2224 = vmul.f32 %v1964, 39.9995
        %v2225 = vmul.f32 %v1965, 39.9995
        %v2226 = vmul.f32 %v1966, 39.9995
        %v2227 = vmul.f32 %v1967, 39.9995
        %v2228 = vmul.f32 %v1968, 39.9995
        %v2229 = vmul.f32 %v1969, 39.9995
        %v2230 = vmul.f32 %v1970, 39.9995
        %v2231 = vmul.f32 %v1971, 39.9995
        %v2232 = vmul.f32 %v1972, 39.9995
        %v2233 = vmul.f32 %v1973, 39.9995
        %v2234 = vmul.f32 %v1974, 39.9995
        %v2235 = vmul.f32 %v1975, 39.9995
        %v2236 = vmul.f32 %v1976, 39.9995
        %v2237 = vmul.f32 %v1977, 39.9995
        %v2238 = vmul.f32 %v1978, 39.9995
        %v2239 = vmul.f32 %v1979, 39.9995
        %v2240 = vmul.f32 %v1980, 39.9995
        %v2241 = vmul.f32 %v1981, 39.9995
        %v2242 = vmul.f32 %v1982, 39.9995
        %v2243 = vmul.f32 %v1983, 39.9995
        %v2244 = vmul.f32 %v1984, 39.9995
        %v2245 = vmul.f32 %v1985, 39.9995
        %v2246 = vmul.f32 %v1986, 39.9995
        %v2247 = vmul.f32 %v1987, 39.9995
        %v2248 = vmul.f32 %v1988, 39.9995
        %v2249 = vmul.f32 %v1989, 39.9995
        %v2250 = vmul.f32 %v1990, 39.9995
        %v2251 = vmul.f32 %v1991, 39.9995
        %v2252 = vmul.f32 %v1992, 39.9995
        %v2253 = vmul.f32 %v1993, 39.9995
        %v2254 = vmul.f32 %v1994, 39.9995
        %v2255 = vmul.f32 %v1995, 39.9995
        %v2256 = vmul.f32 %v1996, 39.9995
        %v2257 = vmul.f32 %v1997, 39.9995
        %v2258 = vmul.f32 %v1998, 39.9995
        %v2259 = vmul.f32 %v1999, 39.9995
        %v2260 = vmul.f32 %v2000, 39.9995
        %v2261 = vmul.f32 %v2001, 39.9995
        %v2262 = vmul.f32 %v2002, 39.9995
        %v2263 = vmul.f32 %v2003, 39.9995
        %v2264 = vmul.f32 %v2004, 39.9995
        %v2265 = vmul.f32 %v2005, 39.9995
        %v2266 = vmul.f32 %v2006, 39.9995
        %v2267 = vmul.f32 %v2007, 39.9995
        %v2268 = vmul.f32 %v2008, 39.9995
        %v2269 = vmul.f32 %v2009, 39.9995
        %v2270 = vmul.f32 %v2010, 39.9995
        %v2271 = vmul.f32 %v2011, 39.9995
        %v2272 = vmul.f32 %v2012, 39.9995
        %v2273 = vmul.f32 %v2013, 39.9995
        %v2274 = vmul.f32 %v2014, 39.9995
        %v2275 = vmul.f32 %v2015, 39.9995
        %v2276 = vmul.f32 %v2016, 39.9995
        %v2277 = vmul.f32 %v2017, 39.9995
        %v2278 = vmul.f32 %v2018, 39.9995
        %v2279 = vmul.f32 %v2019, 39.9995
        %v2280 = vmul.f32 %v2020, 39.9995
        %v2281 = vmul.f32 %v2021, 39.9995
        %v2282 = vmul.f32 %v2022, 39.9995
        %v2283 = vmul.f32 %v2023, 39.9995
        %v2284 = vmul.f32 %v2024, 39.9995
        %v2285 = vmul.f32 %v2025, 39.9995
        %v2286 = vmul.f32 %v2026, 39.9995
        %v2287 = vmul.f32 %v2027, 39.9995
        %v2288 = vmul.f32 %v2028, 39.9995
        %v2289 = vmul.f32 %v2029, 39.9995
        %v2290 = vmul.f32 %v2030, 39.9995
        %v2291 = vmul.f32 %v2031, 39.9995
        %v2292 = vmul.f32 %v2032, 39.9995
        %v2293 = vmul.f32 %v2033, 39.9995
        %v2294 = vmul.f32 %v2034, 39.9995
        %v2295 = vmul.f32 %v2035, 39.9995
        %v2296 = vmul.f32 %v2036, 39.9995
        %v2297 = vmul.f32 %v2037, 39.9995
        %v2298 = vmul.f32 %v2038, 39.9995
        %v2299 = vmul.f32 %v2039, 39.9995
        %v2300 = vmul.f32 %v2040, 39.9995
        %v2301 = vmul.f32 %v2041, 39.9995
        %v2302 = vmul.f32 %v2042, 39.9995
        %v2303 = vmul.f32 %v2043, 39.9995
        %v2304 = vmul.f32 %v2044, 39.9995
        %v2305 = vmul.f32 %v2045, 39.9995
        %v2306 = vmul.f32 %v2046, 39.9995
        %v2307 = vmul.f32 %v2047, 39.9995
        %v2308 = vmul.f32 %v2048, 39.9995
        %v2309 = vmul.f32 %v2049, 39.9995
        %v2310 = vmul.f32 %v2050, 39.9995
        %v2311 = vmul.f32 %v2051, 39.9995
        %v2312 = vmul.f32 %v2052, 39.9995
        %v2313 = vmul.f32 %v2053, 39.9995
        %v2314 = vmul.f32 %v2054, 39.9995
        %v2315 = vmul.f32 %v2055, 39.9995
        %v2316 = vmul.f32 %v2056, 39.9995
        %v2317 = vmul.f32 %v2057, 39.9995
        %v2318 = vmul.f32 %v2058, 39.9995
        %v2319 = vmul.f32 %v2059, 39.9995
        %v2320 = vmul.f32 %v2060, 39.9995
        %v2321 = vmul.f32 %v2061, 39.9995
        %v2322 = vmul.f32 %v2062, 39.9995
        %v2323 = vmul.f32 %v2063, 39.9995
        %v2324 = vmul.f32 %v2064, 39.9995
        %v2325 = vmul.f32 %v2065, 39.9995
        %v2326 = vmul.f32 %v2066, 39.9995
        %v2327 = vmul.f32 %v2067, 39.9995
        %v2328 = vmul.f32 %v2068, 39.9995
        %v2329 = vmul.f32 %v2069, 39.9995
        %v2330 = vmul.f32 %v2070, 39.9995
        %v2331 = vmul.f32 %v2071, 39.9995
        %v2332 = vmul.f32 %v2072, 39.9995
        %v2333 = vmul.f32 %v2073, 39.9995
        %v2334 = vmul.f32 %v2074, 39.9995
        %v2335 = vmul.f32 %v2075, 39.9995
        %v2336 = vmul.f32 %v2076, 39.9995
        %v2337 = vmul.f32 %v2077, 39.9995
        %v2338 = vmul.f32 %v2078, 39.9995
        %v2339 = vmul.f32 %v2079, 39.9995
        %v2340 = vmul.f32 %v2080, 39.9995
        %v2341 = vmul.f32 %v2081, 39.9995
        %v2342 = vmul.f32 %v2082, 39.9995
        %v2343 = vmul.f32 %v2083, 39.9995
        %v2344 = vmul.f32 %v2084, 39.9995
        %v2345 = vmul.f32 %v2085, 39.9995
        %v2346 = vmul.f32 %v2086, 39.9995
        %v2347 = vmul.f32 %v2087, 39.9995
        %v2348 = vmul.f32 %v2088, 39.9995
        %v2349 = vmul.f32 %v2089, 39.9995
        %v2350 = vmul.f32 %v2090, 39.9995
        %v2351 = vmul.f32 %v2091, 39.9995
        %v2352 = vmul.f32 %v2092, 39.9995
        %v2353 = vmul.f32 %v2093, 39.9995
        %v2354 = vmul.f32 %v2094, 39.9995
        %v2355 = vmul.f32 %v2095, 39.9995
        %v2356 = vmul.f32 %v2096, 39.9995
        %v2357 = vmul.f32 %v2097, 39.9995
        %v2358 = vmul.f32 %v2098, 39.9995
        %v2359 = vmul.f32 %v2099, 39.9995
        %v2360 = vmul.f32 %v2100, 39.9995
        %v2361 = vmul.f32 %v2101, 39.9995
        %v2362 = vmul.f32 %v2102, 39.9995
        %v2363 = vmul.f32 %v2103, 39.9995
        %v2364 = vmul.f32 %v2104, 39.9995
        %v2365 = vmul.f32 %v2105, 39.9995
        %v2366 = vmul.f32 %v2106, 39.9995
        %v2367 = vmul.f32 %v2107, 39.9995
        %v2368 = vmul.f32 %v2108, 39.9995
        %v2369 = vmul.f32 %v2109, 39.9995
        %v2370 = vmul.f32 %v2110, 39.9995
        %v2371 = vadd.f32 %v2111, 40.0005
        %v2372 = vadd.f32 %v2112, 40.0005
        %v2373 = vadd.f32 %v2113, 40.0005
        %v2374 = vadd.f32 %v2114, 40.0005
        %v2375 = vadd.f32 %v2115, 40.0005
        %v2376 = vadd.f32 %v2116, 40.0005
        %v2377 = vadd.f32 %v2117, 40.0005
        %v2378 = vadd.f32 %v2118, 40.0005
        %v2379 = vadd.f32 %v2119, 40.0005
        %v2380 = vadd.f32 %v2120, 40.0005
        %v2381 = vadd.f32 %v2121, 40.0005
        %v2382 = vadd.f32 %v2122, 40.0005
        %v2383 = vadd.f32 %v2123, 40.0005
        %v2384 = vadd.f32 %v2124, 40.0005
        %v2385 = vadd.f32 %v2125, 40.0005
        %v2386 = vadd.f32 %v2126, 40.0005
        %v2387 = vadd.f32 %v2127, 40.0005
        %v2388 = vadd.f32 %v2128, 40.0005
        %v2389 = vadd.f32 %v2129, 40.0005
        %v2390 = vadd.f32 %v2130, 40.0005
        %v2391 = vadd.f32 %v2131, 40.0005
        %v2392 = vadd.f32 %v2132, 40.0005
        %v2393 = vadd.f32 %v2133, 40.0005
        %v2394 = vadd.f32 %v2134, 40.0005
        %v2395 = vadd.f32 %v2135, 40.0005
        %v2396 = vadd.f32 %v2136, 40.0005
        %v2397 = vadd.f32 %v2137, 40.0005
        %v2398 = vadd.f32 %v2138, 40.0005
        %v2399 = vadd.f32 %v2139, 40.0005
        %v2400 = vadd.f32 %v2140, 40.0005
        %v2401 = vadd.f32 %v2141, 40.0005
        %v2402 = vadd.f32 %v2142, 40.0005
        %v2403 = vadd.f32 %v2143, 40.0005
        %v2404 = vadd.f32 %v2144, 40.0005
        %v2405 = vadd.f32 %v2145, 40.0005
        %v2406 = vadd.f32 %v2146, 40.0005
        %v2407 = vadd.f32 %v2147, 40.0005
        %v2408 = vadd.f32 %v2148, 40.0005
        %v2409 = vadd.f32 %v2149, 40.0005
        %v2410 = vadd.f32 %v2150, 40.0005
        %v2411 = vadd.f32 %v2151, 40.0005
        %v2412 = vadd.f32 %v2152, 40.0005
        %v2413 = vadd.f32 %v2153, 40.0005
        %v2414 = vadd.f32 %v2154, 40.0005
        %v2415 = vadd.f32 %v2155, 40.0005
        %v2416 = vadd.f32 %v2156, 40.0005
        %v2417 = vadd.f32 %v2157, 40.0005
        %v2418 = vadd.f32 %v2158, 40.0005
        %v2419 = vadd.f32 %v2159, 40.0005
        %v2420 = vadd.f32 %v2160, 40.0005
        %v2421 = vadd.f32 %v2161, 40.0005
        %v2422 = vadd.f32 %v2162, 40.0005
        %v2423 = vadd.f32 %v2163, 40.0005
        %v2424 = vadd.f32 %v2164, 40.0005
        %v2425 = vadd.f32 %v2165, 40.0005
        %v2426 = vadd.f32 %v2166, 40.0005
        %v2427 = vadd.f32 %v2167, 40.0005
        %v2428 = vadd.f32 %v2168, 40.0005
        %v2429 = vadd.f32 %v2169, 40.0005
        %v2430 = vadd.f32 %v2170, 40.0005
        %v2431 = vadd.f32 %v2171, 40.0005
        %v2432 = vadd.f32 %v2172, 40.0005
        %v2433 = vadd.f32 %v2173, 40.0005
        %v2434 = vadd.f32 %v2174, 40.0005
        %v2435 = vadd.f32 %v2175, 40.0005
        %v2436 = vadd.f32 %v2176, 40.0005
        %v2437 = vadd.f32 %v2177, 40.0005
        %v2438 = vadd.f32 %v2178, 40.0005
        %v2439 = vadd.f32 %v2179, 40.0005
        %v2440 = vadd.f32 %v2180, 40.0005
        %v2441 = vadd.f32 %v2181, 40.0005
        %v2442 = vadd.f32 %v2182, 40.0005
        %v2443 = vadd.f32 %v2183, 40.0005
        %v2444 = vadd.f32 %v2184, 40.0005
        %v2445 = vadd.f32 %v2185, 40.0005
        %v2446 = vadd.f32 %v2186, 40.0005
        %v2447 = vadd.f32 %v2187, 40.0005
        %v2448 = vadd.f32 %v2188, 40.0005
        %v2449 = vadd.f32 %v2189, 40.0005
        %v2450 = vadd.f32 %v2190, 40.0005
        %v2451 = vadd.f32 %v2191, 40.0005
        %v2452 = vadd.f32 %v2192, 40.0005
        %v2453 = vadd.f32 %v2193, 40.0005
        %v2454 = vadd.f32 %v2194, 40.0005
        %v2455 = vadd.f32 %v2195, 40.0005
        %v2456 = vadd.f32 %v2196, 40.0005
        %v2457 = vadd.f32 %v2197, 40.0005
        %v2458 = vadd.f32 %v2198, 40.0005
        %v2459 = vadd.f32 %v2199, 40.0005
        %v2460 = vadd.f32 %v2200, 40.0005
        %v2461 = vadd.f32 %v2201, 40.0005
        %v2462 = vadd.f32 %v2202, 40.0005
        %v2463 = vadd.f32 %v2203, 40.0005
        %v2464 = vadd.f32 %v2204, 40.0005
        %v2465 = vadd.f32 %v2205, 40.0005
        %v2466 = vadd.f32 %v2206, 40.0005
        %v2467 = vadd.f32 %v2207, 40.0005
        %v2468 = vadd.f32 %v2208, 40.0005
        %v2469 = vadd.f32 %v2209, 40.0005
        %v2470 = vadd.f32 %v2210, 40.0005
        %v2471 = vadd.f32 %v2211, 40.0005
        %v2472 = vadd.f32 %v2212, 40.0005
        %v2473 = vadd.f32 %v2213, 40.0005
        %v2474 = vadd.f32 %v2214, 40.0005
        %v2475 = vadd.f32 %v2215, 40.0005
        %v2476 = vadd.f32 %v2216, 40.0005
        %v2477 = vadd.f32 %v2217, 40.0005
        %v2478 = vadd.f32 %v2218, 40.0005
        %v2479 = vadd.f32 %v2219, 40.0005
        %v2480 = vadd.f32 %v2220, 40.0005
        %v2481 = vadd.f32 %v2221, 40.0005
        %v2482 = vadd.f32 %v2222, 40.0005
        %v2483 = vadd.f32 %v2223, 40.0005
        %v2484 = vadd.f32 %v2224, 40.0005
        %v2485 = vadd.f32 %v2225, 40.0005
        %v2486 = vadd.f32 %v2226, 40.0005
        %v2487 = vadd.f32 %v2227, 40.0005
        %v2488 = vadd.f32 %v2228, 40.0005
        %v2489 = vadd.f32 %v2229, 40.0005
        %v2490 = vadd.f32 %v2230, 40.0005
        %v2491 = vadd.f32 %v2231, 40.0005
        %v2492 = vadd.f32 %v2232, 40.0005
        %v2493 = vadd.f32 %v2233, 40.0005
        %v2494 = vadd.f32 %v2234, 40.0005
        %v2495 = vadd.f32 %v2235, 40.0005
        %v2496 = vadd.f32 %v2236, 40.0005
        %v2497 = vadd.f32 %v2237, 40.0005
        %v2498 = vadd.f32 %v2238, 40.0005
        %v2499 = vadd.f32 %v2239, 40.0005
        %v2500 = vadd.f32 %v2240, 40.0005
        %v2501 = vadd.f32 %v2241, 40.0005
        %v2502 = vadd.f32 %v2242, 40.0005
        %v2503 = vadd.f32 %v2243, 40.0005
        %v2504 = vadd.f32 %v2244, 40.0005
        %v2505 = vadd.f32 %v2245, 40.0005
        %v2506 = vadd.f32 %v2246, 40.0005
        %v2507 = vadd.f32 %v2247, 40.0005
        %v2508 = vadd.f32 %v2248, 40.0005
        %v2509 = vadd.f32 %v2249, 40.0005
        %v2510 = vadd.f32 %v2250, 40.0005
        %v2511 = vadd.f32 %v2251, 40.0005
        %v2512 = vadd.f32 %v2252, 40.0005
        %v2513 = vadd.f32 %v2253, 40.0005
        %v2514 = vadd.f32 %v2254, 40.0005
        %v2515 = vadd.f32 %v2255, 40.0005
        %v2516 = vadd.f32 %v2256, 40.0005
        %v2517 = vadd.f32 %v2257, 40.0005
        %v2518 = vadd.f32 %v2258, 40.0005
        %v2519 = vadd.f32 %v2259, 40.0005
        %v2520 = vadd.f32 %v2260, 40.0005
        %v2521 = vadd.f32 %v2261, 40.0005
        %v2522 = vadd.f32 %v2262, 40.0005
        %v2523 = vadd.f32 %v2263, 40.0005
        %v2524 = vadd.f32 %v2264, 40.0005
        %v2525 = vadd.f32 %v2265, 40.0005
        %v2526 = vadd.f32 %v2266, 40.0005
        %v2527 = vadd.f32 %v2267, 40.0005
        %v2528 = vadd.f32 %v2268, 40.0005
        %v2529 = vadd.f32 %v2269, 40.0005
        %v2530 = vadd.f32 %v2270, 40.0005
        %v2531 = vadd.f32 %v2271, 40.0005
        %v2532 = vadd.f32 %v2272, 40.0005
        %v2533 = vadd.f32 %v2273, 40.0005
        %v2534 = vadd.f32 %v2274, 40.0005
        %v2535 = vadd.f32 %v2275, 40.0005
        %v2536 = vadd.f32 %v2276, 40.0005
        %v2537 = vadd.f32 %v2277, 40.0005
        %v2538 = vadd.f32 %v2278, 40.0005
        %v2539 = vadd.f32 %v2279, 40.0005
        %v2540 = vadd.f32 %v2280, 40.0005
        %v2541 = vadd.f32 %v2281, 40.0005
        %v2542 = vadd.f32 %v2282, 40.0005
        %v2543 = vadd.f32 %v2283, 40.0005
        %v2544 = vadd.f32 %v2284, 40.0005
        %v2545 = vadd.f32 %v2285, 40.0005
        %v2546 = vadd.f32 %v2286, 40.0005
        %v2547 = vadd.f32 %v2287, 40.0005
        %v2548 = vadd.f32 %v2288, 40.0005
        %v2549 = vadd.f32 %v2289, 40.0005
        %v2550 = vadd.f32 %v2290, 40.0005
        %v2551 = vadd.f32 %v2291, 40.0005
        %v2552 = vadd.f32 %v2292, 40.0005
        %v2553 = vadd.f32 %v2293, 40.0005
        %v2554 = vadd.f32 %v2294, 40.0005
        %v2555 = vadd.f32 %v2295, 40.0005
        %v2556 = vadd.f32 %v2296, 40.0005
        %v2557 = vadd.f32 %v2297, 40.0005
        %v2558 = vadd.f32 %v2298, 40.0005
        %v2559 = vadd.f32 %v2299, 40.0005
        %v2560 = vadd.f32 %v2300, 40.0005
        %v2561 = vadd.f32 %v2301, 40.0005
        %v2562 = vadd.f32 %v2302, 40.0005
        %v2563 = vadd.f32 %v2303, 40.0005
        %v2564 = vadd.f32 %v2304, 40.0005
        %v2565 = vadd.f32 %v2305, 40.0005
        %v2566 = vadd.f32 %v2306, 40.0005
        %v2567 = vadd.f32 %v2307, 40.0005
        %v2568 = vadd.f32 %v2308, 40.0005
        %v2569 = vadd.f32 %v2309, 40.0005
        %v2570 = vadd.f32 %v2310, 40.0005
        %v2571 = vadd.f32 %v2311, 40.0005
        %v2572 = vadd.f32 %v2312, 40.0005
        %v2573 = vadd.f32 %v2313, 40.0005
        %v2574 = vadd.f32 %v2314, 40.0005
        %v2575 = vadd.f32 %v2315, 40.0005
        %v2576 = vadd.f32 %v2316, 40.0005
        %v2577 = vadd.f32 %v2317, 40.0005
        %v2578 = vadd.f32 %v2318, 40.0005
        %v2579 = vadd.f32 %v2319, 40.0005
        %v2580 = vadd.f32 %v2320, 40.0005
        %v2581 = vadd.f32 %v2321, 40.0005
        %v2582 = vadd.f32 %v2322, 40.0005
        %v2583 = vadd.f32 %v2323, 40.0005
        %v2584 = vadd.f32 %v2324, 40.0005
        %v2585 = vadd.f32 %v2325, 40.0005
        %v2586 = vadd.f32 %v2326, 40.0005
        %v2587 = vadd.f32 %v2327, 40.0005
        %v2588 = vadd.f32 %v2328, 40.0005
        %v2589 = vadd.f32 %v2329, 40.0005
        %v2590 = vadd.f32 %v2330, 40.0005
        %v2591 = vadd.f32 %v2331, 40.0005
        %v2592 = vadd.f32 %v2332, 40.0005
        %v2593 = vadd.f32 %v2333, 40.0005
        %v2594 = vadd.f32 %v2334, 40.0005
        %v2595 = vadd.f32 %v2335, 40.0005
        %v2596 = vadd.f32 %v2336, 40.0005
        %v2597 = vadd.f32 %v2337, 40.0005
        %v2598 = vadd.f32 %v2338, 40.0005
        %v2599 = vadd.f32 %v2339, 40.0005
        %v2600 = vadd.f32 %v2340, 40.0005
        %v2601 = vadd.f32 %v2341, 40.0005
        %v2602 = vadd.f32 %v2342, 40.0005
        %v2603 = vadd.f32 %v2343, 40.0005
        %v2604 = vadd.f32 %v2344, 40.0005
        %v2605 = vadd.f32 %v2345, 40.0005
        %v2606 = vadd.f32 %v2346, 40.0005
        %v2607 = vadd.f32 %v2347, 40.0005
        %v2608 = vadd.f32 %v2348, 40.0005
        %v2609 = vadd.f32 %v2349, 40.0005
        %v2610 = vadd.f32 %v2350, 40.0005
        %v2611 = vadd.f32 %v2351, 40.0005
        %v2612 = vadd.f32 %v2352, 40.0005
        %v2613 = vadd.f32 %v2353, 40.0005
        %v2614 = vadd.f32 %v2354, 40.0005
        %v2615 = vadd.f32 %v2355, 40.0005
        %v2616 = vadd.f32 %v2356, 40.0005
        %v2617 = vadd.f32 %v2357, 40.0005
        %v2618 = vadd.f32 %v2358, 40.0005
        %v2619 = vadd.f32 %v2359, 40.0005
        %v2620 = vadd.f32 %v2360, 40.0005
        %v2621 = vadd.f32 %v2361, 40.0005
        %v2622 = vadd.f32 %v2362, 40.0005
        %v2623 = vadd.f32 %v2363, 40.0005
        %v2624 = vadd.f32 %v2364, 40.0005
        %v2625 = vadd.f32 %v2365, 40.0005
        %v2626 = vadd.f32 %v2366, 40.0005
        %v2627 = vadd.f32 %v2367, 40.0005
        %v2628 = vadd.f32 %v2368, 40.0005
        %v2629 = vadd.f32 %v2369, 40.0005
        %v2630 = vadd.f32 %v2370, 40.0005
        %v2631 = vld [vmem:[%s4] sm:$0xff]
        %v2632 = vld [vmem:[%s4 + $0x8] sm:$0xff]
        %v2633 = vld [vmem:[%s4 + $0x10] sm:$0xff]
        %v2634 = vld [vmem:[%s4 + $0x18] sm:$0xff]
        %v2635 = vpack.c.bf16 %v2376, %v2371
        %v2636 = vpack.c.bf16 %v2377, %v2372
        %v2637 = vpack.c.bf16 %v2378, %v2373
        %v2638 = vpack.c.bf16 %v2379, %v2374
        %v2639 = vpack.c.bf16 %v2380, %v2375
        %v2640 = vpack.c.bf16 %v2386, %v2381
        %v2641 = vpack.c.bf16 %v2387, %v2382
        %v2642 = vpack.c.bf16 %v2388, %v2383
        %v2643 = vpack.c.bf16 %v2389, %v2384
        %v2644 = vpack.c.bf16 %v2390, %v2385
        %v2645 = vpack.c.bf16 %v2396, %v2391
        %v2646 = vpack.c.bf16 %v2397, %v2392
        %v2647 = vpack.c.bf16 %v2398, %v2393
        %v2648 = vpack.c.bf16 %v2399, %v2394
        %v2649 = vpack.c.bf16 %v2400, %v2395
        %v2650 = vpack.c.bf16 %v2406, %v2401
        %v2651 = vpack.c.bf16 %v2407, %v2402
        %v2652 = vpack.c.bf16 %v2408, %v2403
        %v2653 = vpack.c.bf16 %v2409, %v2404
        %v2654 = vpack.c.bf16 %v2410, %v2405
        %v2655 = vpack.c.bf16 %v2416, %v2411
        %v2656 = vpack.c.bf16 %v2417, %v2412
        %v2657 = vpack.c.bf16 %v2418, %v2413
        %v2658 = vpack.c.bf16 %v2419, %v2414
        %v2659 = vpack.c.bf16 %v2420, %v2415
        %v2660 = vpack.c.bf16 %v2426, %v2421
        %v2661 = vpack.c.bf16 %v2427, %v2422
        %v2662 = vpack.c.bf16 %v2428, %v2423
        %v2663 = vpack.c.bf16 %v2429, %v2424
        %v2664 = vpack.c.bf16 %v2430, %v2425
        %v2665 = vpack.c.bf16 %v2436, %v2431
        %v2666 = vpack.c.bf16 %v2437, %v2432
        %v2667 = vpack.c.bf16 %v2438, %v2433
        %v2668 = vpack.c.bf16 %v2439, %v2434
        %v2669 = vpack.c.bf16 %v2440, %v2435
        %v2670 = vpack.c.bf16 %v2446, %v2441
        %v2671 = vpack.c.bf16 %v2447, %v2442
        %v2672 = vpack.c.bf16 %v2448, %v2443
        %v2673 = vpack.c.bf16 %v2449, %v2444
        %v2674 = vpack.c.bf16 %v2450, %v2445
        %v2675 = vpack.c.bf16 %v2456, %v2451
        %v2676 = vpack.c.bf16 %v2457, %v2452
        %v2677 = vpack.c.bf16 %v2458, %v2453
        %v2678 = vpack.c.bf16 %v2459, %v2454
        %v2679 = vpack.c.bf16 %v2460, %v2455
        %v2680 = vpack.c.bf16 %v2466, %v2461
        %v2681 = vpack.c.bf16 %v2467, %v2462
        %v2682 = vpack.c.bf16 %v2468, %v2463
        %v2683 = vpack.c.bf16 %v2469, %v2464
        %v2684 = vpack.c.bf16 %v2470, %v2465
        %v2685 = vpack.c.bf16 %v2476, %v2471
        %v2686 = vpack.c.bf16 %v2477, %v2472
        %v2687 = vpack.c.bf16 %v2478, %v2473
        %v2688 = vpack.c.bf16 %v2479, %v2474
        %v2689 = vpack.c.bf16 %v2480, %v2475
        %v2690 = vpack.c.bf16 %v2486, %v2481
        %v2691 = vpack.c.bf16 %v2487, %v2482
        %v2692 = vpack.c.bf16 %v2488, %v2483
        %v2693 = vpack.c.bf16 %v2489, %v2484
        %v2694 = vpack.c.bf16 %v2490, %v2485
        %v2695 = vpack.c.bf16 %v2496, %v2491
        %v2696 = vpack.c.bf16 %v2497, %v2492
        %v2697 = vpack.c.bf16 %v2498, %v2493
        %v2698 = vpack.c.bf16 %v2499, %v2494
        %v2699 = vpack.c.bf16 %v2500, %v2495
        %v2700 = vpack.c.bf16 %v2506, %v2501
        %v2701 = vpack.c.bf16 %v2507, %v2502
        %v2702 = vpack.c.bf16 %v2508, %v2503
        %v2703 = vpack.c.bf16 %v2509, %v2504
        %v2704 = vpack.c.bf16 %v2510, %v2505
        %v2705 = vpack.c.bf16 %v2516, %v2511
        %v2706 = vpack.c.bf16 %v2517, %v2512
        %v2707 = vpack.c.bf16 %v2518, %v2513
        %v2708 = vpack.c.bf16 %v2519, %v2514
        %v2709 = vpack.c.bf16 %v2520, %v2515
        %v2710 = vpack.c.bf16 %v2526, %v2521
        %v2711 = vpack.c.bf16 %v2527, %v2522
        %v2712 = vpack.c.bf16 %v2528, %v2523
        %v2713 = vpack.c.bf16 %v2529, %v2524
        %v2714 = vpack.c.bf16 %v2530, %v2525
        %v2715 = vpack.c.bf16 %v2536, %v2531
        %v2716 = vpack.c.bf16 %v2537, %v2532
        %v2717 = vpack.c.bf16 %v2538, %v2533
        %v2718 = vpack.c.bf16 %v2539, %v2534
        %v2719 = vpack.c.bf16 %v2540, %v2535
        %v2720 = vpack.c.bf16 %v2546, %v2541
        %v2721 = vpack.c.bf16 %v2547, %v2542
        %v2722 = vpack.c.bf16 %v2548, %v2543
        %v2723 = vpack.c.bf16 %v2549, %v2544
        %v2724 = vpack.c.bf16 %v2550, %v2545
        %v2725 = vpack.c.bf16 %v2556, %v2551
        %v2726 = vpack.c.bf16 %v2557, %v2552
        %v2727 = vpack.c.bf16 %v2558, %v2553
        %v2728 = vpack.c.bf16 %v2559, %v2554
        %v2729 = vpack.c.bf16 %v2560, %v2555
        %v2730 = vpack.c.bf16 %v2566, %v2561
        %v2731 = vpack.c.bf16 %v2567, %v2562
        %v2732 = vpack.c.bf16 %v2568, %v2563
        %v2733 = vpack.c.bf16 %v2569, %v2564
        %v2734 = vpack.c.bf16 %v2570, %v2565
        %v2735 = vpack.c.bf16 %v2576, %v2571
        %v2736 = vpack.c.bf16 %v2577, %v2572
        %v2737 = vpack.c.bf16 %v2578, %v2573
        %v2738 = vpack.c.bf16 %v2579, %v2574
        %v2739 = vpack.c.bf16 %v2580, %v2575
        %v2740 = vpack.c.bf16 %v2586, %v2581
        %v2741 = vpack.c.bf16 %v2587, %v2582
        %v2742 = vpack.c.bf16 %v2588, %v2583
        %v2743 = vpack.c.bf16 %v2589, %v2584
        %v2744 = vpack.c.bf16 %v2590, %v2585
        %v2745 = vpack.c.bf16 %v2596, %v2591
        %v2746 = vpack.c.bf16 %v2597, %v2592
        %v2747 = vpack.c.bf16 %v2598, %v2593
        %v2748 = vpack.c.bf16 %v2599, %v2594
        %v2749 = vpack.c.bf16 %v2600, %v2595
        %v2750 = vpack.c.bf16 %v2606, %v2601
        %v2751 = vpack.c.bf16 %v2607, %v2602
        %v2752 = vpack.c.bf16 %v2608, %v2603
        %v2753 = vpack.c.bf16 %v2609, %v2604
        %v2754 = vpack.c.bf16 %v2610, %v2605
        %v2755 = vpack.c.bf16 %v2616, %v2611
        %v2756 = vpack.c.bf16 %v2617, %v2612
        %v2757 = vpack.c.bf16 %v2618, %v2613
        %v2758 = vpack.c.bf16 %v2619, %v2614
        %v2759 = vpack.c.bf16 %v2620, %v2615
        %v2760 = vpack.c.bf16 %v2626, %v2621
        %v2761 = vpack.c.bf16 %v2627, %v2622
        %v2762 = vpack.c.bf16 %v2628, %v2623
        %v2763 = vpack.c.bf16 %v2629, %v2624
        %v2764 = vpack.c.bf16 %v2630, %v2625
        %v2769 = vunpack.c.l.b16 %v2631
        %v2770 = vunpack.c.h.b16 %v2631
        %v2771 = vunpack.c.l.b16 %v2632
        %v2772 = vunpack.c.h.b16 %v2632
        %v2773 = vunpack.c.l.b16 %v2633
        %v2774 = vunpack.c.h.b16 %v2633
        %v2775 = vunpack.c.l.b16 %v2634
        %v2776 = vunpack.c.h.b16 %v2634
        %v2777 = vpack.c.b16 %v2773, %v2769
        %v2778 = vpack.c.b16 %v2774, %v2770
        %v2779 = vpack.c.b16 %v2775, %v2771
        %v2780 = vpack.c.b16 %v2776, %v2772
        %vm2784 = vcmask 261120
        %v2786 = vsel %vm2784, %v2780, 0
        %2788 = vmatprep.subr.bf16.mxu0 %v2671
        %2789 = vmatpush1.bf16.msra.mxu0 %v2670
        %2790 = vmatprep.subr.bf16.mxu0 %v2666
        %2791 = vmatpush1.bf16.msra.mxu0 %v2665
        %2792 = vmatprep.subr.bf16.mxu0 %v2661
        %2793 = vmatpush1.bf16.msra.mxu0 %v2660
        %2794 = vmatprep.subr.bf16.mxu0 %v2656
        %2795 = vmatpush1.bf16.msra.mxu0 %v2655
        %2796 = vmatprep.subr.bf16.mxu0 %v2651
        %2797 = vmatpush1.bf16.msra.mxu0 %v2650
        %2798 = vmatprep.subr.bf16.mxu0 %v2646
        %2799 = vmatpush1.bf16.msra.mxu0 %v2645
        %2800 = vmatprep.subr.bf16.mxu0 %v2641
        %2801 = vmatpush1.bf16.msra.mxu0 %v2640
        %2802 = vmatprep.subr.bf16.mxu0 %v2636
        %2803 = vmatpush1.bf16.msra.mxu0 %v2635
        %2804 = vmatprep.subr.bf16.mxu0 %v2711
        %2805 = vmatpush2.bf16.msra.mxu0 %v2710
        %2806 = vmatprep.subr.bf16.mxu0 %v2706
        %2807 = vmatpush2.bf16.msra.mxu0 %v2705
        %2808 = vmatprep.subr.bf16.mxu0 %v2701
        %2809 = vmatpush2.bf16.msra.mxu0 %v2700
        %2810 = vmatprep.subr.bf16.mxu0 %v2696
        %2811 = vmatpush2.bf16.msra.mxu0 %v2695
        %2812 = vmatprep.subr.bf16.mxu0 %v2691
        %2813 = vmatpush2.bf16.msra.mxu0 %v2690
        %2814 = vmatprep.subr.bf16.mxu0 %v2686
        %2815 = vmatpush2.bf16.msra.mxu0 %v2685
        %2816 = vmatprep.subr.bf16.mxu0 %v2681
        %2817 = vmatpush2.bf16.msra.mxu0 %v2680
        %2818 = vmatprep.subr.bf16.mxu0 %v2676
        %2819 = vmatpush2.bf16.msra.mxu0 %v2675
        %2820 = vmatprep.mubr.bf16.mxu0 %v2778
        %2821 = vmatmul.mubr.bf16.gmra.mxu0 %v2777
        %v2822 = vpop.f32.mrf.mxu0
        %v2823 = vadd.f32 0.0, %v2822
        %v2824 = vpop.f32.mrf.mxu0
        %v2825 = vadd.f32 0.0, %v2824
        %v2826 = vpop.f32.mrf.mxu0
        %v2827 = vadd.f32 0.0, %v2826
        %v2828 = vpop.f32.mrf.mxu0
        %v2829 = vadd.f32 0.0, %v2828
        %2830 = vdwg.mxu0
        %2831 = vmatprep.subr.bf16.mxu0 %v2751
        %2832 = vmatpush1.bf16.msra.mxu0 %v2750
        %2833 = vmatprep.subr.bf16.mxu0 %v2746
        %2834 = vmatpush1.bf16.msra.mxu0 %v2745
        %2835 = vmatprep.subr.bf16.mxu0 %v2741
        %2836 = vmatpush1.bf16.msra.mxu0 %v2740
        %2837 = vmatprep.subr.bf16.mxu0 %v2736
        %2838 = vmatpush1.bf16.msra.mxu0 %v2735
        %2839 = vmatprep.subr.bf16.mxu0 %v2731
        %2840 = vmatpush1.bf16.msra.mxu0 %v2730
        %2841 = vmatprep.subr.bf16.mxu0 %v2726
        %2842 = vmatpush1.bf16.msra.mxu0 %v2725
        %2843 = vmatprep.subr.bf16.mxu0 %v2721
        %2844 = vmatpush1.bf16.msra.mxu0 %v2720
        %2845 = vmatprep.subr.bf16.mxu0 %v2716
        %2846 = vmatpush1.bf16.msra.mxu0 %v2715
        %2847 = vmatprep.subr.bf16.mxu0 0
        %2848 = vmatpush2.bf16.msra.mxu0 0
        %2849 = vmatprep.subr.bf16.mxu0 0
        %2850 = vmatpush2.bf16.msra.mxu0 0
        %2851 = vmatprep.subr.bf16.mxu0 0
        %2852 = vmatpush2.bf16.msra.mxu0 0
        %2853 = vmatprep.subr.bf16.mxu0 0
        %2854 = vmatpush2.bf16.msra.mxu0 0
        %2855 = vmatprep.subr.bf16.mxu0 0
        %2856 = vmatpush2.bf16.msra.mxu0 0
        %2857 = vmatprep.subr.bf16.mxu0 0
        %2858 = vmatpush2.bf16.msra.mxu0 0
        %2859 = vmatprep.subr.bf16.mxu0 %v2761
        %2860 = vmatpush2.bf16.msra.mxu0 %v2760
        %2861 = vmatprep.subr.bf16.mxu0 %v2756
        %2862 = vmatpush2.bf16.msra.mxu0 %v2755
        %2863 = vmatprep.mubr.bf16.mxu0 %v2786
        %2864 = vmatmul.mubr.bf16.gmra.mxu0 %v2779
        %v2865 = vpop.f32.mrf.mxu0
        %v2866 = vadd.f32 %v2823, %v2865
        %v2867 = vpop.f32.mrf.mxu0
        %v2868 = vadd.f32 %v2825, %v2867
        %v2869 = vpop.f32.mrf.mxu0
        %v2870 = vadd.f32 %v2827, %v2869
        %v2871 = vpop.f32.mrf.mxu0
        %v2872 = vadd.f32 %v2829, %v2871
        %2873 = vdwg.mxu0
        %2874 = vmatprep.subr.bf16.mxu0 %v2673
        %2875 = vmatpush1.bf16.msra.mxu0 %v2672
        %2876 = vmatprep.subr.bf16.mxu0 %v2668
        %2877 = vmatpush1.bf16.msra.mxu0 %v2667
        %2878 = vmatprep.subr.bf16.mxu0 %v2663
        %2879 = vmatpush1.bf16.msra.mxu0 %v2662
        %2880 = vmatprep.subr.bf16.mxu0 %v2658
        %2881 = vmatpush1.bf16.msra.mxu0 %v2657
        %2882 = vmatprep.subr.bf16.mxu0 %v2653
        %2883 = vmatpush1.bf16.msra.mxu0 %v2652
        %2884 = vmatprep.subr.bf16.mxu0 %v2648
        %2885 = vmatpush1.bf16.msra.mxu0 %v2647
        %2886 = vmatprep.subr.bf16.mxu0 %v2643
        %2887 = vmatpush1.bf16.msra.mxu0 %v2642
        %2888 = vmatprep.subr.bf16.mxu0 %v2638
        %2889 = vmatpush1.bf16.msra.mxu0 %v2637
        %2890 = vmatprep.subr.bf16.mxu0 %v2713
        %2891 = vmatpush2.bf16.msra.mxu0 %v2712
        %2892 = vmatprep.subr.bf16.mxu0 %v2708
        %2893 = vmatpush2.bf16.msra.mxu0 %v2707
        %2894 = vmatprep.subr.bf16.mxu0 %v2703
        %2895 = vmatpush2.bf16.msra.mxu0 %v2702
        %2896 = vmatprep.subr.bf16.mxu0 %v2698
        %2897 = vmatpush2.bf16.msra.mxu0 %v2697
        %2898 = vmatprep.subr.bf16.mxu0 %v2693
        %2899 = vmatpush2.bf16.msra.mxu0 %v2692
        %2900 = vmatprep.subr.bf16.mxu0 %v2688
        %2901 = vmatpush2.bf16.msra.mxu0 %v2687
        %2902 = vmatprep.subr.bf16.mxu0 %v2683
        %2903 = vmatpush2.bf16.msra.mxu0 %v2682
        %2904 = vmatprep.subr.bf16.mxu0 %v2678
        %2905 = vmatpush2.bf16.msra.mxu0 %v2677
        %2906 = vmatprep.mubr.bf16.mxu0 %v2778
        %2907 = vmatmul.mubr.bf16.gmra.mxu0 %v2777
        %v2908 = vpop.f32.mrf.mxu0
        %v2909 = vadd.f32 0.0, %v2908
        %v2910 = vpop.f32.mrf.mxu0
        %v2911 = vadd.f32 0.0, %v2910
        %v2912 = vpop.f32.mrf.mxu0
        %v2913 = vadd.f32 0.0, %v2912
        %v2914 = vpop.f32.mrf.mxu0
        %v2915 = vadd.f32 0.0, %v2914
        %2916 = vdwg.mxu0
        %2917 = vmatprep.subr.bf16.mxu0 %v2753
        %2918 = vmatpush1.bf16.msra.mxu0 %v2752
        %2919 = vmatprep.subr.bf16.mxu0 %v2748
        %2920 = vmatpush1.bf16.msra.mxu0 %v2747
        %2921 = vmatprep.subr.bf16.mxu0 %v2743
        %2922 = vmatpush1.bf16.msra.mxu0 %v2742
        %2923 = vmatprep.subr.bf16.mxu0 %v2738
        %2924 = vmatpush1.bf16.msra.mxu0 %v2737
        %2925 = vmatprep.subr.bf16.mxu0 %v2733
        %2926 = vmatpush1.bf16.msra.mxu0 %v2732
        %2927 = vmatprep.subr.bf16.mxu0 %v2728
        %2928 = vmatpush1.bf16.msra.mxu0 %v2727
        %2929 = vmatprep.subr.bf16.mxu0 %v2723
        %2930 = vmatpush1.bf16.msra.mxu0 %v2722
        %2931 = vmatprep.subr.bf16.mxu0 %v2718
        %2932 = vmatpush1.bf16.msra.mxu0 %v2717
        %2933 = vmatprep.subr.bf16.mxu0 0
        %2934 = vmatpush2.bf16.msra.mxu0 0
        %2935 = vmatprep.subr.bf16.mxu0 0
        %2936 = vmatpush2.bf16.msra.mxu0 0
        %2937 = vmatprep.subr.bf16.mxu0 0
        %2938 = vmatpush2.bf16.msra.mxu0 0
        %2939 = vmatprep.subr.bf16.mxu0 0
        %2940 = vmatpush2.bf16.msra.mxu0 0
        %2941 = vmatprep.subr.bf16.mxu0 0
        %2942 = vmatpush2.bf16.msra.mxu0 0
        %2943 = vmatprep.subr.bf16.mxu0 0
        %2944 = vmatpush2.bf16.msra.mxu0 0
        %2945 = vmatprep.subr.bf16.mxu0 %v2763
        %2946 = vmatpush2.bf16.msra.mxu0 %v2762
        %2947 = vmatprep.subr.bf16.mxu0 %v2758
        %2948 = vmatpush2.bf16.msra.mxu0 %v2757
        %2949 = vmatprep.mubr.bf16.mxu0 %v2786
        %2950 = vmatmul.mubr.bf16.gmra.mxu0 %v2779
        %v2951 = vpop.f32.mrf.mxu0
        %v2952 = vadd.f32 %v2909, %v2951
        %v2953 = vpop.f32.mrf.mxu0
        %v2954 = vadd.f32 %v2911, %v2953
        %v2955 = vpop.f32.mrf.mxu0
        %v2956 = vadd.f32 %v2913, %v2955
        %v2957 = vpop.f32.mrf.mxu0
        %v2958 = vadd.f32 %v2915, %v2957
        %2959 = vdwg.mxu0
        %2960 = vmatprep.subr.bf16.mxu0 0
        %2961 = vmatpush1.bf16.msra.mxu0 %v2674
        %2962 = vmatprep.subr.bf16.mxu0 0
        %2963 = vmatpush1.bf16.msra.mxu0 %v2669
        %2964 = vmatprep.subr.bf16.mxu0 0
        %2965 = vmatpush1.bf16.msra.mxu0 %v2664
        %2966 = vmatprep.subr.bf16.mxu0 0
        %2967 = vmatpush1.bf16.msra.mxu0 %v2659
        %2968 = vmatprep.subr.bf16.mxu0 0
        %2969 = vmatpush1.bf16.msra.mxu0 %v2654
        %2970 = vmatprep.subr.bf16.mxu0 0
        %2971 = vmatpush1.bf16.msra.mxu0 %v2649
        %2972 = vmatprep.subr.bf16.mxu0 0
        %2973 = vmatpush1.bf16.msra.mxu0 %v2644
        %2974 = vmatprep.subr.bf16.mxu0 0
        %2975 = vmatpush1.bf16.msra.mxu0 %v2639
        %2976 = vmatprep.subr.bf16.mxu0 0
        %2977 = vmatpush2.bf16.msra.mxu0 %v2714
        %2978 = vmatprep.subr.bf16.mxu0 0
        %2979 = vmatpush2.bf16.msra.mxu0 %v2709
        %2980 = vmatprep.subr.bf16.mxu0 0
        %2981 = vmatpush2.bf16.msra.mxu0 %v2704
        %2982 = vmatprep.subr.bf16.mxu0 0
        %2983 = vmatpush2.bf16.msra.mxu0 %v2699
        %2984 = vmatprep.subr.bf16.mxu0 0
        %2985 = vmatpush2.bf16.msra.mxu0 %v2694
        %2986 = vmatprep.subr.bf16.mxu0 0
        %2987 = vmatpush2.bf16.msra.mxu0 %v2689
        %2988 = vmatprep.subr.bf16.mxu0 0
        %2989 = vmatpush2.bf16.msra.mxu0 %v2684
        %2990 = vmatprep.subr.bf16.mxu0 0
        %2991 = vmatpush2.bf16.msra.mxu0 %v2679
        %2992 = vmatprep.mubr.bf16.mxu0 %v2778
        %2993 = vmatmul.mubr.bf16.gmra.mxu0 %v2777
        %v2994 = vpop.f32.mrf.mxu0
        %v2995 = vadd.f32 0.0, %v2994
        %v2996 = vpop.f32.mrf.mxu0
        %v2997 = vpop.f32.mrf.mxu0
        %v2998 = vadd.f32 0.0, %v2997
        %v2999 = vpop.f32.mrf.mxu0
        %3000 = vdwg.mxu0
        %3001 = vmatprep.subr.bf16.mxu0 0
        %3002 = vmatpush1.bf16.msra.mxu0 %v2754
        %3003 = vmatprep.subr.bf16.mxu0 0
        %3004 = vmatpush1.bf16.msra.mxu0 %v2749
        %3005 = vmatprep.subr.bf16.mxu0 0
        %3006 = vmatpush1.bf16.msra.mxu0 %v2744
        %3007 = vmatprep.subr.bf16.mxu0 0
        %3008 = vmatpush1.bf16.msra.mxu0 %v2739
        %3009 = vmatprep.subr.bf16.mxu0 0
        %3010 = vmatpush1.bf16.msra.mxu0 %v2734
        %3011 = vmatprep.subr.bf16.mxu0 0
        %3012 = vmatpush1.bf16.msra.mxu0 %v2729
        %3013 = vmatprep.subr.bf16.mxu0 0
        %3014 = vmatpush1.bf16.msra.mxu0 %v2724
        %3015 = vmatprep.subr.bf16.mxu0 0
        %3016 = vmatpush1.bf16.msra.mxu0 %v2719
        %3017 = vmatprep.subr.bf16.mxu0 0
        %3018 = vmatpush2.bf16.msra.mxu0 0
        %3019 = vmatprep.subr.bf16.mxu0 0
        %3020 = vmatpush2.bf16.msra.mxu0 0
        %3021 = vmatprep.subr.bf16.mxu0 0
        %3022 = vmatpush2.bf16.msra.mxu0 0
        %3023 = vmatprep.subr.bf16.mxu0 0
        %3024 = vmatpush2.bf16.msra.mxu0 0
        %3025 = vmatprep.subr.bf16.mxu0 0
        %3026 = vmatpush2.bf16.msra.mxu0 0
        %3027 = vmatprep.subr.bf16.mxu0 0
        %3028 = vmatpush2.bf16.msra.mxu0 0
        %3029 = vmatprep.subr.bf16.mxu0 0
        %3030 = vmatpush2.bf16.msra.mxu0 %v2764
        %3031 = vmatprep.subr.bf16.mxu0 0
        %3032 = vmatpush2.bf16.msra.mxu0 %v2759
        %3033 = vmatprep.mubr.bf16.mxu0 %v2786
        %3034 = vmatmul.mubr.bf16.gmra.mxu0 %v2779
        %v3035 = vpop.f32.mrf.mxu0
        %v3036 = vadd.f32 %v2995, %v3035
        %v3037 = vpop.f32.mrf.mxu0
        %v3038 = vpop.f32.mrf.mxu0
        %v3039 = vadd.f32 %v2998, %v3038
        %v3040 = vpop.f32.mrf.mxu0
        %3041 = vdwg.mxu0
        %v3042 = vpack.c.bf16 %v2870, %v2866
        %v3043 = vpack.c.bf16 %v2872, %v2868
        %v3044 = vpack.c.bf16 %v2956, %v2952
        %v3045 = vpack.c.bf16 %v2958, %v2954
        %v3046 = vpack.c.bf16 %v3039, %v3036
        %v3052 = vunpack.c.l.b16 %v3042
        %v3053 = vunpack.c.l.b16 %v3043
        %v3054 = vunpack.c.l.b16 %v3044
        %v3055 = vunpack.c.l.b16 %v3045
        %v3056 = vunpack.c.l.b16 %v3046
        %v3057 = vunpack.c.h.b16 %v3042
        %v3058 = vunpack.c.h.b16 %v3043
        %v3059 = vunpack.c.h.b16 %v3044
        %v3060 = vunpack.c.h.b16 %v3045
        %v3061 = vunpack.c.h.b16 %v3046
        %v3062 = vpack.c.b16 %v3053, %v3052
        %v3063 = vpack.c.b16 %v3055, %v3054
        %v3064 = vpack.c.b16 %v3056, %v3056
        %v3065 = vpack.c.b16 %v3058, %v3057
        %v3066 = vpack.c.b16 %v3060, %v3059
        %v3067 = vpack.c.b16 %v3061, %v3061
        %3074 = vst [vmem:[#allocation2] sm:$0xff] %v3062
        %3075 = vst [vmem:[#allocation2 + $0x8] sm:$0xff] %v3063
        %vm3076 = vcmask 257024
        %3077 = vst.msk [vmem:[#allocation2 + $0x10] sm:$0xf] %vm3076, %v3064
        %3078 = vst [vmem:[#allocation2 + $0x28] sm:$0xff] %v3065
        %3079 = vst [vmem:[#allocation2 + $0x30] sm:$0xff] %v3066
        %3080 = vst.msk [vmem:[#allocation2 + $0x38] sm:$0xf] %vm3076, %v3067
        %v3081 = vmul.f32 %v305, 0.33
        %v3082 = vmul.f32 %v306, 0.33
        %v3083 = vmul.f32 %v308, 0.33
        %v3084 = vmul.f32 %v309, 0.33
        %v3085 = vadd.f32 %v3081, %v3083
        %v3086 = vadd.f32 %v3082, %v3084
        %v3087 = vmul.f32 %v311, 0.34
        %v3088 = vmul.f32 %v312, 0.34
        %v3089 = vadd.f32 %v3085, %v3087
        %v3090 = vadd.f32 %v3086, %v3088
        %v3091 = vadd.f32 %v3089, 0.0
        %v3092 = vadd.f32 %v3090, 0.0
        %v3093 = vpack.c.bf16 %v3092, %v3091
        %v3094 = vld [vmem:[%s3] sm:$0xff]
        %v3095 = vld [vmem:[%s3 + $0x8] sm:$0xff]
        %v3096 = vld [vmem:[%s3 + $0x10] sm:$0xf]
        %v3097 = vld [vmem:[%s3 + $0x14] sm:$0xff]
        %v3098 = vld [vmem:[%s3 + $0x1c] sm:$0xff]
        %v3099 = vld [vmem:[%s3 + $0x24] sm:$0xf]
        %v3106 = vunpack.c.l.b16 %v3094
        %v3107 = vunpack.c.h.b16 %v3094
        %v3108 = vunpack.c.l.b16 %v3095
        %v3109 = vunpack.c.h.b16 %v3095
        %v3110 = vunpack.c.l.b16 %v3096
        %v3111 = vunpack.c.l.b16 %v3097
        %v3112 = vunpack.c.h.b16 %v3097
        %v3113 = vunpack.c.l.b16 %v3098
        %v3114 = vunpack.c.h.b16 %v3098
        %v3115 = vunpack.c.l.b16 %v3099
        %v3116 = vpack.c.b16 %v3111, %v3106
        %v3117 = vpack.c.b16 %v3112, %v3107
        %v3118 = vpack.c.b16 %v3113, %v3108
        %v3119 = vpack.c.b16 %v3114, %v3109
        %v3120 = vpack.c.b16 %v3115, %v3110
        %v3127 = vsel %vm368, %v3093, 0
        %3129 = vmatprep.subr.bf16.mxu0 0
        %3130 = vmatpush1.bf16.msra.mxu0 0
        %3131 = vmatprep.subr.bf16.mxu0 0
        %3132 = vmatpush1.bf16.msra.mxu0 0
        %3133 = vmatprep.subr.bf16.mxu0 0
        %3134 = vmatpush1.bf16.msra.mxu0 0
        %3135 = vmatprep.subr.bf16.mxu0 0
        %3136 = vmatpush1.bf16.msra.mxu0 0
        %3137 = vmatprep.subr.bf16.mxu0 0
        %3138 = vmatpush1.bf16.msra.mxu0 0
        %3139 = vmatprep.subr.bf16.mxu0 0
        %3140 = vmatpush1.bf16.msra.mxu0 0
        %3141 = vmatprep.subr.bf16.mxu0 0
        %3142 = vmatpush1.bf16.msra.mxu0 0
        %3143 = vmatprep.subr.bf16.mxu0 %v3117
        %3144 = vmatpush1.bf16.msra.mxu0 %v3116
        %3145 = vmatprep.subr.bf16.mxu0 0
        %3146 = vmatpush2.bf16.msra.mxu0 0
        %3147 = vmatprep.subr.bf16.mxu0 0
        %3148 = vmatpush2.bf16.msra.mxu0 0
        %3149 = vmatprep.subr.bf16.mxu0 0
        %3150 = vmatpush2.bf16.msra.mxu0 0
        %3151 = vmatprep.subr.bf16.mxu0 0
        %3152 = vmatpush2.bf16.msra.mxu0 0
        %3153 = vmatprep.subr.bf16.mxu0 0
        %3154 = vmatpush2.bf16.msra.mxu0 0
        %3155 = vmatprep.subr.bf16.mxu0 0
        %3156 = vmatpush2.bf16.msra.mxu0 0
        %3157 = vmatprep.subr.bf16.mxu0 0
        %3158 = vmatpush2.bf16.msra.mxu0 0
        %3159 = vmatprep.subr.bf16.mxu0 0
        %3160 = vmatpush2.bf16.msra.mxu0 0
        %3161 = vmatprep.mubr.bf16.mxu0 0
        %3162 = vmatmul.mubr.bf16.gmra.mxu0 %v3127
        %v3163 = vpop.f32.mrf.mxu0
        %v3164 = vadd.f32 0.0, %v3163
        %v3165 = vpop.f32.mrf.mxu0
        %v3166 = vadd.f32 0.0, %v3165
        %v3167 = vpop.f32.mrf.mxu0
        %v3168 = vadd.f32 0.0, %v3167
        %v3169 = vpop.f32.mrf.mxu0
        %v3170 = vadd.f32 0.0, %v3169
        %3171 = vdwg.mxu0
        %3172 = vmatprep.subr.bf16.mxu0 0
        %3173 = vmatpush1.bf16.msra.mxu0 0
        %3174 = vmatprep.subr.bf16.mxu0 0
        %3175 = vmatpush1.bf16.msra.mxu0 0
        %3176 = vmatprep.subr.bf16.mxu0 0
        %3177 = vmatpush1.bf16.msra.mxu0 0
        %3178 = vmatprep.subr.bf16.mxu0 0
        %3179 = vmatpush1.bf16.msra.mxu0 0
        %3180 = vmatprep.subr.bf16.mxu0 0
        %3181 = vmatpush1.bf16.msra.mxu0 0
        %3182 = vmatprep.subr.bf16.mxu0 0
        %3183 = vmatpush1.bf16.msra.mxu0 0
        %3184 = vmatprep.subr.bf16.mxu0 0
        %3185 = vmatpush1.bf16.msra.mxu0 0
        %3186 = vmatprep.subr.bf16.mxu0 %v3119
        %3187 = vmatpush1.bf16.msra.mxu0 %v3118
        %3188 = vmatprep.subr.bf16.mxu0 0
        %3189 = vmatpush2.bf16.msra.mxu0 0
        %3190 = vmatprep.subr.bf16.mxu0 0
        %3191 = vmatpush2.bf16.msra.mxu0 0
        %3192 = vmatprep.subr.bf16.mxu0 0
        %3193 = vmatpush2.bf16.msra.mxu0 0
        %3194 = vmatprep.subr.bf16.mxu0 0
        %3195 = vmatpush2.bf16.msra.mxu0 0
        %3196 = vmatprep.subr.bf16.mxu0 0
        %3197 = vmatpush2.bf16.msra.mxu0 0
        %3198 = vmatprep.subr.bf16.mxu0 0
        %3199 = vmatpush2.bf16.msra.mxu0 0
        %3200 = vmatprep.subr.bf16.mxu0 0
        %3201 = vmatpush2.bf16.msra.mxu0 0
        %3202 = vmatprep.subr.bf16.mxu0 0
        %3203 = vmatpush2.bf16.msra.mxu0 0
        %3204 = vmatprep.mubr.bf16.mxu0 0
        %3205 = vmatmul.mubr.bf16.gmra.mxu0 %v3127
        %v3206 = vpop.f32.mrf.mxu0
        %v3207 = vadd.f32 0.0, %v3206
        %v3208 = vpop.f32.mrf.mxu0
        %v3209 = vadd.f32 0.0, %v3208
        %v3210 = vpop.f32.mrf.mxu0
        %v3211 = vadd.f32 0.0, %v3210
        %v3212 = vpop.f32.mrf.mxu0
        %v3213 = vadd.f32 0.0, %v3212
        %3214 = vdwg.mxu0
        %3215 = vmatprep.subr.bf16.mxu0 0
        %3216 = vmatpush1.bf16.msra.mxu0 0
        %3217 = vmatprep.subr.bf16.mxu0 0
        %3218 = vmatpush1.bf16.msra.mxu0 0
        %3219 = vmatprep.subr.bf16.mxu0 0
        %3220 = vmatpush1.bf16.msra.mxu0 0
        %3221 = vmatprep.subr.bf16.mxu0 0
        %3222 = vmatpush1.bf16.msra.mxu0 0
        %3223 = vmatprep.subr.bf16.mxu0 0
        %3224 = vmatpush1.bf16.msra.mxu0 0
        %3225 = vmatprep.subr.bf16.mxu0 0
        %3226 = vmatpush1.bf16.msra.mxu0 0
        %3227 = vmatprep.subr.bf16.mxu0 0
        %3228 = vmatpush1.bf16.msra.mxu0 0
        %3229 = vmatprep.subr.bf16.mxu0 0
        %3230 = vmatpush1.bf16.msra.mxu0 %v3120
        %3231 = vmatprep.subr.bf16.mxu0 0
        %3232 = vmatpush2.bf16.msra.mxu0 0
        %3233 = vmatprep.subr.bf16.mxu0 0
        %3234 = vmatpush2.bf16.msra.mxu0 0
        %3235 = vmatprep.subr.bf16.mxu0 0
        %3236 = vmatpush2.bf16.msra.mxu0 0
        %3237 = vmatprep.subr.bf16.mxu0 0
        %3238 = vmatpush2.bf16.msra.mxu0 0
        %3239 = vmatprep.subr.bf16.mxu0 0
        %3240 = vmatpush2.bf16.msra.mxu0 0
        %3241 = vmatprep.subr.bf16.mxu0 0
        %3242 = vmatpush2.bf16.msra.mxu0 0
        %3243 = vmatprep.subr.bf16.mxu0 0
        %3244 = vmatpush2.bf16.msra.mxu0 0
        %3245 = vmatprep.subr.bf16.mxu0 0
        %3246 = vmatpush2.bf16.msra.mxu0 0
        %3247 = vmatprep.mubr.bf16.mxu0 0
        %3248 = vmatmul.mubr.bf16.gmra.mxu0 %v3127
        %v3249 = vpop.f32.mrf.mxu0
        %v3250 = vadd.f32 0.0, %v3249
        %v3251 = vpop.f32.mrf.mxu0
        %v3252 = vpop.f32.mrf.mxu0
        %v3253 = vadd.f32 0.0, %v3252
        %v3254 = vpop.f32.mrf.mxu0
        %3255 = vdwg.mxu0
        %v3256 = vld [vmem:[%s2] sm:$0xf]
        %v3257 = vld [vmem:[%s2 + $0x4] sm:$0xf]
        %v3258 = vld [vmem:[%s2 + $0x8] sm:$0xf]
        %v3259 = vld [vmem:[%s2 + $0xc] sm:$0xf]
        %v3260 = vld [vmem:[%s2 + $0x10] sm:$0xf]
        %v3261 = vld [vmem:[%s2 + $0x14] sm:$0xf]
        %v3262 = vld [vmem:[%s2 + $0x18] sm:$0xf]
        %v3263 = vld [vmem:[%s2 + $0x1c] sm:$0xf]
        %v3264 = vld [vmem:[%s2 + $0x20] sm:$0xf]
        %v3265 = vld [vmem:[%s2 + $0x24] sm:$0xf]
        %v3266 = vld [vmem:[%s2 + $0x28] sm:$0xf]
        %v3267 = vld [vmem:[%s2 + $0x2c] sm:$0xf]
        %v3268 = vld [vmem:[%s2 + $0x30] sm:$0xf]
        %v3269 = vld [vmem:[%s2 + $0x34] sm:$0xf]
        %v3270 = vld [vmem:[%s2 + $0x38] sm:$0xf]
        %v3271 = vld [vmem:[%s2 + $0x3c] sm:$0xf]
        %v3272 = vld [vmem:[%s2 + $0x40] sm:$0xf]
        %v3273 = vld [vmem:[%s2 + $0x44] sm:$0xf]
        %v3274 = vld [vmem:[%s2 + $0x48] sm:$0xf]
        %v3275 = vld [vmem:[%s2 + $0x4c] sm:$0xf]
        %v3276 = vld [vmem:[%s2 + $0x50] sm:$0xf]
        %v3277 = vld [vmem:[%s2 + $0x54] sm:$0xf]
        %v3278 = vld [vmem:[%s2 + $0x58] sm:$0xf]
        %v3279 = vld [vmem:[%s2 + $0x5c] sm:$0xf]
        %v3280 = vpack.c.bf16 %v3168, %v3164
        %v3281 = vpack.c.bf16 %v3170, %v3166
        %v3282 = vpack.c.bf16 %v3211, %v3207
        %v3283 = vpack.c.bf16 %v3213, %v3209
        %v3284 = vpack.c.bf16 %v3253, %v3250
        %v3309 = vunpack.c.l.b16 %v3256
        %v3310 = vunpack.c.l.b16 %v3257
        %v3311 = vunpack.c.l.b16 %v3258
        %v3312 = vunpack.c.l.b16 %v3259
        %v3313 = vunpack.c.l.b16 %v3260
        %v3314 = vunpack.c.l.b16 %v3261
        %v3315 = vunpack.c.l.b16 %v3262
        %v3316 = vunpack.c.l.b16 %v3263
        %v3317 = vunpack.c.l.b16 %v3264
        %v3318 = vunpack.c.l.b16 %v3265
        %v3319 = vunpack.c.l.b16 %v3266
        %v3320 = vunpack.c.l.b16 %v3267
        %v3321 = vunpack.c.l.b16 %v3268
        %v3322 = vunpack.c.l.b16 %v3269
        %v3323 = vunpack.c.l.b16 %v3270
        %v3324 = vunpack.c.l.b16 %v3271
        %v3325 = vunpack.c.l.b16 %v3272
        %v3326 = vunpack.c.l.b16 %v3273
        %v3327 = vunpack.c.l.b16 %v3274
        %v3328 = vunpack.c.l.b16 %v3275
        %v3329 = vunpack.c.l.b16 %v3276
        %v3330 = vunpack.c.l.b16 %v3277
        %v3331 = vunpack.c.l.b16 %v3278
        %v3332 = vunpack.c.l.b16 %v3279
        %v3333 = vpack.c.b16 %v3310, %v3309
        %v3334 = vpack.c.b16 %v3312, %v3311
        %v3335 = vpack.c.b16 %v3314, %v3313
        %v3336 = vpack.c.b16 %v3316, %v3315
        %v3337 = vpack.c.b16 %v3318, %v3317
        %v3338 = vpack.c.b16 %v3320, %v3319
        %v3339 = vpack.c.b16 %v3322, %v3321
        %v3340 = vpack.c.b16 %v3324, %v3323
        %v3341 = vpack.c.b16 %v3326, %v3325
        %v3342 = vpack.c.b16 %v3328, %v3327
        %v3343 = vpack.c.b16 %v3330, %v3329
        %v3344 = vpack.c.b16 %v3332, %v3331
        %v3346 = vsel %vm368, %v3333, 0
        %v3349 = vsel %vm368, %v3334, 0
        %v3352 = vsel %vm368, %v3335, 0
        %v3355 = vsel %vm368, %v3336, 0
        %v3358 = vsel %vm368, %v3337, 0
        %v3361 = vsel %vm368, %v3338, 0
        %v3364 = vsel %vm368, %v3339, 0
        %v3367 = vsel %vm368, %v3340, 0
        %v3370 = vsel %vm368, %v3341, 0
        %v3373 = vsel %vm368, %v3342, 0
        %v3376 = vsel %vm368, %v3343, 0
        %v3379 = vsel %vm368, %v3344, 0
        %3381 = vmatprep.subr.bf16.mxu0 0
        %3382 = vmatpush1.bf16.msra.mxu0 0
        %3383 = vmatprep.subr.bf16.mxu0 0
        %3384 = vmatpush1.bf16.msra.mxu0 0
        %3385 = vmatprep.subr.bf16.mxu0 0
        %3386 = vmatpush1.bf16.msra.mxu0 0
        %3387 = vmatprep.subr.bf16.mxu0 0
        %3388 = vmatpush1.bf16.msra.mxu0 0
        %3389 = vmatprep.subr.bf16.mxu0 0
        %3390 = vmatpush1.bf16.msra.mxu0 0
        %3391 = vmatprep.subr.bf16.mxu0 0
        %3392 = vmatpush1.bf16.msra.mxu0 0
        %3393 = vmatprep.subr.bf16.mxu0 0
        %3394 = vmatpush1.bf16.msra.mxu0 0
        %3395 = vmatprep.subr.bf16.mxu0 %v3281
        %3396 = vmatpush1.bf16.msra.mxu0 %v3280
        %3397 = vmatprep.subr.bf16.mxu0 0
        %3398 = vmatpush2.bf16.msra.mxu0 0
        %3399 = vmatprep.subr.bf16.mxu0 0
        %3400 = vmatpush2.bf16.msra.mxu0 0
        %3401 = vmatprep.subr.bf16.mxu0 0
        %3402 = vmatpush2.bf16.msra.mxu0 0
        %3403 = vmatprep.subr.bf16.mxu0 0
        %3404 = vmatpush2.bf16.msra.mxu0 0
        %3405 = vmatprep.subr.bf16.mxu0 0
        %3406 = vmatpush2.bf16.msra.mxu0 0
        %3407 = vmatprep.subr.bf16.mxu0 0
        %3408 = vmatpush2.bf16.msra.mxu0 0
        %3409 = vmatprep.subr.bf16.mxu0 0
        %3410 = vmatpush2.bf16.msra.mxu0 0
        %3411 = vmatprep.subr.bf16.mxu0 0
        %3412 = vmatpush2.bf16.msra.mxu0 0
        %3413 = vmatprep.mubr.bf16.mxu0 0
        %3414 = vmatmul.mubr.bf16.gmra.mxu0 %v3346
        %v3415 = vpop.f32.mrf.mxu0
        %v3416 = vadd.f32 0.0, %v3415
        %v3417 = vpop.f32.mrf.mxu0
        %v3418 = vadd.f32 0.0, %v3417
        %v3419 = vpop.f32.mrf.mxu0
        %v3420 = vadd.f32 0.0, %v3419
        %v3421 = vpop.f32.mrf.mxu0
        %v3422 = vadd.f32 0.0, %v3421
        %3423 = vmatprep.mubr.bf16.mxu0 0
        %3424 = vmatmul.mubr.bf16.gmra.mxu0 %v3349
        %v3425 = vpop.f32.mrf.mxu0
        %v3426 = vadd.f32 0.0, %v3425
        %v3427 = vpop.f32.mrf.mxu0
        %v3428 = vadd.f32 0.0, %v3427
        %v3429 = vpop.f32.mrf.mxu0
        %v3430 = vadd.f32 0.0, %v3429
        %v3431 = vpop.f32.mrf.mxu0
        %v3432 = vadd.f32 0.0, %v3431
        %3433 = vmatprep.mubr.bf16.mxu0 0
        %3434 = vmatmul.mubr.bf16.gmra.mxu0 %v3352
        %v3435 = vpop.f32.mrf.mxu0
        %v3436 = vadd.f32 0.0, %v3435
        %v3437 = vpop.f32.mrf.mxu0
        %v3438 = vadd.f32 0.0, %v3437
        %v3439 = vpop.f32.mrf.mxu0
        %v3440 = vadd.f32 0.0, %v3439
        %v3441 = vpop.f32.mrf.mxu0
        %v3442 = vadd.f32 0.0, %v3441
        %3443 = vmatprep.mubr.bf16.mxu0 0
        %3444 = vmatmul.mubr.bf16.gmra.mxu0 %v3355
        %v3445 = vpop.f32.mrf.mxu0
        %v3446 = vadd.f32 0.0, %v3445
        %v3447 = vpop.f32.mrf.mxu0
        %v3448 = vadd.f32 0.0, %v3447
        %v3449 = vpop.f32.mrf.mxu0
        %v3450 = vadd.f32 0.0, %v3449
        %v3451 = vpop.f32.mrf.mxu0
        %v3452 = vadd.f32 0.0, %v3451
        %3453 = vmatprep.mubr.bf16.mxu0 0
        %3454 = vmatmul.mubr.bf16.gmra.mxu0 %v3358
        %v3455 = vpop.f32.mrf.mxu0
        %v3456 = vadd.f32 0.0, %v3455
        %v3457 = vpop.f32.mrf.mxu0
        %v3458 = vadd.f32 0.0, %v3457
        %v3459 = vpop.f32.mrf.mxu0
        %v3460 = vadd.f32 0.0, %v3459
        %v3461 = vpop.f32.mrf.mxu0
        %v3462 = vadd.f32 0.0, %v3461
        %3463 = vmatprep.mubr.bf16.mxu0 0
        %3464 = vmatmul.mubr.bf16.gmra.mxu0 %v3361
        %v3465 = vpop.f32.mrf.mxu0
        %v3466 = vadd.f32 0.0, %v3465
        %v3467 = vpop.f32.mrf.mxu0
        %v3468 = vadd.f32 0.0, %v3467
        %v3469 = vpop.f32.mrf.mxu0
        %v3470 = vadd.f32 0.0, %v3469
        %v3471 = vpop.f32.mrf.mxu0
        %v3472 = vadd.f32 0.0, %v3471
        %3473 = vmatprep.mubr.bf16.mxu0 0
        %3474 = vmatmul.mubr.bf16.gmra.mxu0 %v3364
        %v3475 = vpop.f32.mrf.mxu0
        %v3476 = vadd.f32 0.0, %v3475
        %v3477 = vpop.f32.mrf.mxu0
        %v3478 = vadd.f32 0.0, %v3477
        %v3479 = vpop.f32.mrf.mxu0
        %v3480 = vadd.f32 0.0, %v3479
        %v3481 = vpop.f32.mrf.mxu0
        %v3482 = vadd.f32 0.0, %v3481
        %3483 = vmatprep.mubr.bf16.mxu0 0
        %3484 = vmatmul.mubr.bf16.gmra.mxu0 %v3367
        %v3485 = vpop.f32.mrf.mxu0
        %v3486 = vadd.f32 0.0, %v3485
        %v3487 = vpop.f32.mrf.mxu0
        %v3488 = vadd.f32 0.0, %v3487
        %v3489 = vpop.f32.mrf.mxu0
        %v3490 = vadd.f32 0.0, %v3489
        %v3491 = vpop.f32.mrf.mxu0
        %v3492 = vadd.f32 0.0, %v3491
        %3493 = vmatprep.mubr.bf16.mxu0 0
        %3494 = vmatmul.mubr.bf16.gmra.mxu0 %v3370
        %v3495 = vpop.f32.mrf.mxu0
        %v3496 = vadd.f32 0.0, %v3495
        %v3497 = vpop.f32.mrf.mxu0
        %v3498 = vadd.f32 0.0, %v3497
        %v3499 = vpop.f32.mrf.mxu0
        %v3500 = vadd.f32 0.0, %v3499
        %v3501 = vpop.f32.mrf.mxu0
        %v3502 = vadd.f32 0.0, %v3501
        %3503 = vmatprep.mubr.bf16.mxu0 0
        %3504 = vmatmul.mubr.bf16.gmra.mxu0 %v3373
        %v3505 = vpop.f32.mrf.mxu0
        %v3506 = vadd.f32 0.0, %v3505
        %v3507 = vpop.f32.mrf.mxu0
        %v3508 = vadd.f32 0.0, %v3507
        %v3509 = vpop.f32.mrf.mxu0
        %v3510 = vadd.f32 0.0, %v3509
        %v3511 = vpop.f32.mrf.mxu0
        %v3512 = vadd.f32 0.0, %v3511
        %3513 = vmatprep.mubr.bf16.mxu0 0
        %3514 = vmatmul.mubr.bf16.gmra.mxu0 %v3376
        %v3515 = vpop.f32.mrf.mxu0
        %v3516 = vadd.f32 0.0, %v3515
        %v3517 = vpop.f32.mrf.mxu0
        %v3518 = vadd.f32 0.0, %v3517
        %v3519 = vpop.f32.mrf.mxu0
        %v3520 = vadd.f32 0.0, %v3519
        %v3521 = vpop.f32.mrf.mxu0
        %v3522 = vadd.f32 0.0, %v3521
        %3523 = vmatprep.mubr.bf16.mxu0 0
        %3524 = vmatmul.mubr.bf16.gmra.mxu0 %v3379
        %v3525 = vpop.f32.mrf.mxu0
        %v3526 = vadd.f32 0.0, %v3525
        %v3527 = vpop.f32.mrf.mxu0
        %v3528 = vadd.f32 0.0, %v3527
        %v3529 = vpop.f32.mrf.mxu0
        %v3530 = vadd.f32 0.0, %v3529
        %v3531 = vpop.f32.mrf.mxu0
        %v3532 = vadd.f32 0.0, %v3531
        %3533 = vdwg.mxu0
        %3534 = vmatprep.subr.bf16.mxu0 0
        %3535 = vmatpush1.bf16.msra.mxu0 0
        %3536 = vmatprep.subr.bf16.mxu0 0
        %3537 = vmatpush1.bf16.msra.mxu0 0
        %3538 = vmatprep.subr.bf16.mxu0 0
        %3539 = vmatpush1.bf16.msra.mxu0 0
        %3540 = vmatprep.subr.bf16.mxu0 0
        %3541 = vmatpush1.bf16.msra.mxu0 0
        %3542 = vmatprep.subr.bf16.mxu0 0
        %3543 = vmatpush1.bf16.msra.mxu0 0
        %3544 = vmatprep.subr.bf16.mxu0 0
        %3545 = vmatpush1.bf16.msra.mxu0 0
        %3546 = vmatprep.subr.bf16.mxu0 0
        %3547 = vmatpush1.bf16.msra.mxu0 0
        %3548 = vmatprep.subr.bf16.mxu0 %v3283
        %3549 = vmatpush1.bf16.msra.mxu0 %v3282
        %3550 = vmatprep.subr.bf16.mxu0 0
        %3551 = vmatpush2.bf16.msra.mxu0 0
        %3552 = vmatprep.subr.bf16.mxu0 0
        %3553 = vmatpush2.bf16.msra.mxu0 0
        %3554 = vmatprep.subr.bf16.mxu0 0
        %3555 = vmatpush2.bf16.msra.mxu0 0
        %3556 = vmatprep.subr.bf16.mxu0 0
        %3557 = vmatpush2.bf16.msra.mxu0 0
        %3558 = vmatprep.subr.bf16.mxu0 0
        %3559 = vmatpush2.bf16.msra.mxu0 0
        %3560 = vmatprep.subr.bf16.mxu0 0
        %3561 = vmatpush2.bf16.msra.mxu0 0
        %3562 = vmatprep.subr.bf16.mxu0 0
        %3563 = vmatpush2.bf16.msra.mxu0 0
        %3564 = vmatprep.subr.bf16.mxu0 0
        %3565 = vmatpush2.bf16.msra.mxu0 0
        %3566 = vmatprep.mubr.bf16.mxu0 0
        %3567 = vmatmul.mubr.bf16.gmra.mxu0 %v3346
        %v3568 = vpop.f32.mrf.mxu0
        %v3569 = vadd.f32 0.0, %v3568
        %v3570 = vpop.f32.mrf.mxu0
        %v3571 = vadd.f32 0.0, %v3570
        %v3572 = vpop.f32.mrf.mxu0
        %v3573 = vadd.f32 0.0, %v3572
        %v3574 = vpop.f32.mrf.mxu0
        %v3575 = vadd.f32 0.0, %v3574
        %3576 = vmatprep.mubr.bf16.mxu0 0
        %3577 = vmatmul.mubr.bf16.gmra.mxu0 %v3349
        %v3578 = vpop.f32.mrf.mxu0
        %v3579 = vadd.f32 0.0, %v3578
        %v3580 = vpop.f32.mrf.mxu0
        %v3581 = vadd.f32 0.0, %v3580
        %v3582 = vpop.f32.mrf.mxu0
        %v3583 = vadd.f32 0.0, %v3582
        %v3584 = vpop.f32.mrf.mxu0
        %v3585 = vadd.f32 0.0, %v3584
        %3586 = vmatprep.mubr.bf16.mxu0 0
        %3587 = vmatmul.mubr.bf16.gmra.mxu0 %v3352
        %v3588 = vpop.f32.mrf.mxu0
        %v3589 = vadd.f32 0.0, %v3588
        %v3590 = vpop.f32.mrf.mxu0
        %v3591 = vadd.f32 0.0, %v3590
        %v3592 = vpop.f32.mrf.mxu0
        %v3593 = vadd.f32 0.0, %v3592
        %v3594 = vpop.f32.mrf.mxu0
        %v3595 = vadd.f32 0.0, %v3594
        %3596 = vmatprep.mubr.bf16.mxu0 0
        %3597 = vmatmul.mubr.bf16.gmra.mxu0 %v3355
        %v3598 = vpop.f32.mrf.mxu0
        %v3599 = vadd.f32 0.0, %v3598
        %v3600 = vpop.f32.mrf.mxu0
        %v3601 = vadd.f32 0.0, %v3600
        %v3602 = vpop.f32.mrf.mxu0
        %v3603 = vadd.f32 0.0, %v3602
        %v3604 = vpop.f32.mrf.mxu0
        %v3605 = vadd.f32 0.0, %v3604
        %3606 = vmatprep.mubr.bf16.mxu0 0
        %3607 = vmatmul.mubr.bf16.gmra.mxu0 %v3358
        %v3608 = vpop.f32.mrf.mxu0
        %v3609 = vadd.f32 0.0, %v3608
        %v3610 = vpop.f32.mrf.mxu0
        %v3611 = vadd.f32 0.0, %v3610
        %v3612 = vpop.f32.mrf.mxu0
        %v3613 = vadd.f32 0.0, %v3612
        %v3614 = vpop.f32.mrf.mxu0
        %v3615 = vadd.f32 0.0, %v3614
        %3616 = vmatprep.mubr.bf16.mxu0 0
        %3617 = vmatmul.mubr.bf16.gmra.mxu0 %v3361
        %v3618 = vpop.f32.mrf.mxu0
        %v3619 = vadd.f32 0.0, %v3618
        %v3620 = vpop.f32.mrf.mxu0
        %v3621 = vadd.f32 0.0, %v3620
        %v3622 = vpop.f32.mrf.mxu0
        %v3623 = vadd.f32 0.0, %v3622
        %v3624 = vpop.f32.mrf.mxu0
        %v3625 = vadd.f32 0.0, %v3624
        %3626 = vmatprep.mubr.bf16.mxu0 0
        %3627 = vmatmul.mubr.bf16.gmra.mxu0 %v3364
        %v3628 = vpop.f32.mrf.mxu0
        %v3629 = vadd.f32 0.0, %v3628
        %v3630 = vpop.f32.mrf.mxu0
        %v3631 = vadd.f32 0.0, %v3630
        %v3632 = vpop.f32.mrf.mxu0
        %v3633 = vadd.f32 0.0, %v3632
        %v3634 = vpop.f32.mrf.mxu0
        %v3635 = vadd.f32 0.0, %v3634
        %3636 = vmatprep.mubr.bf16.mxu0 0
        %3637 = vmatmul.mubr.bf16.gmra.mxu0 %v3367
        %v3638 = vpop.f32.mrf.mxu0
        %v3639 = vadd.f32 0.0, %v3638
        %v3640 = vpop.f32.mrf.mxu0
        %v3641 = vadd.f32 0.0, %v3640
        %v3642 = vpop.f32.mrf.mxu0
        %v3643 = vadd.f32 0.0, %v3642
        %v3644 = vpop.f32.mrf.mxu0
        %v3645 = vadd.f32 0.0, %v3644
        %3646 = vmatprep.mubr.bf16.mxu0 0
        %3647 = vmatmul.mubr.bf16.gmra.mxu0 %v3370
        %v3648 = vpop.f32.mrf.mxu0
        %v3649 = vadd.f32 0.0, %v3648
        %v3650 = vpop.f32.mrf.mxu0
        %v3651 = vadd.f32 0.0, %v3650
        %v3652 = vpop.f32.mrf.mxu0
        %v3653 = vadd.f32 0.0, %v3652
        %v3654 = vpop.f32.mrf.mxu0
        %v3655 = vadd.f32 0.0, %v3654
        %3656 = vmatprep.mubr.bf16.mxu0 0
        %3657 = vmatmul.mubr.bf16.gmra.mxu0 %v3373
        %v3658 = vpop.f32.mrf.mxu0
        %v3659 = vadd.f32 0.0, %v3658
        %v3660 = vpop.f32.mrf.mxu0
        %v3661 = vadd.f32 0.0, %v3660
        %v3662 = vpop.f32.mrf.mxu0
        %v3663 = vadd.f32 0.0, %v3662
        %v3664 = vpop.f32.mrf.mxu0
        %v3665 = vadd.f32 0.0, %v3664
        %3666 = vmatprep.mubr.bf16.mxu0 0
        %3667 = vmatmul.mubr.bf16.gmra.mxu0 %v3376
        %v3668 = vpop.f32.mrf.mxu0
        %v3669 = vadd.f32 0.0, %v3668
        %v3670 = vpop.f32.mrf.mxu0
        %v3671 = vadd.f32 0.0, %v3670
        %v3672 = vpop.f32.mrf.mxu0
        %v3673 = vadd.f32 0.0, %v3672
        %v3674 = vpop.f32.mrf.mxu0
        %v3675 = vadd.f32 0.0, %v3674
        %3676 = vmatprep.mubr.bf16.mxu0 0
        %3677 = vmatmul.mubr.bf16.gmra.mxu0 %v3379
        %v3678 = vpop.f32.mrf.mxu0
        %v3679 = vadd.f32 0.0, %v3678
        %v3680 = vpop.f32.mrf.mxu0
        %v3681 = vadd.f32 0.0, %v3680
        %v3682 = vpop.f32.mrf.mxu0
        %v3683 = vadd.f32 0.0, %v3682
        %v3684 = vpop.f32.mrf.mxu0
        %v3685 = vadd.f32 0.0, %v3684
        %3686 = vdwg.mxu0
        %3687 = vmatprep.subr.bf16.mxu0 0
        %3688 = vmatpush1.bf16.msra.mxu0 0
        %3689 = vmatprep.subr.bf16.mxu0 0
        %3690 = vmatpush1.bf16.msra.mxu0 0
        %3691 = vmatprep.subr.bf16.mxu0 0
        %3692 = vmatpush1.bf16.msra.mxu0 0
        %3693 = vmatprep.subr.bf16.mxu0 0
        %3694 = vmatpush1.bf16.msra.mxu0 0
        %3695 = vmatprep.subr.bf16.mxu0 0
        %3696 = vmatpush1.bf16.msra.mxu0 0
        %3697 = vmatprep.subr.bf16.mxu0 0
        %3698 = vmatpush1.bf16.msra.mxu0 0
        %3699 = vmatprep.subr.bf16.mxu0 0
        %3700 = vmatpush1.bf16.msra.mxu0 0
        %3701 = vmatprep.subr.bf16.mxu0 0
        %3702 = vmatpush1.bf16.msra.mxu0 %v3284
        %3703 = vmatprep.subr.bf16.mxu0 0
        %3704 = vmatpush2.bf16.msra.mxu0 0
        %3705 = vmatprep.subr.bf16.mxu0 0
        %3706 = vmatpush2.bf16.msra.mxu0 0
        %3707 = vmatprep.subr.bf16.mxu0 0
        %3708 = vmatpush2.bf16.msra.mxu0 0
        %3709 = vmatprep.subr.bf16.mxu0 0
        %3710 = vmatpush2.bf16.msra.mxu0 0
        %3711 = vmatprep.subr.bf16.mxu0 0
        %3712 = vmatpush2.bf16.msra.mxu0 0
        %3713 = vmatprep.subr.bf16.mxu0 0
        %3714 = vmatpush2.bf16.msra.mxu0 0
        %3715 = vmatprep.subr.bf16.mxu0 0
        %3716 = vmatpush2.bf16.msra.mxu0 0
        %3717 = vmatprep.subr.bf16.mxu0 0
        %3718 = vmatpush2.bf16.msra.mxu0 0
        %3719 = vmatprep.mubr.bf16.mxu0 0
        %3720 = vmatmul.mubr.bf16.gmra.mxu0 %v3346
        %v3721 = vpop.f32.mrf.mxu0
        %v3722 = vadd.f32 0.0, %v3721
        %v3723 = vpop.f32.mrf.mxu0
        %v3724 = vpop.f32.mrf.mxu0
        %v3725 = vadd.f32 0.0, %v3724
        %v3726 = vpop.f32.mrf.mxu0
        %3727 = vmatprep.mubr.bf16.mxu0 0
        %3728 = vmatmul.mubr.bf16.gmra.mxu0 %v3349
        %v3729 = vpop.f32.mrf.mxu0
        %v3730 = vadd.f32 0.0, %v3729
        %v3731 = vpop.f32.mrf.mxu0
        %v3732 = vpop.f32.mrf.mxu0
        %v3733 = vadd.f32 0.0, %v3732
        %v3734 = vpop.f32.mrf.mxu0
        %3735 = vmatprep.mubr.bf16.mxu0 0
        %3736 = vmatmul.mubr.bf16.gmra.mxu0 %v3352
        %v3737 = vpop.f32.mrf.mxu0
        %v3738 = vadd.f32 0.0, %v3737
        %v3739 = vpop.f32.mrf.mxu0
        %v3740 = vpop.f32.mrf.mxu0
        %v3741 = vadd.f32 0.0, %v3740
        %v3742 = vpop.f32.mrf.mxu0
        %3743 = vmatprep.mubr.bf16.mxu0 0
        %3744 = vmatmul.mubr.bf16.gmra.mxu0 %v3355
        %v3745 = vpop.f32.mrf.mxu0
        %v3746 = vadd.f32 0.0, %v3745
        %v3747 = vpop.f32.mrf.mxu0
        %v3748 = vpop.f32.mrf.mxu0
        %v3749 = vadd.f32 0.0, %v3748
        %v3750 = vpop.f32.mrf.mxu0
        %3751 = vmatprep.mubr.bf16.mxu0 0
        %3752 = vmatmul.mubr.bf16.gmra.mxu0 %v3358
        %v3753 = vpop.f32.mrf.mxu0
        %v3754 = vadd.f32 0.0, %v3753
        %v3755 = vpop.f32.mrf.mxu0
        %v3756 = vpop.f32.mrf.mxu0
        %v3757 = vadd.f32 0.0, %v3756
        %v3758 = vpop.f32.mrf.mxu0
        %3759 = vmatprep.mubr.bf16.mxu0 0
        %3760 = vmatmul.mubr.bf16.gmra.mxu0 %v3361
        %v3761 = vpop.f32.mrf.mxu0
        %v3762 = vadd.f32 0.0, %v3761
        %v3763 = vpop.f32.mrf.mxu0
        %v3764 = vpop.f32.mrf.mxu0
        %v3765 = vadd.f32 0.0, %v3764
        %v3766 = vpop.f32.mrf.mxu0
        %3767 = vmatprep.mubr.bf16.mxu0 0
        %3768 = vmatmul.mubr.bf16.gmra.mxu0 %v3364
        %v3769 = vpop.f32.mrf.mxu0
        %v3770 = vadd.f32 0.0, %v3769
        %v3771 = vpop.f32.mrf.mxu0
        %v3772 = vpop.f32.mrf.mxu0
        %v3773 = vadd.f32 0.0, %v3772
        %v3774 = vpop.f32.mrf.mxu0
        %3775 = vmatprep.mubr.bf16.mxu0 0
        %3776 = vmatmul.mubr.bf16.gmra.mxu0 %v3367
        %v3777 = vpop.f32.mrf.mxu0
        %v3778 = vadd.f32 0.0, %v3777
        %v3779 = vpop.f32.mrf.mxu0
        %v3780 = vpop.f32.mrf.mxu0
        %v3781 = vadd.f32 0.0, %v3780
        %v3782 = vpop.f32.mrf.mxu0
        %3783 = vmatprep.mubr.bf16.mxu0 0
        %3784 = vmatmul.mubr.bf16.gmra.mxu0 %v3370
        %v3785 = vpop.f32.mrf.mxu0
        %v3786 = vadd.f32 0.0, %v3785
        %v3787 = vpop.f32.mrf.mxu0
        %v3788 = vpop.f32.mrf.mxu0
        %v3789 = vadd.f32 0.0, %v3788
        %v3790 = vpop.f32.mrf.mxu0
        %3791 = vmatprep.mubr.bf16.mxu0 0
        %3792 = vmatmul.mubr.bf16.gmra.mxu0 %v3373
        %v3793 = vpop.f32.mrf.mxu0
        %v3794 = vadd.f32 0.0, %v3793
        %v3795 = vpop.f32.mrf.mxu0
        %v3796 = vpop.f32.mrf.mxu0
        %v3797 = vadd.f32 0.0, %v3796
        %v3798 = vpop.f32.mrf.mxu0
        %3799 = vmatprep.mubr.bf16.mxu0 0
        %3800 = vmatmul.mubr.bf16.gmra.mxu0 %v3376
        %v3801 = vpop.f32.mrf.mxu0
        %v3802 = vadd.f32 0.0, %v3801
        %v3803 = vpop.f32.mrf.mxu0
        %v3804 = vpop.f32.mrf.mxu0
        %v3805 = vadd.f32 0.0, %v3804
        %v3806 = vpop.f32.mrf.mxu0
        %3807 = vmatprep.mubr.bf16.mxu0 0
        %3808 = vmatmul.mubr.bf16.gmra.mxu0 %v3379
        %v3809 = vpop.f32.mrf.mxu0
        %v3810 = vadd.f32 0.0, %v3809
        %v3811 = vpop.f32.mrf.mxu0
        %v3812 = vpop.f32.mrf.mxu0
        %v3813 = vadd.f32 0.0, %v3812
        %v3814 = vpop.f32.mrf.mxu0
        %3815 = vdwg.mxu0
        %v3816 = vmul.f32 %v3416, 0.5
        %v3817 = vmul.f32 %v3418, 0.5
        %v3818 = vmul.f32 %v3569, 0.5
        %v3819 = vmul.f32 %v3571, 0.5
        %v3820 = vmul.f32 %v3722, 0.5
        %v3821 = vmul.f32 %v3420, 0.5
        %v3822 = vmul.f32 %v3422, 0.5
        %v3823 = vmul.f32 %v3573, 0.5
        %v3824 = vmul.f32 %v3575, 0.5
        %v3825 = vmul.f32 %v3725, 0.5
        %v3826 = vmul.f32 %v3426, 0.5
        %v3827 = vmul.f32 %v3428, 0.5
        %v3828 = vmul.f32 %v3579, 0.5
        %v3829 = vmul.f32 %v3581, 0.5
        %v3830 = vmul.f32 %v3730, 0.5
        %v3831 = vmul.f32 %v3430, 0.5
        %v3832 = vmul.f32 %v3432, 0.5
        %v3833 = vmul.f32 %v3583, 0.5
        %v3834 = vmul.f32 %v3585, 0.5
        %v3835 = vmul.f32 %v3733, 0.5
        %v3836 = vmul.f32 %v3436, 0.5
        %v3837 = vmul.f32 %v3438, 0.5
        %v3838 = vmul.f32 %v3589, 0.5
        %v3839 = vmul.f32 %v3591, 0.5
        %v3840 = vmul.f32 %v3738, 0.5
        %v3841 = vmul.f32 %v3440, 0.5
        %v3842 = vmul.f32 %v3442, 0.5
        %v3843 = vmul.f32 %v3593, 0.5
        %v3844 = vmul.f32 %v3595, 0.5
        %v3845 = vmul.f32 %v3741, 0.5
        %v3846 = vmul.f32 %v3446, 0.5
        %v3847 = vmul.f32 %v3448, 0.5
        %v3848 = vmul.f32 %v3599, 0.5
        %v3849 = vmul.f32 %v3601, 0.5
        %v3850 = vmul.f32 %v3746, 0.5
        %v3851 = vmul.f32 %v3450, 0.5
        %v3852 = vmul.f32 %v3452, 0.5
        %v3853 = vmul.f32 %v3603, 0.5
        %v3854 = vmul.f32 %v3605, 0.5
        %v3855 = vmul.f32 %v3749, 0.5
        %v3856 = vmul.f32 %v3456, 0.5
        %v3857 = vmul.f32 %v3458, 0.5
        %v3858 = vmul.f32 %v3609, 0.5
        %v3859 = vmul.f32 %v3611, 0.5
        %v3860 = vmul.f32 %v3754, 0.5
        %v3861 = vmul.f32 %v3460, 0.5
        %v3862 = vmul.f32 %v3462, 0.5
        %v3863 = vmul.f32 %v3613, 0.5
        %v3864 = vmul.f32 %v3615, 0.5
        %v3865 = vmul.f32 %v3757, 0.5
        %v3866 = vmul.f32 %v3466, 0.5
        %v3867 = vmul.f32 %v3468, 0.5
        %v3868 = vmul.f32 %v3619, 0.5
        %v3869 = vmul.f32 %v3621, 0.5
        %v3870 = vmul.f32 %v3762, 0.5
        %v3871 = vmul.f32 %v3470, 0.5
        %v3872 = vmul.f32 %v3472, 0.5
        %v3873 = vmul.f32 %v3623, 0.5
        %v3874 = vmul.f32 %v3625, 0.5
        %v3875 = vmul.f32 %v3765, 0.5
        %v3876 = vmul.f32 %v3476, 0.5
        %v3877 = vmul.f32 %v3478, 0.5
        %v3878 = vmul.f32 %v3629, 0.5
        %v3879 = vmul.f32 %v3631, 0.5
        %v3880 = vmul.f32 %v3770, 0.5
        %v3881 = vmul.f32 %v3480, 0.5
        %v3882 = vmul.f32 %v3482, 0.5
        %v3883 = vmul.f32 %v3633, 0.5
        %v3884 = vmul.f32 %v3635, 0.5
        %v3885 = vmul.f32 %v3773, 0.5
        %v3886 = vmul.f32 %v3486, 0.5
        %v3887 = vmul.f32 %v3488, 0.5
        %v3888 = vmul.f32 %v3639, 0.5
        %v3889 = vmul.f32 %v3641, 0.5
        %v3890 = vmul.f32 %v3778, 0.5
        %v3891 = vmul.f32 %v3490, 0.5
        %v3892 = vmul.f32 %v3492, 0.5
        %v3893 = vmul.f32 %v3643, 0.5
        %v3894 = vmul.f32 %v3645, 0.5
        %v3895 = vmul.f32 %v3781, 0.5
        %v3896 = vmul.f32 %v3496, 0.5
        %v3897 = vmul.f32 %v3498, 0.5
        %v3898 = vmul.f32 %v3649, 0.5
        %v3899 = vmul.f32 %v3651, 0.5
        %v3900 = vmul.f32 %v3786, 0.5
        %v3901 = vmul.f32 %v3500, 0.5
        %v3902 = vmul.f32 %v3502, 0.5
        %v3903 = vmul.f32 %v3653, 0.5
        %v3904 = vmul.f32 %v3655, 0.5
        %v3905 = vmul.f32 %v3789, 0.5
        %v3906 = vmul.f32 %v3506, 0.5
        %v3907 = vmul.f32 %v3508, 0.5
        %v3908 = vmul.f32 %v3659, 0.5
        %v3909 = vmul.f32 %v3661, 0.5
        %v3910 = vmul.f32 %v3794, 0.5
        %v3911 = vmul.f32 %v3510, 0.5
        %v3912 = vmul.f32 %v3512, 0.5
        %v3913 = vmul.f32 %v3663, 0.5
        %v3914 = vmul.f32 %v3665, 0.5
        %v3915 = vmul.f32 %v3797, 0.5
        %v3916 = vmul.f32 %v3516, 0.5
        %v3917 = vmul.f32 %v3518, 0.5
        %v3918 = vmul.f32 %v3669, 0.5
        %v3919 = vmul.f32 %v3671, 0.5
        %v3920 = vmul.f32 %v3802, 0.5
        %v3921 = vmul.f32 %v3520, 0.5
        %v3922 = vmul.f32 %v3522, 0.5
        %v3923 = vmul.f32 %v3673, 0.5
        %v3924 = vmul.f32 %v3675, 0.5
        %v3925 = vmul.f32 %v3805, 0.5
        %v3926 = vmul.f32 %v3526, 0.5
        %v3927 = vmul.f32 %v3528, 0.5
        %v3928 = vmul.f32 %v3679, 0.5
        %v3929 = vmul.f32 %v3681, 0.5
        %v3930 = vmul.f32 %v3810, 0.5
        %v3931 = vmul.f32 %v3530, 0.5
        %v3932 = vmul.f32 %v3532, 0.5
        %v3933 = vmul.f32 %v3683, 0.5
        %v3934 = vmul.f32 %v3685, 0.5
        %v3935 = vmul.f32 %v3813, 0.5
        %v3936 = vtanh.pop %v3816
        %v3937 = vtanh.pop %v3817
        %v3938 = vtanh.pop %v3818
        %v3939 = vtanh.pop %v3819
        %v3940 = vtanh.pop %v3820
        %v3941 = vtanh.pop %v3821
        %v3942 = vtanh.pop %v3822
        %v3943 = vtanh.pop %v3823
        %v3944 = vtanh.pop %v3824
        %v3945 = vtanh.pop %v3825
        %v3946 = vtanh.pop %v3826
        %v3947 = vtanh.pop %v3827
        %v3948 = vtanh.pop %v3828
        %v3949 = vtanh.pop %v3829
        %v3950 = vtanh.pop %v3830
        %v3951 = vtanh.pop %v3831
        %v3952 = vtanh.pop %v3832
        %v3953 = vtanh.pop %v3833
        %v3954 = vtanh.pop %v3834
        %v3955 = vtanh.pop %v3835
        %v3956 = vtanh.pop %v3836
        %v3957 = vtanh.pop %v3837
        %v3958 = vtanh.pop %v3838
        %v3959 = vtanh.pop %v3839
        %v3960 = vtanh.pop %v3840
        %v3961 = vtanh.pop %v3841
        %v3962 = vtanh.pop %v3842
        %v3963 = vtanh.pop %v3843
        %v3964 = vtanh.pop %v3844
        %v3965 = vtanh.pop %v3845
        %v3966 = vtanh.pop %v3846
        %v3967 = vtanh.pop %v3847
        %v3968 = vtanh.pop %v3848
        %v3969 = vtanh.pop %v3849
        %v3970 = vtanh.pop %v3850
        %v3971 = vtanh.pop %v3851
        %v3972 = vtanh.pop %v3852
        %v3973 = vtanh.pop %v3853
        %v3974 = vtanh.pop %v3854
        %v3975 = vtanh.pop %v3855
        %v3976 = vtanh.pop %v3856
        %v3977 = vtanh.pop %v3857
        %v3978 = vtanh.pop %v3858
        %v3979 = vtanh.pop %v3859
        %v3980 = vtanh.pop %v3860
        %v3981 = vtanh.pop %v3861
        %v3982 = vtanh.pop %v3862
        %v3983 = vtanh.pop %v3863
        %v3984 = vtanh.pop %v3864
        %v3985 = vtanh.pop %v3865
        %v3986 = vtanh.pop %v3866
        %v3987 = vtanh.pop %v3867
        %v3988 = vtanh.pop %v3868
        %v3989 = vtanh.pop %v3869
        %v3990 = vtanh.pop %v3870
        %v3991 = vtanh.pop %v3871
        %v3992 = vtanh.pop %v3872
        %v3993 = vtanh.pop %v3873
        %v3994 = vtanh.pop %v3874
        %v3995 = vtanh.pop %v3875
        %v3996 = vtanh.pop %v3876
        %v3997 = vtanh.pop %v3877
        %v3998 = vtanh.pop %v3878
        %v3999 = vtanh.pop %v3879
        %v4000 = vtanh.pop %v3880
        %v4001 = vtanh.pop %v3881
        %v4002 = vtanh.pop %v3882
        %v4003 = vtanh.pop %v3883
        %v4004 = vtanh.pop %v3884
        %v4005 = vtanh.pop %v3885
        %v4006 = vtanh.pop %v3886
        %v4007 = vtanh.pop %v3887
        %v4008 = vtanh.pop %v3888
        %v4009 = vtanh.pop %v3889
        %v4010 = vtanh.pop %v3890
        %v4011 = vtanh.pop %v3891
        %v4012 = vtanh.pop %v3892
        %v4013 = vtanh.pop %v3893
        %v4014 = vtanh.pop %v3894
        %v4015 = vtanh.pop %v3895
        %v4016 = vtanh.pop %v3896
        %v4017 = vtanh.pop %v3897
        %v4018 = vtanh.pop %v3898
        %v4019 = vtanh.pop %v3899
        %v4020 = vtanh.pop %v3900
        %v4021 = vtanh.pop %v3901
        %v4022 = vtanh.pop %v3902
        %v4023 = vtanh.pop %v3903
        %v4024 = vtanh.pop %v3904
        %v4025 = vtanh.pop %v3905
        %v4026 = vtanh.pop %v3906
        %v4027 = vtanh.pop %v3907
        %v4028 = vtanh.pop %v3908
        %v4029 = vtanh.pop %v3909
        %v4030 = vtanh.pop %v3910
        %v4031 = vtanh.pop %v3911
        %v4032 = vtanh.pop %v3912
        %v4033 = vtanh.pop %v3913
        %v4034 = vtanh.pop %v3914
        %v4035 = vtanh.pop %v3915
        %v4036 = vtanh.pop %v3916
        %v4037 = vtanh.pop %v3917
        %v4038 = vtanh.pop %v3918
        %v4039 = vtanh.pop %v3919
        %v4040 = vtanh.pop %v3920
        %v4041 = vtanh.pop %v3921
        %v4042 = vtanh.pop %v3922
        %v4043 = vtanh.pop %v3923
        %v4044 = vtanh.pop %v3924
        %v4045 = vtanh.pop %v3925
        %v4046 = vtanh.pop %v3926
        %v4047 = vtanh.pop %v3927
        %v4048 = vtanh.pop %v3928
        %v4049 = vtanh.pop %v3929
        %v4050 = vtanh.pop %v3930
        %v4051 = vtanh.pop %v3931
        %v4052 = vtanh.pop %v3932
        %v4053 = vtanh.pop %v3933
        %v4054 = vtanh.pop %v3934
        %v4055 = vtanh.pop %v3935
        %v4056 = vmul.f32 %v3936, 0.145
        %v4057 = vmul.f32 %v3937, 0.145
        %v4058 = vmul.f32 %v3938, 0.145
        %v4059 = vmul.f32 %v3939, 0.145
        %v4060 = vmul.f32 %v3940, 0.145
        %v4061 = vmul.f32 %v3941, 0.145
        %v4062 = vmul.f32 %v3942, 0.145
        %v4063 = vmul.f32 %v3943, 0.145
        %v4064 = vmul.f32 %v3944, 0.145
        %v4065 = vmul.f32 %v3945, 0.145
        %v4066 = vmul.f32 %v3946, 0.145
        %v4067 = vmul.f32 %v3947, 0.145
        %v4068 = vmul.f32 %v3948, 0.145
        %v4069 = vmul.f32 %v3949, 0.145
        %v4070 = vmul.f32 %v3950, 0.145
        %v4071 = vmul.f32 %v3951, 0.145
        %v4072 = vmul.f32 %v3952, 0.145
        %v4073 = vmul.f32 %v3953, 0.145
        %v4074 = vmul.f32 %v3954, 0.145
        %v4075 = vmul.f32 %v3955, 0.145
        %v4076 = vmul.f32 %v3956, 0.145
        %v4077 = vmul.f32 %v3957, 0.145
        %v4078 = vmul.f32 %v3958, 0.145
        %v4079 = vmul.f32 %v3959, 0.145
        %v4080 = vmul.f32 %v3960, 0.145
        %v4081 = vmul.f32 %v3961, 0.145
        %v4082 = vmul.f32 %v3962, 0.145
        %v4083 = vmul.f32 %v3963, 0.145
        %v4084 = vmul.f32 %v3964, 0.145
        %v4085 = vmul.f32 %v3965, 0.145
        %v4086 = vmul.f32 %v3966, 0.145
        %v4087 = vmul.f32 %v3967, 0.145
        %v4088 = vmul.f32 %v3968, 0.145
        %v4089 = vmul.f32 %v3969, 0.145
        %v4090 = vmul.f32 %v3970, 0.145
        %v4091 = vmul.f32 %v3971, 0.145
        %v4092 = vmul.f32 %v3972, 0.145
        %v4093 = vmul.f32 %v3973, 0.145
        %v4094 = vmul.f32 %v3974, 0.145
        %v4095 = vmul.f32 %v3975, 0.145
        %v4096 = vmul.f32 %v3976, 0.145
        %v4097 = vmul.f32 %v3977, 0.145
        %v4098 = vmul.f32 %v3978, 0.145
        %v4099 = vmul.f32 %v3979, 0.145
        %v4100 = vmul.f32 %v3980, 0.145
        %v4101 = vmul.f32 %v3981, 0.145
        %v4102 = vmul.f32 %v3982, 0.145
        %v4103 = vmul.f32 %v3983, 0.145
        %v4104 = vmul.f32 %v3984, 0.145
        %v4105 = vmul.f32 %v3985, 0.145
        %v4106 = vmul.f32 %v3986, 0.145
        %v4107 = vmul.f32 %v3987, 0.145
        %v4108 = vmul.f32 %v3988, 0.145
        %v4109 = vmul.f32 %v3989, 0.145
        %v4110 = vmul.f32 %v3990, 0.145
        %v4111 = vmul.f32 %v3991, 0.145
        %v4112 = vmul.f32 %v3992, 0.145
        %v4113 = vmul.f32 %v3993, 0.145
        %v4114 = vmul.f32 %v3994, 0.145
        %v4115 = vmul.f32 %v3995, 0.145
        %v4116 = vmul.f32 %v3996, 0.145
        %v4117 = vmul.f32 %v3997, 0.145
        %v4118 = vmul.f32 %v3998, 0.145
        %v4119 = vmul.f32 %v3999, 0.145
        %v4120 = vmul.f32 %v4000, 0.145
        %v4121 = vmul.f32 %v4001, 0.145
        %v4122 = vmul.f32 %v4002, 0.145
        %v4123 = vmul.f32 %v4003, 0.145
        %v4124 = vmul.f32 %v4004, 0.145
        %v4125 = vmul.f32 %v4005, 0.145
        %v4126 = vmul.f32 %v4006, 0.145
        %v4127 = vmul.f32 %v4007, 0.145
        %v4128 = vmul.f32 %v4008, 0.145
        %v4129 = vmul.f32 %v4009, 0.145
        %v4130 = vmul.f32 %v4010, 0.145
        %v4131 = vmul.f32 %v4011, 0.145
        %v4132 = vmul.f32 %v4012, 0.145
        %v4133 = vmul.f32 %v4013, 0.145
        %v4134 = vmul.f32 %v4014, 0.145
        %v4135 = vmul.f32 %v4015, 0.145
        %v4136 = vmul.f32 %v4016, 0.145
        %v4137 = vmul.f32 %v4017, 0.145
        %v4138 = vmul.f32 %v4018, 0.145
        %v4139 = vmul.f32 %v4019, 0.145
        %v4140 = vmul.f32 %v4020, 0.145
        %v4141 = vmul.f32 %v4021, 0.145
        %v4142 = vmul.f32 %v4022, 0.145
        %v4143 = vmul.f32 %v4023, 0.145
        %v4144 = vmul.f32 %v4024, 0.145
        %v4145 = vmul.f32 %v4025, 0.145
        %v4146 = vmul.f32 %v4026, 0.145
        %v4147 = vmul.f32 %v4027, 0.145
        %v4148 = vmul.f32 %v4028, 0.145
        %v4149 = vmul.f32 %v4029, 0.145
        %v4150 = vmul.f32 %v4030, 0.145
        %v4151 = vmul.f32 %v4031, 0.145
        %v4152 = vmul.f32 %v4032, 0.145
        %v4153 = vmul.f32 %v4033, 0.145
        %v4154 = vmul.f32 %v4034, 0.145
        %v4155 = vmul.f32 %v4035, 0.145
        %v4156 = vmul.f32 %v4036, 0.145
        %v4157 = vmul.f32 %v4037, 0.145
        %v4158 = vmul.f32 %v4038, 0.145
        %v4159 = vmul.f32 %v4039, 0.145
        %v4160 = vmul.f32 %v4040, 0.145
        %v4161 = vmul.f32 %v4041, 0.145
        %v4162 = vmul.f32 %v4042, 0.145
        %v4163 = vmul.f32 %v4043, 0.145
        %v4164 = vmul.f32 %v4044, 0.145
        %v4165 = vmul.f32 %v4045, 0.145
        %v4166 = vmul.f32 %v4046, 0.145
        %v4167 = vmul.f32 %v4047, 0.145
        %v4168 = vmul.f32 %v4048, 0.145
        %v4169 = vmul.f32 %v4049, 0.145
        %v4170 = vmul.f32 %v4050, 0.145
        %v4171 = vmul.f32 %v4051, 0.145
        %v4172 = vmul.f32 %v4052, 0.145
        %v4173 = vmul.f32 %v4053, 0.145
        %v4174 = vmul.f32 %v4054, 0.145
        %v4175 = vmul.f32 %v4055, 0.145
        %v4176 = vadd.f32 %v4056, 0.155
        %v4177 = vadd.f32 %v4057, 0.155
        %v4178 = vadd.f32 %v4058, 0.155
        %v4179 = vadd.f32 %v4059, 0.155
        %v4180 = vadd.f32 %v4060, 0.155
        %v4181 = vadd.f32 %v4061, 0.155
        %v4182 = vadd.f32 %v4062, 0.155
        %v4183 = vadd.f32 %v4063, 0.155
        %v4184 = vadd.f32 %v4064, 0.155
        %v4185 = vadd.f32 %v4065, 0.155
        %v4186 = vadd.f32 %v4066, 0.155
        %v4187 = vadd.f32 %v4067, 0.155
        %v4188 = vadd.f32 %v4068, 0.155
        %v4189 = vadd.f32 %v4069, 0.155
        %v4190 = vadd.f32 %v4070, 0.155
        %v4191 = vadd.f32 %v4071, 0.155
        %v4192 = vadd.f32 %v4072, 0.155
        %v4193 = vadd.f32 %v4073, 0.155
        %v4194 = vadd.f32 %v4074, 0.155
        %v4195 = vadd.f32 %v4075, 0.155
        %v4196 = vadd.f32 %v4076, 0.155
        %v4197 = vadd.f32 %v4077, 0.155
        %v4198 = vadd.f32 %v4078, 0.155
        %v4199 = vadd.f32 %v4079, 0.155
        %v4200 = vadd.f32 %v4080, 0.155
        %v4201 = vadd.f32 %v4081, 0.155
        %v4202 = vadd.f32 %v4082, 0.155
        %v4203 = vadd.f32 %v4083, 0.155
        %v4204 = vadd.f32 %v4084, 0.155
        %v4205 = vadd.f32 %v4085, 0.155
        %v4206 = vadd.f32 %v4086, 0.155
        %v4207 = vadd.f32 %v4087, 0.155
        %v4208 = vadd.f32 %v4088, 0.155
        %v4209 = vadd.f32 %v4089, 0.155
        %v4210 = vadd.f32 %v4090, 0.155
        %v4211 = vadd.f32 %v4091, 0.155
        %v4212 = vadd.f32 %v4092, 0.155
        %v4213 = vadd.f32 %v4093, 0.155
        %v4214 = vadd.f32 %v4094, 0.155
        %v4215 = vadd.f32 %v4095, 0.155
        %v4216 = vadd.f32 %v4096, 0.155
        %v4217 = vadd.f32 %v4097, 0.155
        %v4218 = vadd.f32 %v4098, 0.155
        %v4219 = vadd.f32 %v4099, 0.155
        %v4220 = vadd.f32 %v4100, 0.155
        %v4221 = vadd.f32 %v4101, 0.155
        %v4222 = vadd.f32 %v4102, 0.155
        %v4223 = vadd.f32 %v4103, 0.155
        %v4224 = vadd.f32 %v4104, 0.155
        %v4225 = vadd.f32 %v4105, 0.155
        %v4226 = vadd.f32 %v4106, 0.155
        %v4227 = vadd.f32 %v4107, 0.155
        %v4228 = vadd.f32 %v4108, 0.155
        %v4229 = vadd.f32 %v4109, 0.155
        %v4230 = vadd.f32 %v4110, 0.155
        %v4231 = vadd.f32 %v4111, 0.155
        %v4232 = vadd.f32 %v4112, 0.155
        %v4233 = vadd.f32 %v4113, 0.155
        %v4234 = vadd.f32 %v4114, 0.155
        %v4235 = vadd.f32 %v4115, 0.155
        %v4236 = vadd.f32 %v4116, 0.155
        %v4237 = vadd.f32 %v4117, 0.155
        %v4238 = vadd.f32 %v4118, 0.155
        %v4239 = vadd.f32 %v4119, 0.155
        %v4240 = vadd.f32 %v4120, 0.155
        %v4241 = vadd.f32 %v4121, 0.155
        %v4242 = vadd.f32 %v4122, 0.155
        %v4243 = vadd.f32 %v4123, 0.155
        %v4244 = vadd.f32 %v4124, 0.155
        %v4245 = vadd.f32 %v4125, 0.155
        %v4246 = vadd.f32 %v4126, 0.155
        %v4247 = vadd.f32 %v4127, 0.155
        %v4248 = vadd.f32 %v4128, 0.155
        %v4249 = vadd.f32 %v4129, 0.155
        %v4250 = vadd.f32 %v4130, 0.155
        %v4251 = vadd.f32 %v4131, 0.155
        %v4252 = vadd.f32 %v4132, 0.155
        %v4253 = vadd.f32 %v4133, 0.155
        %v4254 = vadd.f32 %v4134, 0.155
        %v4255 = vadd.f32 %v4135, 0.155
        %v4256 = vadd.f32 %v4136, 0.155
        %v4257 = vadd.f32 %v4137, 0.155
        %v4258 = vadd.f32 %v4138, 0.155
        %v4259 = vadd.f32 %v4139, 0.155
        %v4260 = vadd.f32 %v4140, 0.155
        %v4261 = vadd.f32 %v4141, 0.155
        %v4262 = vadd.f32 %v4142, 0.155
        %v4263 = vadd.f32 %v4143, 0.155
        %v4264 = vadd.f32 %v4144, 0.155
        %v4265 = vadd.f32 %v4145, 0.155
        %v4266 = vadd.f32 %v4146, 0.155
        %v4267 = vadd.f32 %v4147, 0.155
        %v4268 = vadd.f32 %v4148, 0.155
        %v4269 = vadd.f32 %v4149, 0.155
        %v4270 = vadd.f32 %v4150, 0.155
        %v4271 = vadd.f32 %v4151, 0.155
        %v4272 = vadd.f32 %v4152, 0.155
        %v4273 = vadd.f32 %v4153, 0.155
        %v4274 = vadd.f32 %v4154, 0.155
        %v4275 = vadd.f32 %v4155, 0.155
        %v4276 = vadd.f32 %v4156, 0.155
        %v4277 = vadd.f32 %v4157, 0.155
        %v4278 = vadd.f32 %v4158, 0.155
        %v4279 = vadd.f32 %v4159, 0.155
        %v4280 = vadd.f32 %v4160, 0.155
        %v4281 = vadd.f32 %v4161, 0.155
        %v4282 = vadd.f32 %v4162, 0.155
        %v4283 = vadd.f32 %v4163, 0.155
        %v4284 = vadd.f32 %v4164, 0.155
        %v4285 = vadd.f32 %v4165, 0.155
        %v4286 = vadd.f32 %v4166, 0.155
        %v4287 = vadd.f32 %v4167, 0.155
        %v4288 = vadd.f32 %v4168, 0.155
        %v4289 = vadd.f32 %v4169, 0.155
        %v4290 = vadd.f32 %v4170, 0.155
        %v4291 = vadd.f32 %v4171, 0.155
        %v4292 = vadd.f32 %v4172, 0.155
        %v4293 = vadd.f32 %v4173, 0.155
        %v4294 = vadd.f32 %v4174, 0.155
        %v4295 = vadd.f32 %v4175, 0.155
        %v4296 = vrcp.pop %v4176
        %v4297 = vrcp.pop %v4177
        %v4298 = vrcp.pop %v4178
        %v4299 = vrcp.pop %v4179
        %v4300 = vrcp.pop %v4180
        %v4301 = vrcp.pop %v4181
        %v4302 = vrcp.pop %v4182
        %v4303 = vrcp.pop %v4183
        %v4304 = vrcp.pop %v4184
        %v4305 = vrcp.pop %v4185
        %v4306 = vrcp.pop %v4186
        %v4307 = vrcp.pop %v4187
        %v4308 = vrcp.pop %v4188
        %v4309 = vrcp.pop %v4189
        %v4310 = vrcp.pop %v4190
        %v4311 = vrcp.pop %v4191
        %v4312 = vrcp.pop %v4192
        %v4313 = vrcp.pop %v4193
        %v4314 = vrcp.pop %v4194
        %v4315 = vrcp.pop %v4195
        %v4316 = vrcp.pop %v4196
        %v4317 = vrcp.pop %v4197
        %v4318 = vrcp.pop %v4198
        %v4319 = vrcp.pop %v4199
        %v4320 = vrcp.pop %v4200
        %v4321 = vrcp.pop %v4201
        %v4322 = vrcp.pop %v4202
        %v4323 = vrcp.pop %v4203
        %v4324 = vrcp.pop %v4204
        %v4325 = vrcp.pop %v4205
        %v4326 = vrcp.pop %v4206
        %v4327 = vrcp.pop %v4207
        %v4328 = vrcp.pop %v4208
        %v4329 = vrcp.pop %v4209
        %v4330 = vrcp.pop %v4210
        %v4331 = vrcp.pop %v4211
        %v4332 = vrcp.pop %v4212
        %v4333 = vrcp.pop %v4213
        %v4334 = vrcp.pop %v4214
        %v4335 = vrcp.pop %v4215
        %v4336 = vrcp.pop %v4216
        %v4337 = vrcp.pop %v4217
        %v4338 = vrcp.pop %v4218
        %v4339 = vrcp.pop %v4219
        %v4340 = vrcp.pop %v4220
        %v4341 = vrcp.pop %v4221
        %v4342 = vrcp.pop %v4222
        %v4343 = vrcp.pop %v4223
        %v4344 = vrcp.pop %v4224
        %v4345 = vrcp.pop %v4225
        %v4346 = vrcp.pop %v4226
        %v4347 = vrcp.pop %v4227
        %v4348 = vrcp.pop %v4228
        %v4349 = vrcp.pop %v4229
        %v4350 = vrcp.pop %v4230
        %v4351 = vrcp.pop %v4231
        %v4352 = vrcp.pop %v4232
        %v4353 = vrcp.pop %v4233
        %v4354 = vrcp.pop %v4234
        %v4355 = vrcp.pop %v4235
        %v4356 = vrcp.pop %v4236
        %v4357 = vrcp.pop %v4237
        %v4358 = vrcp.pop %v4238
        %v4359 = vrcp.pop %v4239
        %v4360 = vrcp.pop %v4240
        %v4361 = vrcp.pop %v4241
        %v4362 = vrcp.pop %v4242
        %v4363 = vrcp.pop %v4243
        %v4364 = vrcp.pop %v4244
        %v4365 = vrcp.pop %v4245
        %v4366 = vrcp.pop %v4246
        %v4367 = vrcp.pop %v4247
        %v4368 = vrcp.pop %v4248
        %v4369 = vrcp.pop %v4249
        %v4370 = vrcp.pop %v4250
        %v4371 = vrcp.pop %v4251
        %v4372 = vrcp.pop %v4252
        %v4373 = vrcp.pop %v4253
        %v4374 = vrcp.pop %v4254
        %v4375 = vrcp.pop %v4255
        %v4376 = vrcp.pop %v4256
        %v4377 = vrcp.pop %v4257
        %v4378 = vrcp.pop %v4258
        %v4379 = vrcp.pop %v4259
        %v4380 = vrcp.pop %v4260
        %v4381 = vrcp.pop %v4261
        %v4382 = vrcp.pop %v4262
        %v4383 = vrcp.pop %v4263
        %v4384 = vrcp.pop %v4264
        %v4385 = vrcp.pop %v4265
        %v4386 = vrcp.pop %v4266
        %v4387 = vrcp.pop %v4267
        %v4388 = vrcp.pop %v4268
        %v4389 = vrcp.pop %v4269
        %v4390 = vrcp.pop %v4270
        %v4391 = vrcp.pop %v4271
        %v4392 = vrcp.pop %v4272
        %v4393 = vrcp.pop %v4273
        %v4394 = vrcp.pop %v4274
        %v4395 = vrcp.pop %v4275
        %v4396 = vrcp.pop %v4276
        %v4397 = vrcp.pop %v4277
        %v4398 = vrcp.pop %v4278
        %v4399 = vrcp.pop %v4279
        %v4400 = vrcp.pop %v4280
        %v4401 = vrcp.pop %v4281
        %v4402 = vrcp.pop %v4282
        %v4403 = vrcp.pop %v4283
        %v4404 = vrcp.pop %v4284
        %v4405 = vrcp.pop %v4285
        %v4406 = vrcp.pop %v4286
        %v4407 = vrcp.pop %v4287
        %v4408 = vrcp.pop %v4288
        %v4409 = vrcp.pop %v4289
        %v4410 = vrcp.pop %v4290
        %v4411 = vrcp.pop %v4291
        %v4412 = vrcp.pop %v4292
        %v4413 = vrcp.pop %v4293
        %v4414 = vrcp.pop %v4294
        %v4415 = vrcp.pop %v4295
        %v4416 = vld [vmem:[%s5] sm:$0xff]
        %v4417 = vld [vmem:[%s5 + $0x8] sm:$0xff]
        %v4418 = vpack.c.bf16 %v4301, %v4296
        %v4419 = vpack.c.bf16 %v4302, %v4297
        %v4420 = vpack.c.bf16 %v4303, %v4298
        %v4421 = vpack.c.bf16 %v4304, %v4299
        %v4422 = vpack.c.bf16 %v4305, %v4300
        %v4423 = vpack.c.bf16 %v4311, %v4306
        %v4424 = vpack.c.bf16 %v4312, %v4307
        %v4425 = vpack.c.bf16 %v4313, %v4308
        %v4426 = vpack.c.bf16 %v4314, %v4309
        %v4427 = vpack.c.bf16 %v4315, %v4310
        %v4428 = vpack.c.bf16 %v4321, %v4316
        %v4429 = vpack.c.bf16 %v4322, %v4317
        %v4430 = vpack.c.bf16 %v4323, %v4318
        %v4431 = vpack.c.bf16 %v4324, %v4319
        %v4432 = vpack.c.bf16 %v4325, %v4320
        %v4433 = vpack.c.bf16 %v4331, %v4326
        %v4434 = vpack.c.bf16 %v4332, %v4327
        %v4435 = vpack.c.bf16 %v4333, %v4328
        %v4436 = vpack.c.bf16 %v4334, %v4329
        %v4437 = vpack.c.bf16 %v4335, %v4330
        %v4438 = vpack.c.bf16 %v4341, %v4336
        %v4439 = vpack.c.bf16 %v4342, %v4337
        %v4440 = vpack.c.bf16 %v4343, %v4338
        %v4441 = vpack.c.bf16 %v4344, %v4339
        %v4442 = vpack.c.bf16 %v4345, %v4340
        %v4443 = vpack.c.bf16 %v4351, %v4346
        %v4444 = vpack.c.bf16 %v4352, %v4347
        %v4445 = vpack.c.bf16 %v4353, %v4348
        %v4446 = vpack.c.bf16 %v4354, %v4349
        %v4447 = vpack.c.bf16 %v4355, %v4350
        %v4448 = vpack.c.bf16 %v4361, %v4356
        %v4449 = vpack.c.bf16 %v4362, %v4357
        %v4450 = vpack.c.bf16 %v4363, %v4358
        %v4451 = vpack.c.bf16 %v4364, %v4359
        %v4452 = vpack.c.bf16 %v4365, %v4360
        %v4453 = vpack.c.bf16 %v4371, %v4366
        %v4454 = vpack.c.bf16 %v4372, %v4367
        %v4455 = vpack.c.bf16 %v4373, %v4368
        %v4456 = vpack.c.bf16 %v4374, %v4369
        %v4457 = vpack.c.bf16 %v4375, %v4370
        %v4458 = vpack.c.bf16 %v4381, %v4376
        %v4459 = vpack.c.bf16 %v4382, %v4377
        %v4460 = vpack.c.bf16 %v4383, %v4378
        %v4461 = vpack.c.bf16 %v4384, %v4379
        %v4462 = vpack.c.bf16 %v4385, %v4380
        %v4463 = vpack.c.bf16 %v4391, %v4386
        %v4464 = vpack.c.bf16 %v4392, %v4387
        %v4465 = vpack.c.bf16 %v4393, %v4388
        %v4466 = vpack.c.bf16 %v4394, %v4389
        %v4467 = vpack.c.bf16 %v4395, %v4390
        %v4468 = vpack.c.bf16 %v4401, %v4396
        %v4469 = vpack.c.bf16 %v4402, %v4397
        %v4470 = vpack.c.bf16 %v4403, %v4398
        %v4471 = vpack.c.bf16 %v4404, %v4399
        %v4472 = vpack.c.bf16 %v4405, %v4400
        %v4473 = vpack.c.bf16 %v4411, %v4406
        %v4474 = vpack.c.bf16 %v4412, %v4407
        %v4475 = vpack.c.bf16 %v4413, %v4408
        %v4476 = vpack.c.bf16 %v4414, %v4409
        %v4477 = vpack.c.bf16 %v4415, %v4410
        %v4480 = vunpack.c.l.b16 %v4416
        %v4481 = vunpack.c.h.b16 %v4416
        %v4482 = vunpack.c.l.b16 %v4417
        %v4483 = vunpack.c.h.b16 %v4417
        %v4484 = vpack.c.b16 %v4482, %v4480
        %v4485 = vpack.c.b16 %v4483, %v4481
        %vm4487 = vcmask 523264
        %v4489 = vsel %vm4487, %v4485, 0
        %4491 = vmatprep.subr.bf16.mxu0 %v4454
        %4492 = vmatpush1.bf16.msra.mxu0 %v4453
        %4493 = vmatprep.subr.bf16.mxu0 %v4449
        %4494 = vmatpush1.bf16.msra.mxu0 %v4448
        %4495 = vmatprep.subr.bf16.mxu0 %v4444
        %4496 = vmatpush1.bf16.msra.mxu0 %v4443
        %4497 = vmatprep.subr.bf16.mxu0 %v4439
        %4498 = vmatpush1.bf16.msra.mxu0 %v4438
        %4499 = vmatprep.subr.bf16.mxu0 %v4434
        %4500 = vmatpush1.bf16.msra.mxu0 %v4433
        %4501 = vmatprep.subr.bf16.mxu0 %v4429
        %4502 = vmatpush1.bf16.msra.mxu0 %v4428
        %4503 = vmatprep.subr.bf16.mxu0 %v4424
        %4504 = vmatpush1.bf16.msra.mxu0 %v4423
        %4505 = vmatprep.subr.bf16.mxu0 %v4419
        %4506 = vmatpush1.bf16.msra.mxu0 %v4418
        %4507 = vmatprep.subr.bf16.mxu0 0
        %4508 = vmatpush2.bf16.msra.mxu0 0
        %4509 = vmatprep.subr.bf16.mxu0 0
        %4510 = vmatpush2.bf16.msra.mxu0 0
        %4511 = vmatprep.subr.bf16.mxu0 0
        %4512 = vmatpush2.bf16.msra.mxu0 0
        %4513 = vmatprep.subr.bf16.mxu0 0
        %4514 = vmatpush2.bf16.msra.mxu0 0
        %4515 = vmatprep.subr.bf16.mxu0 %v4474
        %4516 = vmatpush2.bf16.msra.mxu0 %v4473
        %4517 = vmatprep.subr.bf16.mxu0 %v4469
        %4518 = vmatpush2.bf16.msra.mxu0 %v4468
        %4519 = vmatprep.subr.bf16.mxu0 %v4464
        %4520 = vmatpush2.bf16.msra.mxu0 %v4463
        %4521 = vmatprep.subr.bf16.mxu0 %v4459
        %4522 = vmatpush2.bf16.msra.mxu0 %v4458
        %4523 = vmatprep.mubr.bf16.mxu0 %v4489
        %4524 = vmatmul.mubr.bf16.gmra.mxu0 %v4484
        %v4525 = vpop.f32.mrf.mxu0
        %v4526 = vadd.f32 0.0, %v4525
        %v4527 = vpop.f32.mrf.mxu0
        %v4528 = vadd.f32 0.0, %v4527
        %v4529 = vpop.f32.mrf.mxu0
        %v4530 = vadd.f32 0.0, %v4529
        %v4531 = vpop.f32.mrf.mxu0
        %v4532 = vadd.f32 0.0, %v4531
        %4533 = vdwg.mxu0
        %4534 = vmatprep.subr.bf16.mxu0 %v4456
        %4535 = vmatpush1.bf16.msra.mxu0 %v4455
        %4536 = vmatprep.subr.bf16.mxu0 %v4451
        %4537 = vmatpush1.bf16.msra.mxu0 %v4450
        %4538 = vmatprep.subr.bf16.mxu0 %v4446
        %4539 = vmatpush1.bf16.msra.mxu0 %v4445
        %4540 = vmatprep.subr.bf16.mxu0 %v4441
        %4541 = vmatpush1.bf16.msra.mxu0 %v4440
        %4542 = vmatprep.subr.bf16.mxu0 %v4436
        %4543 = vmatpush1.bf16.msra.mxu0 %v4435
        %4544 = vmatprep.subr.bf16.mxu0 %v4431
        %4545 = vmatpush1.bf16.msra.mxu0 %v4430
        %4546 = vmatprep.subr.bf16.mxu0 %v4426
        %4547 = vmatpush1.bf16.msra.mxu0 %v4425
        %4548 = vmatprep.subr.bf16.mxu0 %v4421
        %4549 = vmatpush1.bf16.msra.mxu0 %v4420
        %4550 = vmatprep.subr.bf16.mxu0 0
        %4551 = vmatpush2.bf16.msra.mxu0 0
        %4552 = vmatprep.subr.bf16.mxu0 0
        %4553 = vmatpush2.bf16.msra.mxu0 0
        %4554 = vmatprep.subr.bf16.mxu0 0
        %4555 = vmatpush2.bf16.msra.mxu0 0
        %4556 = vmatprep.subr.bf16.mxu0 0
        %4557 = vmatpush2.bf16.msra.mxu0 0
        %4558 = vmatprep.subr.bf16.mxu0 %v4476
        %4559 = vmatpush2.bf16.msra.mxu0 %v4475
        %4560 = vmatprep.subr.bf16.mxu0 %v4471
        %4561 = vmatpush2.bf16.msra.mxu0 %v4470
        %4562 = vmatprep.subr.bf16.mxu0 %v4466
        %4563 = vmatpush2.bf16.msra.mxu0 %v4465
        %4564 = vmatprep.subr.bf16.mxu0 %v4461
        %4565 = vmatpush2.bf16.msra.mxu0 %v4460
        %4566 = vmatprep.mubr.bf16.mxu0 %v4489
        %4567 = vmatmul.mubr.bf16.gmra.mxu0 %v4484
        %v4568 = vpop.f32.mrf.mxu0
        %v4569 = vadd.f32 0.0, %v4568
        %v4570 = vpop.f32.mrf.mxu0
        %v4571 = vadd.f32 0.0, %v4570
        %v4572 = vpop.f32.mrf.mxu0
        %v4573 = vadd.f32 0.0, %v4572
        %v4574 = vpop.f32.mrf.mxu0
        %v4575 = vadd.f32 0.0, %v4574
        %4576 = vdwg.mxu0
        %4577 = vmatprep.subr.bf16.mxu0 0
        %4578 = vmatpush1.bf16.msra.mxu0 %v4457
        %4579 = vmatprep.subr.bf16.mxu0 0
        %4580 = vmatpush1.bf16.msra.mxu0 %v4452
        %4581 = vmatprep.subr.bf16.mxu0 0
        %4582 = vmatpush1.bf16.msra.mxu0 %v4447
        %4583 = vmatprep.subr.bf16.mxu0 0
        %4584 = vmatpush1.bf16.msra.mxu0 %v4442
        %4585 = vmatprep.subr.bf16.mxu0 0
        %4586 = vmatpush1.bf16.msra.mxu0 %v4437
        %4587 = vmatprep.subr.bf16.mxu0 0
        %4588 = vmatpush1.bf16.msra.mxu0 %v4432
        %4589 = vmatprep.subr.bf16.mxu0 0
        %4590 = vmatpush1.bf16.msra.mxu0 %v4427
        %4591 = vmatprep.subr.bf16.mxu0 0
        %4592 = vmatpush1.bf16.msra.mxu0 %v4422
        %4593 = vmatprep.subr.bf16.mxu0 0
        %4594 = vmatpush2.bf16.msra.mxu0 0
        %4595 = vmatprep.subr.bf16.mxu0 0
        %4596 = vmatpush2.bf16.msra.mxu0 0
        %4597 = vmatprep.subr.bf16.mxu0 0
        %4598 = vmatpush2.bf16.msra.mxu0 0
        %4599 = vmatprep.subr.bf16.mxu0 0
        %4600 = vmatpush2.bf16.msra.mxu0 0
        %4601 = vmatprep.subr.bf16.mxu0 0
        %4602 = vmatpush2.bf16.msra.mxu0 %v4477
        %4603 = vmatprep.subr.bf16.mxu0 0
        %4604 = vmatpush2.bf16.msra.mxu0 %v4472
        %4605 = vmatprep.subr.bf16.mxu0 0
        %4606 = vmatpush2.bf16.msra.mxu0 %v4467
        %4607 = vmatprep.subr.bf16.mxu0 0
        %4608 = vmatpush2.bf16.msra.mxu0 %v4462
        %4609 = vmatprep.mubr.bf16.mxu0 %v4489
        %4610 = vmatmul.mubr.bf16.gmra.mxu0 %v4484
        %v4611 = vpop.f32.mrf.mxu0
        %v4612 = vadd.f32 0.0, %v4611
        %v4613 = vpop.f32.mrf.mxu0
        %v4614 = vpop.f32.mrf.mxu0
        %v4615 = vadd.f32 0.0, %v4614
        %v4616 = vpop.f32.mrf.mxu0
        %4617 = vdwg.mxu0
        %v4618 = vpack.c.bf16 %v4530, %v4526
        %v4619 = vpack.c.bf16 %v4532, %v4528
        %v4620 = vpack.c.bf16 %v4573, %v4569
        %v4621 = vpack.c.bf16 %v4575, %v4571
        %v4622 = vpack.c.bf16 %v4615, %v4612
        %v4628 = vunpack.c.l.b16 %v4618
        %v4629 = vunpack.c.l.b16 %v4619
        %v4630 = vunpack.c.l.b16 %v4620
        %v4631 = vunpack.c.l.b16 %v4621
        %v4632 = vunpack.c.l.b16 %v4622
        %v4633 = vunpack.c.h.b16 %v4618
        %v4634 = vunpack.c.h.b16 %v4619
        %v4635 = vunpack.c.h.b16 %v4620
        %v4636 = vunpack.c.h.b16 %v4621
        %v4637 = vunpack.c.h.b16 %v4622
        %v4638 = vpack.c.b16 %v4629, %v4628
        %v4639 = vpack.c.b16 %v4631, %v4630
        %v4640 = vpack.c.b16 %v4632, %v4632
        %v4641 = vpack.c.b16 %v4634, %v4633
        %v4642 = vpack.c.b16 %v4636, %v4635
        %v4643 = vpack.c.b16 %v4637, %v4637
        %4650 = vst [vmem:[#allocation2 + $0x14] sm:$0xff] %v4638
        %4651 = vst [vmem:[#allocation2 + $0x1c] sm:$0xff] %v4639
        %4652 = vst [vmem:[#allocation2 + $0x24] sm:$0xf] %v4640
        %4653 = vst [vmem:[#allocation2 + $0x3c] sm:$0xff] %v4641
        %4654 = vst [vmem:[#allocation2 + $0x44] sm:$0xff] %v4642
        %4655 = vst [vmem:[#allocation2 + $0x4c] sm:$0xf] %v4643
        %v4656 = vmul.f32 %v305, 0.2
        %v4657 = vmul.f32 %v306, 0.2
        %v4658 = vmul.f32 %v308, 0.3
        %v4659 = vmul.f32 %v309, 0.3
        %v4660 = vadd.f32 %v4656, %v4658
        %v4661 = vadd.f32 %v4657, %v4659
        %v4662 = vmul.f32 %v311, 0.5
        %v4663 = vmul.f32 %v312, 0.5
        %v4664 = vadd.f32 %v4660, %v4662
        %v4665 = vadd.f32 %v4661, %v4663
        %v4666 = vadd.f32 %v4664, 0.1
        %v4667 = vadd.f32 %v4665, 0.1
        %v4668 = vmul.f32 %v4666, 0.5
        %v4669 = vmul.f32 %v4667, 0.5
        %v4670 = vtanh.pop %v4668
        %v4671 = vtanh.pop %v4669
        %v4672 = vmul.f32 %v4670, 0.15
        %v4673 = vmul.f32 %v4671, 0.15
        %v4674 = vadd.f32 %v4672, 0.16
        %v4675 = vadd.f32 %v4673, 0.16
        %v4676 = vrcp.pop %v4674
        %v4677 = vrcp.pop %v4675
        %v4678 = vld [vmem:[#allocation2] sm:$0xff]
        %v4679 = vld [vmem:[#allocation2 + $0x8] sm:$0xff]
        %v4680 = vld [vmem:[#allocation2 + $0x10] sm:$0xff]
        %v4681 = vld [vmem:[#allocation2 + $0x18] sm:$0xff]
        %v4682 = vld [vmem:[#allocation2 + $0x20] sm:$0xff]
        %v4683 = vld [vmem:[#allocation2 + $0x28] sm:$0xff]
        %v4684 = vld [vmem:[#allocation2 + $0x30] sm:$0xff]
        %v4685 = vld [vmem:[#allocation2 + $0x38] sm:$0xff]
        %v4686 = vld [vmem:[#allocation2 + $0x40] sm:$0xff]
        %v4687 = vld [vmem:[#allocation2 + $0x48] sm:$0xff]
        %v4688 = vld [vmem:[%s6] sm:$0xf]
        %v4689 = vld [vmem:[%s6 + $0x4] sm:$0xf]
        %v4690 = vld [vmem:[%s6 + $0x8] sm:$0xf]
        %v4691 = vld [vmem:[%s6 + $0xc] sm:$0xf]
        %v4692 = vld [vmem:[%s6 + $0x10] sm:$0xf]
        %v4693 = vld [vmem:[%s6 + $0x14] sm:$0xf]
        %v4694 = vld [vmem:[%s6 + $0x18] sm:$0xf]
        %v4695 = vld [vmem:[%s6 + $0x1c] sm:$0xf]
        %v4696 = vld [vmem:[%s6 + $0x20] sm:$0xf]
        %v4697 = vld [vmem:[%s6 + $0x24] sm:$0xf]
        %v4698 = vld [vmem:[%s6 + $0x28] sm:$0xf]
        %v4699 = vld [vmem:[%s6 + $0x2c] sm:$0xf]
        %v4700 = vld [vmem:[%s6 + $0x30] sm:$0xf]
        %v4701 = vld [vmem:[%s6 + $0x34] sm:$0xf]
        %v4702 = vld [vmem:[%s6 + $0x38] sm:$0xf]
        %v4703 = vld [vmem:[%s6 + $0x3c] sm:$0xf]
        %v4704 = vld [vmem:[%s6 + $0x40] sm:$0xf]
        %v4705 = vld [vmem:[%s6 + $0x44] sm:$0xf]
        %v4706 = vld [vmem:[%s6 + $0x48] sm:$0xf]
        %v4707 = vld [vmem:[%s6 + $0x4c] sm:$0xf]
        %v4708 = vld [vmem:[%s6 + $0x50] sm:$0xf]
        %v4709 = vld [vmem:[%s6 + $0x54] sm:$0xf]
        %v4710 = vld [vmem:[%s6 + $0x58] sm:$0xf]
        %v4711 = vld [vmem:[%s6 + $0x5c] sm:$0xf]
        %v4712 = vld [vmem:[%s6 + $0x60] sm:$0xf]
        %v4713 = vld [vmem:[%s6 + $0x64] sm:$0xf]
        %v4714 = vld [vmem:[%s6 + $0x68] sm:$0xf]
        %v4715 = vld [vmem:[%s6 + $0x6c] sm:$0xf]
        %v4716 = vld [vmem:[%s6 + $0x70] sm:$0xf]
        %v4717 = vld [vmem:[%s6 + $0x74] sm:$0xf]
        %v4718 = vld [vmem:[%s6 + $0x78] sm:$0xf]
        %v4719 = vld [vmem:[%s6 + $0x7c] sm:$0xf]
        %v4720 = vld [vmem:[%s6 + $0x80] sm:$0xf]
        %v4721 = vld [vmem:[%s6 + $0x84] sm:$0xf]
        %v4722 = vld [vmem:[%s6 + $0x88] sm:$0xf]
        %v4723 = vld [vmem:[%s6 + $0x8c] sm:$0xf]
        %v4724 = vld [vmem:[%s6 + $0x90] sm:$0xf]
        %v4725 = vld [vmem:[%s6 + $0x94] sm:$0xf]
        %v4726 = vld [vmem:[%s6 + $0x98] sm:$0xf]
        %v4727 = vld [vmem:[%s6 + $0x9c] sm:$0xf]
        %v4728 = vld [vmem:[%s6 + $0xa0] sm:$0xf]
        %v4729 = vld [vmem:[%s6 + $0xa4] sm:$0xf]
        %v4730 = vld [vmem:[%s6 + $0xa8] sm:$0xf]
        %v4731 = vld [vmem:[%s6 + $0xac] sm:$0xf]
        %v4732 = vld [vmem:[%s6 + $0xb0] sm:$0xf]
        %v4733 = vld [vmem:[%s6 + $0xb4] sm:$0xf]
        %v4734 = vld [vmem:[%s6 + $0xb8] sm:$0xf]
        %v4735 = vld [vmem:[%s6 + $0xbc] sm:$0xf]
        %v4736 = vld [vmem:[%s6 + $0xc0] sm:$0xf]
        %v4737 = vld [vmem:[%s6 + $0xc4] sm:$0xf]
        %v4738 = vld [vmem:[%s6 + $0xc8] sm:$0xf]
        %v4739 = vld [vmem:[%s6 + $0xcc] sm:$0xf]
        %v4740 = vld [vmem:[%s6 + $0xd0] sm:$0xf]
        %v4741 = vld [vmem:[%s6 + $0xd4] sm:$0xf]
        %v4742 = vld [vmem:[%s6 + $0xd8] sm:$0xf]
        %v4743 = vld [vmem:[%s6 + $0xdc] sm:$0xf]
        %v4744 = vld [vmem:[%s6 + $0xe0] sm:$0xf]
        %v4745 = vld [vmem:[%s6 + $0xe4] sm:$0xf]
        %v4746 = vld [vmem:[%s6 + $0xe8] sm:$0xf]
        %v4747 = vld [vmem:[%s6 + $0xec] sm:$0xf]
        %v4748 = vld [vmem:[%s6 + $0xf0] sm:$0xf]
        %v4749 = vld [vmem:[%s6 + $0xf4] sm:$0xf]
        %v4750 = vld [vmem:[%s6 + $0xf8] sm:$0xf]
        %v4751 = vld [vmem:[%s6 + $0xfc] sm:$0xf]
        %v4752 = vld [vmem:[%s6 + $0x100] sm:$0xf]
        %v4753 = vld [vmem:[%s6 + $0x104] sm:$0xf]
        %v4754 = vld [vmem:[%s6 + $0x108] sm:$0xf]
        %v4755 = vld [vmem:[%s6 + $0x10c] sm:$0xf]
        %v4756 = vld [vmem:[%s6 + $0x110] sm:$0xf]
        %v4757 = vld [vmem:[%s6 + $0x114] sm:$0xf]
        %v4758 = vld [vmem:[%s6 + $0x118] sm:$0xf]
        %v4759 = vld [vmem:[%s6 + $0x11c] sm:$0xf]
        %v4760 = vld [vmem:[%s6 + $0x120] sm:$0xf]
        %v4761 = vld [vmem:[%s6 + $0x124] sm:$0xf]
        %v4762 = vld [vmem:[%s6 + $0x128] sm:$0xf]
        %v4763 = vld [vmem:[%s6 + $0x12c] sm:$0xf]
        %v4764 = vld [vmem:[%s6 + $0x130] sm:$0xf]
        %v4765 = vld [vmem:[%s6 + $0x134] sm:$0xf]
        %v4766 = vld [vmem:[%s6 + $0x138] sm:$0xf]
        %v4767 = vld [vmem:[%s6 + $0x13c] sm:$0xf]
        %v4768 = vld [vmem:[%s6 + $0x140] sm:$0xf]
        %v4769 = vld [vmem:[%s6 + $0x144] sm:$0xf]
        %v4770 = vld [vmem:[%s6 + $0x148] sm:$0xf]
        %v4771 = vld [vmem:[%s6 + $0x14c] sm:$0xf]
        %v4772 = vld [vmem:[%s6 + $0x150] sm:$0xf]
        %v4773 = vld [vmem:[%s6 + $0x154] sm:$0xf]
        %v4774 = vld [vmem:[%s6 + $0x158] sm:$0xf]
        %v4775 = vld [vmem:[%s6 + $0x15c] sm:$0xf]
        %v4776 = vld [vmem:[%s6 + $0x160] sm:$0xf]
        %v4777 = vld [vmem:[%s6 + $0x164] sm:$0xf]
        %v4778 = vld [vmem:[%s6 + $0x168] sm:$0xf]
        %v4779 = vld [vmem:[%s6 + $0x16c] sm:$0xf]
        %v4780 = vld [vmem:[%s6 + $0x170] sm:$0xf]
        %v4781 = vld [vmem:[%s6 + $0x174] sm:$0xf]
        %v4782 = vld [vmem:[%s6 + $0x178] sm:$0xf]
        %v4783 = vld [vmem:[%s6 + $0x17c] sm:$0xf]
        %v4784 = vld [vmem:[%s6 + $0x180] sm:$0xf]
        %v4785 = vld [vmem:[%s6 + $0x184] sm:$0xf]
        %v4786 = vld [vmem:[%s6 + $0x188] sm:$0xf]
        %v4787 = vld [vmem:[%s6 + $0x18c] sm:$0xf]
        %v4788 = vld [vmem:[%s6 + $0x190] sm:$0xf]
        %v4789 = vld [vmem:[%s6 + $0x194] sm:$0xf]
        %v4790 = vld [vmem:[%s6 + $0x198] sm:$0xf]
        %v4791 = vld [vmem:[%s6 + $0x19c] sm:$0xf]
        %v4792 = vld [vmem:[%s6 + $0x1a0] sm:$0xf]
        %v4793 = vld [vmem:[%s6 + $0x1a4] sm:$0xf]
        %v4794 = vld [vmem:[%s6 + $0x1a8] sm:$0xf]
        %v4795 = vld [vmem:[%s6 + $0x1ac] sm:$0xf]
        %v4796 = vld [vmem:[%s6 + $0x1b0] sm:$0xf]
        %v4797 = vld [vmem:[%s6 + $0x1b4] sm:$0xf]
        %v4798 = vld [vmem:[%s6 + $0x1b8] sm:$0xf]
        %v4799 = vld [vmem:[%s6 + $0x1bc] sm:$0xf]
        %v4800 = vld [vmem:[%s6 + $0x1c0] sm:$0xf]
        %v4801 = vld [vmem:[%s6 + $0x1c4] sm:$0xf]
        %v4802 = vld [vmem:[%s6 + $0x1c8] sm:$0xf]
        %v4803 = vld [vmem:[%s6 + $0x1cc] sm:$0xf]
        %v4804 = vld [vmem:[%s6 + $0x1d0] sm:$0xf]
        %v4805 = vld [vmem:[%s6 + $0x1d4] sm:$0xf]
        %v4806 = vld [vmem:[%s6 + $0x1d8] sm:$0xf]
        %v4807 = vld [vmem:[%s6 + $0x1dc] sm:$0xf]
        %v4808 = vld [vmem:[%s6 + $0x1e0] sm:$0xf]
        %v4809 = vld [vmem:[%s6 + $0x1e4] sm:$0xf]
        %v4810 = vld [vmem:[%s6 + $0x1e8] sm:$0xf]
        %v4811 = vld [vmem:[%s6 + $0x1ec] sm:$0xf]
        %v4812 = vld [vmem:[%s6 + $0x1f0] sm:$0xf]
        %v4813 = vld [vmem:[%s6 + $0x1f4] sm:$0xf]
        %v4814 = vld [vmem:[%s6 + $0x1f8] sm:$0xf]
        %v4815 = vld [vmem:[%s6 + $0x1fc] sm:$0xf]
        %v4816 = vld [vmem:[%s6 + $0x200] sm:$0xf]
        %v4817 = vld [vmem:[%s6 + $0x204] sm:$0xf]
        %v4818 = vld [vmem:[%s6 + $0x208] sm:$0xf]
        %v4819 = vld [vmem:[%s6 + $0x20c] sm:$0xf]
        %v4820 = vld [vmem:[%s6 + $0x210] sm:$0xf]
        %v4821 = vld [vmem:[%s6 + $0x214] sm:$0xf]
        %v4822 = vld [vmem:[%s6 + $0x218] sm:$0xf]
        %v4823 = vld [vmem:[%s6 + $0x21c] sm:$0xf]
        %v4824 = vld [vmem:[%s6 + $0x220] sm:$0xf]
        %v4825 = vld [vmem:[%s6 + $0x224] sm:$0xf]
        %v4826 = vld [vmem:[%s6 + $0x228] sm:$0xf]
        %v4827 = vld [vmem:[%s6 + $0x22c] sm:$0xf]
        %v4828 = vld [vmem:[%s6 + $0x230] sm:$0xf]
        %v4829 = vld [vmem:[%s6 + $0x234] sm:$0xf]
        %v4830 = vld [vmem:[%s6 + $0x238] sm:$0xf]
        %v4831 = vld [vmem:[%s6 + $0x23c] sm:$0xf]
        %v4832 = vld [vmem:[%s6 + $0x240] sm:$0xf]
        %v4833 = vld [vmem:[%s6 + $0x244] sm:$0xf]
        %v4834 = vld [vmem:[%s6 + $0x248] sm:$0xf]
        %v4835 = vld [vmem:[%s6 + $0x24c] sm:$0xf]
        %v4836 = vld [vmem:[%s6 + $0x250] sm:$0xf]
        %v4837 = vld [vmem:[%s6 + $0x254] sm:$0xf]
        %v4838 = vld [vmem:[%s6 + $0x258] sm:$0xf]
        %v4839 = vld [vmem:[%s6 + $0x25c] sm:$0xf]
        %v4840 = vld [vmem:[%s6 + $0x260] sm:$0xf]
        %v4841 = vld [vmem:[%s6 + $0x264] sm:$0xf]
        %v4842 = vld [vmem:[%s6 + $0x268] sm:$0xf]
        %v4843 = vld [vmem:[%s6 + $0x26c] sm:$0xf]
        %v4844 = vld [vmem:[%s6 + $0x270] sm:$0xf]
        %v4845 = vld [vmem:[%s6 + $0x274] sm:$0xf]
        %v4846 = vld [vmem:[%s6 + $0x278] sm:$0xf]
        %v4847 = vld [vmem:[%s6 + $0x27c] sm:$0xf]
        %v4848 = vmul.f32 %v4676, 0.33333334
        %v4849 = vmul.f32 %v4677, 0.33333334
        %v4860 = vunpack.c.l.b16 %v4678
        %v4861 = vunpack.c.h.b16 %v4678
        %v4862 = vunpack.c.l.b16 %v4679
        %v4863 = vunpack.c.h.b16 %v4679
        %v4864 = vunpack.c.l.b16 %v4680
        %v4865 = vunpack.c.h.b16 %v4680
        %v4866 = vunpack.c.l.b16 %v4681
        %v4867 = vunpack.c.h.b16 %v4681
        %v4868 = vunpack.c.l.b16 %v4682
        %v4869 = vunpack.c.h.b16 %v4682
        %v4870 = vunpack.c.l.b16 %v4683
        %v4871 = vunpack.c.h.b16 %v4683
        %v4872 = vunpack.c.l.b16 %v4684
        %v4873 = vunpack.c.h.b16 %v4684
        %v4874 = vunpack.c.l.b16 %v4685
        %v4875 = vunpack.c.h.b16 %v4685
        %v4876 = vunpack.c.l.b16 %v4686
        %v4877 = vunpack.c.h.b16 %v4686
        %v4878 = vunpack.c.l.b16 %v4687
        %v4879 = vunpack.c.h.b16 %v4687
        %v4880 = vpack.c.b16 %v4870, %v4860
        %v4881 = vpack.c.b16 %v4871, %v4861
        %v4882 = vpack.c.b16 %v4872, %v4862
        %v4883 = vpack.c.b16 %v4873, %v4863
        %v4884 = vpack.c.b16 %v4874, %v4864
        %v4885 = vpack.c.b16 %v4875, %v4865
        %v4886 = vpack.c.b16 %v4876, %v4866
        %v4887 = vpack.c.b16 %v4877, %v4867
        %v4888 = vpack.c.b16 %v4878, %v4868
        %v4889 = vpack.c.b16 %v4879, %v4869
        %v5060 = vunpack.c.l.b16 %v4688
        %v5061 = vunpack.c.l.b16 %v4689
        %v5062 = vunpack.c.l.b16 %v4690
        %v5063 = vunpack.c.l.b16 %v4691
        %v5064 = vunpack.c.l.b16 %v4692
        %v5065 = vunpack.c.l.b16 %v4693
        %v5066 = vunpack.c.l.b16 %v4694
        %v5067 = vunpack.c.l.b16 %v4695
        %v5068 = vunpack.c.l.b16 %v4696
        %v5069 = vunpack.c.l.b16 %v4697
        %v5070 = vunpack.c.l.b16 %v4698
        %v5071 = vunpack.c.l.b16 %v4699
        %v5072 = vunpack.c.l.b16 %v4700
        %v5073 = vunpack.c.l.b16 %v4701
        %v5074 = vunpack.c.l.b16 %v4702
        %v5075 = vunpack.c.l.b16 %v4703
        %v5076 = vunpack.c.l.b16 %v4704
        %v5077 = vunpack.c.l.b16 %v4705
        %v5078 = vunpack.c.l.b16 %v4706
        %v5079 = vunpack.c.l.b16 %v4707
        %v5080 = vunpack.c.l.b16 %v4708
        %v5081 = vunpack.c.l.b16 %v4709
        %v5082 = vunpack.c.l.b16 %v4710
        %v5083 = vunpack.c.l.b16 %v4711
        %v5084 = vunpack.c.l.b16 %v4712
        %v5085 = vunpack.c.l.b16 %v4713
        %v5086 = vunpack.c.l.b16 %v4714
        %v5087 = vunpack.c.l.b16 %v4715
        %v5088 = vunpack.c.l.b16 %v4716
        %v5089 = vunpack.c.l.b16 %v4717
        %v5090 = vunpack.c.l.b16 %v4718
        %v5091 = vunpack.c.l.b16 %v4719
        %v5092 = vunpack.c.l.b16 %v4720
        %v5093 = vunpack.c.l.b16 %v4721
        %v5094 = vunpack.c.l.b16 %v4722
        %v5095 = vunpack.c.l.b16 %v4723
        %v5096 = vunpack.c.l.b16 %v4724
        %v5097 = vunpack.c.l.b16 %v4725
        %v5098 = vunpack.c.l.b16 %v4726
        %v5099 = vunpack.c.l.b16 %v4727
        %v5100 = vunpack.c.l.b16 %v4728
        %v5101 = vunpack.c.l.b16 %v4729
        %v5102 = vunpack.c.l.b16 %v4730
        %v5103 = vunpack.c.l.b16 %v4731
        %v5104 = vunpack.c.l.b16 %v4732
        %v5105 = vunpack.c.l.b16 %v4733
        %v5106 = vunpack.c.l.b16 %v4734
        %v5107 = vunpack.c.l.b16 %v4735
        %v5108 = vunpack.c.l.b16 %v4736
        %v5109 = vunpack.c.l.b16 %v4737
        %v5110 = vunpack.c.l.b16 %v4738
        %v5111 = vunpack.c.l.b16 %v4739
        %v5112 = vunpack.c.l.b16 %v4740
        %v5113 = vunpack.c.l.b16 %v4741
        %v5114 = vunpack.c.l.b16 %v4742
        %v5115 = vunpack.c.l.b16 %v4743
        %v5116 = vunpack.c.l.b16 %v4744
        %v5117 = vunpack.c.l.b16 %v4745
        %v5118 = vunpack.c.l.b16 %v4746
        %v5119 = vunpack.c.l.b16 %v4747
        %v5120 = vunpack.c.l.b16 %v4748
        %v5121 = vunpack.c.l.b16 %v4749
        %v5122 = vunpack.c.l.b16 %v4750
        %v5123 = vunpack.c.l.b16 %v4751
        %v5124 = vunpack.c.l.b16 %v4752
        %v5125 = vunpack.c.l.b16 %v4753
        %v5126 = vunpack.c.l.b16 %v4754
        %v5127 = vunpack.c.l.b16 %v4755
        %v5128 = vunpack.c.l.b16 %v4756
        %v5129 = vunpack.c.l.b16 %v4757
        %v5130 = vunpack.c.l.b16 %v4758
        %v5131 = vunpack.c.l.b16 %v4759
        %v5132 = vunpack.c.l.b16 %v4760
        %v5133 = vunpack.c.l.b16 %v4761
        %v5134 = vunpack.c.l.b16 %v4762
        %v5135 = vunpack.c.l.b16 %v4763
        %v5136 = vunpack.c.l.b16 %v4764
        %v5137 = vunpack.c.l.b16 %v4765
        %v5138 = vunpack.c.l.b16 %v4766
        %v5139 = vunpack.c.l.b16 %v4767
        %v5140 = vunpack.c.l.b16 %v4768
        %v5141 = vunpack.c.l.b16 %v4769
        %v5142 = vunpack.c.l.b16 %v4770
        %v5143 = vunpack.c.l.b16 %v4771
        %v5144 = vunpack.c.l.b16 %v4772
        %v5145 = vunpack.c.l.b16 %v4773
        %v5146 = vunpack.c.l.b16 %v4774
        %v5147 = vunpack.c.l.b16 %v4775
        %v5148 = vunpack.c.l.b16 %v4776
        %v5149 = vunpack.c.l.b16 %v4777
        %v5150 = vunpack.c.l.b16 %v4778
        %v5151 = vunpack.c.l.b16 %v4779
        %v5152 = vunpack.c.l.b16 %v4780
        %v5153 = vunpack.c.l.b16 %v4781
        %v5154 = vunpack.c.l.b16 %v4782
        %v5155 = vunpack.c.l.b16 %v4783
        %v5156 = vunpack.c.l.b16 %v4784
        %v5157 = vunpack.c.l.b16 %v4785
        %v5158 = vunpack.c.l.b16 %v4786
        %v5159 = vunpack.c.l.b16 %v4787
        %v5160 = vunpack.c.l.b16 %v4788
        %v5161 = vunpack.c.l.b16 %v4789
        %v5162 = vunpack.c.l.b16 %v4790
        %v5163 = vunpack.c.l.b16 %v4791
        %v5164 = vunpack.c.l.b16 %v4792
        %v5165 = vunpack.c.l.b16 %v4793
        %v5166 = vunpack.c.l.b16 %v4794
        %v5167 = vunpack.c.l.b16 %v4795
        %v5168 = vunpack.c.l.b16 %v4796
        %v5169 = vunpack.c.l.b16 %v4797
        %v5170 = vunpack.c.l.b16 %v4798
        %v5171 = vunpack.c.l.b16 %v4799
        %v5172 = vunpack.c.l.b16 %v4800
        %v5173 = vunpack.c.l.b16 %v4801
        %v5174 = vunpack.c.l.b16 %v4802
        %v5175 = vunpack.c.l.b16 %v4803
        %v5176 = vunpack.c.l.b16 %v4804
        %v5177 = vunpack.c.l.b16 %v4805
        %v5178 = vunpack.c.l.b16 %v4806
        %v5179 = vunpack.c.l.b16 %v4807
        %v5180 = vunpack.c.l.b16 %v4808
        %v5181 = vunpack.c.l.b16 %v4809
        %v5182 = vunpack.c.l.b16 %v4810
        %v5183 = vunpack.c.l.b16 %v4811
        %v5184 = vunpack.c.l.b16 %v4812
        %v5185 = vunpack.c.l.b16 %v4813
        %v5186 = vunpack.c.l.b16 %v4814
        %v5187 = vunpack.c.l.b16 %v4815
        %v5188 = vunpack.c.l.b16 %v4816
        %v5189 = vunpack.c.l.b16 %v4817
        %v5190 = vunpack.c.l.b16 %v4818
        %v5191 = vunpack.c.l.b16 %v4819
        %v5192 = vunpack.c.l.b16 %v4820
        %v5193 = vunpack.c.l.b16 %v4821
        %v5194 = vunpack.c.l.b16 %v4822
        %v5195 = vunpack.c.l.b16 %v4823
        %v5196 = vunpack.c.l.b16 %v4824
        %v5197 = vunpack.c.l.b16 %v4825
        %v5198 = vunpack.c.l.b16 %v4826
        %v5199 = vunpack.c.l.b16 %v4827
        %v5200 = vunpack.c.l.b16 %v4828
        %v5201 = vunpack.c.l.b16 %v4829
        %v5202 = vunpack.c.l.b16 %v4830
        %v5203 = vunpack.c.l.b16 %v4831
        %v5204 = vunpack.c.l.b16 %v4832
        %v5205 = vunpack.c.l.b16 %v4833
        %v5206 = vunpack.c.l.b16 %v4834
        %v5207 = vunpack.c.l.b16 %v4835
        %v5208 = vunpack.c.l.b16 %v4836
        %v5209 = vunpack.c.l.b16 %v4837
        %v5210 = vunpack.c.l.b16 %v4838
        %v5211 = vunpack.c.l.b16 %v4839
        %v5212 = vunpack.c.l.b16 %v4840
        %v5213 = vunpack.c.l.b16 %v4841
        %v5214 = vunpack.c.l.b16 %v4842
        %v5215 = vunpack.c.l.b16 %v4843
        %v5216 = vunpack.c.l.b16 %v4844
        %v5217 = vunpack.c.l.b16 %v4845
        %v5218 = vunpack.c.l.b16 %v4846
        %v5219 = vunpack.c.l.b16 %v4847
        %v5220 = vpack.c.b16 %v5061, %v5060
        %v5221 = vpack.c.b16 %v5063, %v5062
        %v5222 = vpack.c.b16 %v5065, %v5064
        %v5223 = vpack.c.b16 %v5067, %v5066
        %v5224 = vpack.c.b16 %v5069, %v5068
        %v5225 = vpack.c.b16 %v5071, %v5070
        %v5226 = vpack.c.b16 %v5073, %v5072
        %v5227 = vpack.c.b16 %v5075, %v5074
        %v5228 = vpack.c.b16 %v5077, %v5076
        %v5229 = vpack.c.b16 %v5079, %v5078
        %v5230 = vpack.c.b16 %v5081, %v5080
        %v5231 = vpack.c.b16 %v5083, %v5082
        %v5232 = vpack.c.b16 %v5085, %v5084
        %v5233 = vpack.c.b16 %v5087, %v5086
        %v5234 = vpack.c.b16 %v5089, %v5088
        %v5235 = vpack.c.b16 %v5091, %v5090
        %v5236 = vpack.c.b16 %v5093, %v5092
        %v5237 = vpack.c.b16 %v5095, %v5094
        %v5238 = vpack.c.b16 %v5097, %v5096
        %v5239 = vpack.c.b16 %v5099, %v5098
        %v5240 = vpack.c.b16 %v5101, %v5100
        %v5241 = vpack.c.b16 %v5103, %v5102
        %v5242 = vpack.c.b16 %v5105, %v5104
        %v5243 = vpack.c.b16 %v5107, %v5106
        %v5244 = vpack.c.b16 %v5109, %v5108
        %v5245 = vpack.c.b16 %v5111, %v5110
        %v5246 = vpack.c.b16 %v5113, %v5112
        %v5247 = vpack.c.b16 %v5115, %v5114
        %v5248 = vpack.c.b16 %v5117, %v5116
        %v5249 = vpack.c.b16 %v5119, %v5118
        %v5250 = vpack.c.b16 %v5121, %v5120
        %v5251 = vpack.c.b16 %v5123, %v5122
        %v5252 = vpack.c.b16 %v5125, %v5124
        %v5253 = vpack.c.b16 %v5127, %v5126
        %v5254 = vpack.c.b16 %v5129, %v5128
        %v5255 = vpack.c.b16 %v5131, %v5130
        %v5256 = vpack.c.b16 %v5133, %v5132
        %v5257 = vpack.c.b16 %v5135, %v5134
        %v5258 = vpack.c.b16 %v5137, %v5136
        %v5259 = vpack.c.b16 %v5139, %v5138
        %v5260 = vpack.c.b16 %v5141, %v5140
        %v5261 = vpack.c.b16 %v5143, %v5142
        %v5262 = vpack.c.b16 %v5145, %v5144
        %v5263 = vpack.c.b16 %v5147, %v5146
        %v5264 = vpack.c.b16 %v5149, %v5148
        %v5265 = vpack.c.b16 %v5151, %v5150
        %v5266 = vpack.c.b16 %v5153, %v5152
        %v5267 = vpack.c.b16 %v5155, %v5154
        %v5268 = vpack.c.b16 %v5157, %v5156
        %v5269 = vpack.c.b16 %v5159, %v5158
        %v5270 = vpack.c.b16 %v5161, %v5160
        %v5271 = vpack.c.b16 %v5163, %v5162
        %v5272 = vpack.c.b16 %v5165, %v5164
        %v5273 = vpack.c.b16 %v5167, %v5166
        %v5274 = vpack.c.b16 %v5169, %v5168
        %v5275 = vpack.c.b16 %v5171, %v5170
        %v5276 = vpack.c.b16 %v5173, %v5172
        %v5277 = vpack.c.b16 %v5175, %v5174
        %v5278 = vpack.c.b16 %v5177, %v5176
        %v5279 = vpack.c.b16 %v5179, %v5178
        %v5280 = vpack.c.b16 %v5181, %v5180
        %v5281 = vpack.c.b16 %v5183, %v5182
        %v5282 = vpack.c.b16 %v5185, %v5184
        %v5283 = vpack.c.b16 %v5187, %v5186
        %v5284 = vpack.c.b16 %v5189, %v5188
        %v5285 = vpack.c.b16 %v5191, %v5190
        %v5286 = vpack.c.b16 %v5193, %v5192
        %v5287 = vpack.c.b16 %v5195, %v5194
        %v5288 = vpack.c.b16 %v5197, %v5196
        %v5289 = vpack.c.b16 %v5199, %v5198
        %v5290 = vpack.c.b16 %v5201, %v5200
        %v5291 = vpack.c.b16 %v5203, %v5202
        %v5292 = vpack.c.b16 %v5205, %v5204
        %v5293 = vpack.c.b16 %v5207, %v5206
        %v5294 = vpack.c.b16 %v5209, %v5208
        %v5295 = vpack.c.b16 %v5211, %v5210
        %v5296 = vpack.c.b16 %v5213, %v5212
        %v5297 = vpack.c.b16 %v5215, %v5214
        %v5298 = vpack.c.b16 %v5217, %v5216
        %v5299 = vpack.c.b16 %v5219, %v5218
        %5380 = vmatprep.subr.bf16.mxu0 0
        %5381 = vmatpush1.bf16.msra.mxu0 %v5227
        %5382 = vmatprep.subr.bf16.mxu0 0
        %5383 = vmatpush1.bf16.msra.mxu0 %v5226
        %5384 = vmatprep.subr.bf16.mxu0 0
        %5385 = vmatpush1.bf16.msra.mxu0 %v5225
        %5386 = vmatprep.subr.bf16.mxu0 0
        %5387 = vmatpush1.bf16.msra.mxu0 %v5224
        %5388 = vmatprep.subr.bf16.mxu0 0
        %5389 = vmatpush1.bf16.msra.mxu0 %v5223
        %5390 = vmatprep.subr.bf16.mxu0 0
        %5391 = vmatpush1.bf16.msra.mxu0 %v5222
        %5392 = vmatprep.subr.bf16.mxu0 0
        %5393 = vmatpush1.bf16.msra.mxu0 %v5221
        %5394 = vmatprep.subr.bf16.mxu0 0
        %5395 = vmatpush1.bf16.msra.mxu0 %v5220
        %5396 = vmatprep.subr.bf16.mxu0 0
        %5397 = vmatpush2.bf16.msra.mxu0 %v5235
        %5398 = vmatprep.subr.bf16.mxu0 0
        %5399 = vmatpush2.bf16.msra.mxu0 %v5234
        %5400 = vmatprep.subr.bf16.mxu0 0
        %5401 = vmatpush2.bf16.msra.mxu0 %v5233
        %5402 = vmatprep.subr.bf16.mxu0 0
        %5403 = vmatpush2.bf16.msra.mxu0 %v5232
        %5404 = vmatprep.subr.bf16.mxu0 0
        %5405 = vmatpush2.bf16.msra.mxu0 %v5231
        %5406 = vmatprep.subr.bf16.mxu0 0
        %5407 = vmatpush2.bf16.msra.mxu0 %v5230
        %5408 = vmatprep.subr.bf16.mxu0 0
        %5409 = vmatpush2.bf16.msra.mxu0 %v5229
        %5410 = vmatprep.subr.bf16.mxu0 0
        %5411 = vmatpush2.bf16.msra.mxu0 %v5228
        %5412 = vmatprep.mubr.bf16.mxu0 %v4881
        %5413 = vmatmul.mubr.bf16.gmra.mxu0 %v4880
        %v5414 = vpop.f32.mrf.mxu0
        %v5415 = vadd.f32 %v4848, %v5414
        %v5416 = vpop.f32.mrf.mxu0
        %v5417 = vpop.f32.mrf.mxu0
        %v5418 = vadd.f32 %v4849, %v5417
        %v5419 = vpop.f32.mrf.mxu0
        %5420 = vdwg.mxu0
        %5421 = vmatprep.subr.bf16.mxu0 0
        %5422 = vmatpush1.bf16.msra.mxu0 %v5243
        %5423 = vmatprep.subr.bf16.mxu0 0
        %5424 = vmatpush1.bf16.msra.mxu0 %v5242
        %5425 = vmatprep.subr.bf16.mxu0 0
        %5426 = vmatpush1.bf16.msra.mxu0 %v5241
        %5427 = vmatprep.subr.bf16.mxu0 0
        %5428 = vmatpush1.bf16.msra.mxu0 %v5240
        %5429 = vmatprep.subr.bf16.mxu0 0
        %5430 = vmatpush1.bf16.msra.mxu0 %v5239
        %5431 = vmatprep.subr.bf16.mxu0 0
        %5432 = vmatpush1.bf16.msra.mxu0 %v5238
        %5433 = vmatprep.subr.bf16.mxu0 0
        %5434 = vmatpush1.bf16.msra.mxu0 %v5237
        %5435 = vmatprep.subr.bf16.mxu0 0
        %5436 = vmatpush1.bf16.msra.mxu0 %v5236
        %5437 = vmatprep.subr.bf16.mxu0 0
        %5438 = vmatpush2.bf16.msra.mxu0 %v5251
        %5439 = vmatprep.subr.bf16.mxu0 0
        %5440 = vmatpush2.bf16.msra.mxu0 %v5250
        %5441 = vmatprep.subr.bf16.mxu0 0
        %5442 = vmatpush2.bf16.msra.mxu0 %v5249
        %5443 = vmatprep.subr.bf16.mxu0 0
        %5444 = vmatpush2.bf16.msra.mxu0 %v5248
        %5445 = vmatprep.subr.bf16.mxu0 0
        %5446 = vmatpush2.bf16.msra.mxu0 %v5247
        %5447 = vmatprep.subr.bf16.mxu0 0
        %5448 = vmatpush2.bf16.msra.mxu0 %v5246
        %5449 = vmatprep.subr.bf16.mxu0 0
        %5450 = vmatpush2.bf16.msra.mxu0 %v5245
        %5451 = vmatprep.subr.bf16.mxu0 0
        %5452 = vmatpush2.bf16.msra.mxu0 %v5244
        %5453 = vmatprep.mubr.bf16.mxu0 %v4883
        %5454 = vmatmul.mubr.bf16.gmra.mxu0 %v4882
        %v5455 = vpop.f32.mrf.mxu0
        %v5456 = vadd.f32 %v5415, %v5455
        %v5457 = vpop.f32.mrf.mxu0
        %v5458 = vpop.f32.mrf.mxu0
        %v5459 = vadd.f32 %v5418, %v5458
        %v5460 = vpop.f32.mrf.mxu0
        %5461 = vdwg.mxu0
        %5462 = vmatprep.subr.bf16.mxu0 0
        %5463 = vmatpush1.bf16.msra.mxu0 %v5259
        %5464 = vmatprep.subr.bf16.mxu0 0
        %5465 = vmatpush1.bf16.msra.mxu0 %v5258
        %5466 = vmatprep.subr.bf16.mxu0 0
        %5467 = vmatpush1.bf16.msra.mxu0 %v5257
        %5468 = vmatprep.subr.bf16.mxu0 0
        %5469 = vmatpush1.bf16.msra.mxu0 %v5256
        %5470 = vmatprep.subr.bf16.mxu0 0
        %5471 = vmatpush1.bf16.msra.mxu0 %v5255
        %5472 = vmatprep.subr.bf16.mxu0 0
        %5473 = vmatpush1.bf16.msra.mxu0 %v5254
        %5474 = vmatprep.subr.bf16.mxu0 0
        %5475 = vmatpush1.bf16.msra.mxu0 %v5253
        %5476 = vmatprep.subr.bf16.mxu0 0
        %5477 = vmatpush1.bf16.msra.mxu0 %v5252
        %5478 = vmatprep.subr.bf16.mxu0 0
        %5479 = vmatpush2.bf16.msra.mxu0 %v5267
        %5480 = vmatprep.subr.bf16.mxu0 0
        %5481 = vmatpush2.bf16.msra.mxu0 %v5266
        %5482 = vmatprep.subr.bf16.mxu0 0
        %5483 = vmatpush2.bf16.msra.mxu0 %v5265
        %5484 = vmatprep.subr.bf16.mxu0 0
        %5485 = vmatpush2.bf16.msra.mxu0 %v5264
        %5486 = vmatprep.subr.bf16.mxu0 0
        %5487 = vmatpush2.bf16.msra.mxu0 %v5263
        %5488 = vmatprep.subr.bf16.mxu0 0
        %5489 = vmatpush2.bf16.msra.mxu0 %v5262
        %5490 = vmatprep.subr.bf16.mxu0 0
        %5491 = vmatpush2.bf16.msra.mxu0 %v5261
        %5492 = vmatprep.subr.bf16.mxu0 0
        %5493 = vmatpush2.bf16.msra.mxu0 %v5260
        %5494 = vmatprep.mubr.bf16.mxu0 %v4885
        %5495 = vmatmul.mubr.bf16.gmra.mxu0 %v4884
        %v5496 = vpop.f32.mrf.mxu0
        %v5497 = vadd.f32 %v5456, %v5496
        %v5498 = vpop.f32.mrf.mxu0
        %v5499 = vpop.f32.mrf.mxu0
        %v5500 = vadd.f32 %v5459, %v5499
        %v5501 = vpop.f32.mrf.mxu0
        %5502 = vdwg.mxu0
        %5503 = vmatprep.subr.bf16.mxu0 0
        %5504 = vmatpush1.bf16.msra.mxu0 %v5275
        %5505 = vmatprep.subr.bf16.mxu0 0
        %5506 = vmatpush1.bf16.msra.mxu0 %v5274
        %5507 = vmatprep.subr.bf16.mxu0 0
        %5508 = vmatpush1.bf16.msra.mxu0 %v5273
        %5509 = vmatprep.subr.bf16.mxu0 0
        %5510 = vmatpush1.bf16.msra.mxu0 %v5272
        %5511 = vmatprep.subr.bf16.mxu0 0
        %5512 = vmatpush1.bf16.msra.mxu0 %v5271
        %5513 = vmatprep.subr.bf16.mxu0 0
        %5514 = vmatpush1.bf16.msra.mxu0 %v5270
        %5515 = vmatprep.subr.bf16.mxu0 0
        %5516 = vmatpush1.bf16.msra.mxu0 %v5269
        %5517 = vmatprep.subr.bf16.mxu0 0
        %5518 = vmatpush1.bf16.msra.mxu0 %v5268
        %5519 = vmatprep.subr.bf16.mxu0 0
        %5520 = vmatpush2.bf16.msra.mxu0 %v5283
        %5521 = vmatprep.subr.bf16.mxu0 0
        %5522 = vmatpush2.bf16.msra.mxu0 %v5282
        %5523 = vmatprep.subr.bf16.mxu0 0
        %5524 = vmatpush2.bf16.msra.mxu0 %v5281
        %5525 = vmatprep.subr.bf16.mxu0 0
        %5526 = vmatpush2.bf16.msra.mxu0 %v5280
        %5527 = vmatprep.subr.bf16.mxu0 0
        %5528 = vmatpush2.bf16.msra.mxu0 %v5279
        %5529 = vmatprep.subr.bf16.mxu0 0
        %5530 = vmatpush2.bf16.msra.mxu0 %v5278
        %5531 = vmatprep.subr.bf16.mxu0 0
        %5532 = vmatpush2.bf16.msra.mxu0 %v5277
        %5533 = vmatprep.subr.bf16.mxu0 0
        %5534 = vmatpush2.bf16.msra.mxu0 %v5276
        %5535 = vmatprep.mubr.bf16.mxu0 %v4887
        %5536 = vmatmul.mubr.bf16.gmra.mxu0 %v4886
        %v5537 = vpop.f32.mrf.mxu0
        %v5538 = vadd.f32 %v5497, %v5537
        %v5539 = vpop.f32.mrf.mxu0
        %v5540 = vpop.f32.mrf.mxu0
        %v5541 = vadd.f32 %v5500, %v5540
        %v5542 = vpop.f32.mrf.mxu0
        %5543 = vdwg.mxu0
        %5544 = vmatprep.subr.bf16.mxu0 0
        %5545 = vmatpush1.bf16.msra.mxu0 %v5291
        %5546 = vmatprep.subr.bf16.mxu0 0
        %5547 = vmatpush1.bf16.msra.mxu0 %v5290
        %5548 = vmatprep.subr.bf16.mxu0 0
        %5549 = vmatpush1.bf16.msra.mxu0 %v5289
        %5550 = vmatprep.subr.bf16.mxu0 0
        %5551 = vmatpush1.bf16.msra.mxu0 %v5288
        %5552 = vmatprep.subr.bf16.mxu0 0
        %5553 = vmatpush1.bf16.msra.mxu0 %v5287
        %5554 = vmatprep.subr.bf16.mxu0 0
        %5555 = vmatpush1.bf16.msra.mxu0 %v5286
        %5556 = vmatprep.subr.bf16.mxu0 0
        %5557 = vmatpush1.bf16.msra.mxu0 %v5285
        %5558 = vmatprep.subr.bf16.mxu0 0
        %5559 = vmatpush1.bf16.msra.mxu0 %v5284
        %5560 = vmatprep.subr.bf16.mxu0 0
        %5561 = vmatpush2.bf16.msra.mxu0 %v5299
        %5562 = vmatprep.subr.bf16.mxu0 0
        %5563 = vmatpush2.bf16.msra.mxu0 %v5298
        %5564 = vmatprep.subr.bf16.mxu0 0
        %5565 = vmatpush2.bf16.msra.mxu0 %v5297
        %5566 = vmatprep.subr.bf16.mxu0 0
        %5567 = vmatpush2.bf16.msra.mxu0 %v5296
        %5568 = vmatprep.subr.bf16.mxu0 0
        %5569 = vmatpush2.bf16.msra.mxu0 %v5295
        %5570 = vmatprep.subr.bf16.mxu0 0
        %5571 = vmatpush2.bf16.msra.mxu0 %v5294
        %5572 = vmatprep.subr.bf16.mxu0 0
        %5573 = vmatpush2.bf16.msra.mxu0 %v5293
        %5574 = vmatprep.subr.bf16.mxu0 0
        %5575 = vmatpush2.bf16.msra.mxu0 %v5292
        %5576 = vmatprep.mubr.bf16.mxu0 %v4889
        %5577 = vmatmul.mubr.bf16.gmra.mxu0 %v4888
        %v5578 = vpop.f32.mrf.mxu0
        %v5579 = vadd.f32 %v5538, %v5578
        %v5580 = vpop.f32.mrf.mxu0
        %v5581 = vpop.f32.mrf.mxu0
        %v5582 = vadd.f32 %v5541, %v5581
        %v5583 = vpop.f32.mrf.mxu0
        %5584 = vdwg.mxu0
        %5585 = vst.msk [vmem:[%s298] sm:$0xff] %vm368, %v5579
        %5586 = vst.msk [vmem:[%s298 + $0x8] sm:$0xff] %vm368, %v5582
        %s5587 = sand.u32 %s203, 1
        %s5588 = scalar_lea.sflag [#allocation4], %s5587
        %s5589 = sand.u32 %s203, 1
        %s5590 = smul.addr %s5589, 16
        %s5591 = scalar_lea.vmem [#allocation3], %s5590
        // Predicated region
        $region53: #{tpu_custom_call.1} parent=51 // pred_check
          %p5592 = pneg %p213
        $region54: #{tpu_custom_call.1} parent=51 // pred_check_branch
          %5594 = sbr.rel (%p5592) target = $region56
        $region55: #{tpu_custom_call.1} parent=51 // pred_region
          %s5596 = ssub.s32 256, 256
          %5597 = vsyncadd %s5588, %s5596
          %s5598 = smul.addr %s22, 2
          %s5599 = smul.addr %s5598, 128
          %s5600 = scalar_lea.hbm %s8, %s5599
          %s5601 = sshll.u32 %s5591, 4
          %s5602 = int_to_ptr.vmem [resolvable:$true] %s5601
          %5607 = dma.vmem_to_hbm [thread:$0]  %s5602, 256, %s5600, %s5588, 128, 128, 8
        $region56: #{tpu_custom_call.1} parent=51 // pred_fallthru
          _
      $region52: #{tpu_custom_call.1} parent=5 // pred_fallthru
        _
      %p5608 = scmp.le.s32.totalorder 2, %s17
      // Predicated region
      $region57: #{tpu_custom_call.1} parent=5 // pred_check
        %p5609 = pneg %p5608
      $region58: #{tpu_custom_call.1} parent=5 // pred_check_branch
        %5611 = sbr.rel (%p5609) target = $region60
      $region59: #{tpu_custom_call.1} parent=5 // pred_region
        %s5612 = ssub.s32 %s17, 2
        // Predicated region
        $region61: #{tpu_custom_call.1} parent=59 // pred_check
          %p5613 = pneg %p219
        $region62: #{tpu_custom_call.1} parent=59 // pred_check_branch
          %5615 = sbr.rel (%p5613) target = $region64
        $region63: #{tpu_custom_call.1} parent=59 // pred_region
          %s5616 = sand.u32 %s204, 1
          %s5617 = scalar_lea.sflag [#allocation4], %s5616
          %s5618 = sand.u32 %s204, 1
          %s5619 = smul.addr %s5618, 16
          %s5620 = scalar_lea.vmem [#allocation3], %s5619
          %5621 = dma.done %s5617, 256
        $region64: #{tpu_custom_call.1} parent=59 // pred_fallthru
          _
      $region60: #{tpu_custom_call.1} parent=5 // pred_fallthru
        _
    $region6: #{tpu_custom_call.1} parent=1 // loop_footer
      %s21 = sadd.s32 1, %s17
    $region7: #{tpu_custom_call.1} parent=1 // loop_footer_branch
      %16 = sbr.rel target = $region3
    $region8: #{tpu_custom_call.1} parent=1 // loop_exit
      _
    %5622 = vsyncpa [#allocation4], 1
    %s5623 = scalar_lea.sflag [#allocation4], 1
    %5624 = vsyncpa %s5623, 1

</llo_original>
